<compile_context>
chip_gen: v7x
topology: tpu7x:2x2x1
jax: 0.10.0
libtpu: 0.0.40
codegen_flags: <defaults>
</compile_context>

<pallas_src>
import jax
import jax.numpy as jnp
import numpy as np
from jax import lax
from jax.experimental import pallas as pl
from jax.experimental.pallas import tpu as pltpu


def _sigmoid(x):
    # tanh-form sigmoid: routes the transcendental to the EUP, no VPU divide.
    return 0.5 * jnp.tanh(0.5 * x) + 0.5


# ----------------------------------------------------------------------------
# Pallas kernel
# ----------------------------------------------------------------------------
def _mlstm_fcn_kernel(
    tmax_ref,                              # SMEM [1] int32 (scalar prefetch)
    x_ref,                                 # VMEM [T, bt, F] bf16 (time-major)
    keep_ref,                              # VMEM [bt, 1] f32 (1 iff seq_len == T_max)
    wih_ref, whh_ref, bl_ref,              # [F,4H] bf16, [H,4H] f32, [1,4H] f32
    w1_ref, b1_ref,                        # [K1*F , C1] bf16, [1,C1] f32 (BN folded, im2col)
    w2_ref, b2_ref,                        # [K2*C1, C2] bf16, [1,C2] f32
    w3_ref, b3_ref,                        # [K3*C2, C3] bf16, [1,C3] f32
    se1a_ref, se1b_ref,                    # [C1r,C1] f32, [C1r,C1] f32
    se2a_ref, se2b_ref,                    # [C2r,C2] f32, [C2r,C2] f32
    wfc_ref, bfc_ref,                      # [H+C3, NCp] bf16 (fused FC), [1,NCp] f32
    out_ref,                               # [bt, NCp] f32
    xg_ref,                                # VMEM scratch [T, bt, 4H] bf16
):
    T, bt, F = x_ref.shape
    H = whh_ref.shape[0]
    C1 = w1_ref.shape[1]
    C2 = w2_ref.shape[1]
    K1 = w1_ref.shape[0] // F
    K2 = w2_ref.shape[0] // C1
    K3 = w3_ref.shape[0] // C2
    L1 = T - K1 + 1
    L2 = L1 - K2 + 1
    L3 = L2 - K3 + 1

    xv = x_ref[...]                                              # [T, bt, F] bf16

    # ---------------------------- LSTM branch ------------------------------
    # Hoisted input projection: ONE big MXU matmul instead of T tiny ones.
    # Stored bf16 to halve the largest scratch + per-step load bandwidth.
    proj = jnp.dot(xv.reshape(T * bt, F), wih_ref[...],
                   preferred_element_type=jnp.float32)           # [T*bt, 4H] f32
    xg_ref[...] = proj.reshape(T, bt, 4 * H).astype(jnp.bfloat16)

    whh = whh_ref[...]            # small f32 weight -> f32 recurrence (no drift)
    bl = bl_ref[...]              # [1, 4H] f32 bias, added in f32 each step
    keep = keep_ref[...]
    tmax = tmax_ref[0]

    def lstm_step(t, carry):
        h, c = carry
        g = (xg_ref[t].astype(jnp.float32) + bl
             + jnp.dot(h, whh, preferred_element_type=jnp.float32))   # [bt, 4H]
        i_g = _sigmoid(g[:, 0 * H:1 * H])
        f_g = _sigmoid(g[:, 1 * H:2 * H])
        g_g = jnp.tanh(g[:, 2 * H:3 * H])
        o_g = _sigmoid(g[:, 3 * H:4 * H])
        c_new = f_g * c + i_g * g_g
        h_new = o_g * jnp.tanh(c_new)
        active = t < tmax                          # per-step mask instead of a
        h = jnp.where(active, h_new, h)            # dynamic trip count -> static
        c = jnp.where(active, c_new, c)            # loop the scheduler can overlap
        return h, c

    zeros_bh = jnp.zeros((bt, H), jnp.float32)
    h_fin, _ = lax.fori_loop(0, T, lstm_step, (zeros_bh, zeros_bh),
                             unroll=True if T <= 32 else 8)
    x1 = h_fin * keep                                            # [bt, H]

    # ------------------------ Conv / SE branch (batched) --------------------
    def conv_bn_relu(z3d, w_ref_, bias, K, Lout):
        # im2col: fuse the K tap windows along lanes -> ONE matmul with
        # contraction K*Cin (instead of K matmuls with contraction Cin).
        cin = z3d.shape[2]
        z3d = z3d.astype(jnp.float32)
        cols = jnp.concatenate([z3d[j:j + Lout] for j in range(K)], axis=2)
        cols = cols.reshape(Lout * bt, K * cin).astype(jnp.bfloat16)
        acc = jnp.dot(cols, w_ref_[...], preferred_element_type=jnp.float32)
        acc = jnp.maximum(acc + bias, 0.0)
        return acc.reshape(Lout, bt, w_ref_.shape[1])            # [Lout, bt, Cout]

    def se_gate(zmean, wa, wb):
        # Tiny SE bottleneck (Cr = 1-2 here): VPU multiply + lane reduce per unit.
        # TODO(synk): for realistic widths (Cr >= 8) use two small matmuls instead.
        acc = jnp.zeros_like(zmean)
        for q in range(wa.shape[0]):
            hq = jnp.maximum(
                jnp.sum(zmean * wa[q:q + 1, :], axis=1, keepdims=True), 0.0)
            acc = acc + hq * wb[q:q + 1, :]
        return _sigmoid(acc)                                     # [bt, C]

    # time-mean == sum over the major axis (VPU adds); gate broadcast == simple
    # broadcast multiply over the major axis. No selection matrices, no extra
    # MXU flops, no O(L*Bp^2) materializations.
    z1 = conv_bn_relu(xv, w1_ref, b1_ref[...], K1, L1)           # [L1, bt, C1]
    g1 = se_gate(jnp.sum(z1, axis=0) * (1.0 / L1), se1a_ref[...], se1b_ref[...])
    z1 = z1 * g1[None, :, :]

    z2 = conv_bn_relu(z1, w2_ref, b2_ref[...], K2, L2)           # [L2, bt, C2]
    g2 = se_gate(jnp.sum(z2, axis=0) * (1.0 / L2), se2a_ref[...], se2b_ref[...])
    z2 = z2 * g2[None, :, :]

    z3 = conv_bn_relu(z2, w3_ref, b3_ref[...], K3, L3)           # [L3, bt, C3]
    x2 = jnp.sum(z3, axis=0) * (1.0 / L3)                        # [bt, C3]

    # ---------------------------- Fused final Linear ------------------------
    xall = jnp.concatenate([x1, x2], axis=1).astype(jnp.bfloat16)   # [bt, H+C3]
    out_ref[...] = (jnp.dot(xall, wfc_ref[...],
                            preferred_element_type=jnp.float32) + bfc_ref[...])


# ----------------------------------------------------------------------------
# Wrapper (glue): layout prep + pallas_call
# ----------------------------------------------------------------------------
def mlstm_fcn_pallas(x, seq_lens, kp, num_classes):
    B, T, F = x.shape
    H = kp['whh'].shape[0]
    nc_pad = kp['wfc'].shape[1]

    # Batch tile: sublane multiple; tiles >1 give BlockSpec pipelining and feed
    # both TensorCores via the "parallel" grid axis on v7x.
    bt = min(64, ((B + 7) // 8) * 8)
    Bp = ((B + bt - 1) // bt) * bt
    n_tiles = Bp // bt

    # Clamp seq_lens BEFORE both tmax and the keep mask (seq_len > T guard).
    seq_lens = jnp.minimum(seq_lens.astype(jnp.int32), T)
    tmax = jnp.max(seq_lens)
    keep = (seq_lens == tmax).astype(jnp.float32)[:, None]              # [B, 1]
    keep = jnp.pad(keep, ((0, Bp - B), (0, 0)))

    x_tbf = jnp.transpose(x, (1, 0, 2))                                 # [T, B, F]
    x_tbf = jnp.pad(x_tbf, ((0, 0), (0, Bp - B), (0, 0))).astype(jnp.bfloat16)

    ins = [x_tbf, keep, kp['wih'], kp['whh'], kp['bl'],
           kp['w1'], kp['b1'], kp['w2'], kp['b2'], kp['w3'], kp['b3'],
           kp['se1a'], kp['se1b'], kp['se2a'], kp['se2b'],
           kp['wfc'], kp['bfc']]

    def full(shape):
        n = len(shape)
        return pl.BlockSpec(shape, lambda i, s, n=n: (0,) * n)

    in_specs = [
        pl.BlockSpec((T, bt, F), lambda i, s: (0, i, 0)),     # batch-tiled input
        pl.BlockSpec((bt, 1), lambda i, s: (i, 0)),           # keep mask
    ] + [full(a.shape) for a in ins[2:]]                      # weights: resident

    grid_spec = pltpu.PrefetchScalarGridSpec(
        num_scalar_prefetch=1,
        grid=(n_tiles,),
        in_specs=in_specs,
        out_specs=pl.BlockSpec((bt, nc_pad), lambda i, s: (i, 0)),
        scratch_shapes=[pltpu.VMEM((T, bt, 4 * H), jnp.bfloat16)],
    )
    out = pl.pallas_call(
        _mlstm_fcn_kernel,
        out_shape=jax.ShapeDtypeStruct((Bp, nc_pad), jnp.float32),
        grid_spec=grid_spec,
        compiler_params=pltpu.CompilerParams(
            dimension_semantics=("parallel",),
            vmem_limit_bytes=64 * 1024 * 1024),
    )(jnp.reshape(tmax, (1,)), *ins)
    return out[:B, :num_classes]


def make_params(key, *, num_classes, num_features, num_lstm_out,
                conv1_nf, conv2_nf, conv3_nf, reduction=16):
    H, F = num_lstm_out, num_features
    shapes = {
        'lstm_wih': (4 * H, F), 'lstm_whh': (4 * H, H),
        'lstm_bih': (4 * H,), 'lstm_bhh': (4 * H,),
        'conv1_w': (conv1_nf, F, 8), 'conv1_b': (conv1_nf,),
        'conv2_w': (conv2_nf, conv1_nf, 5), 'conv2_b': (conv2_nf,),
        'conv3_w': (conv3_nf, conv2_nf, 3), 'conv3_b': (conv3_nf,),
        'se1_w1': (conv1_nf // reduction, conv1_nf),
        'se1_w2': (conv1_nf, conv1_nf // reduction),
        'se2_w1': (conv2_nf // reduction, conv2_nf),
        'se2_w2': (conv2_nf, conv2_nf // reduction),
        'fc_w': (num_classes, num_lstm_out + conv3_nf),
        'fc_b': (num_classes,),
    }
    keys = jax.random.split(key, len(shapes) + 12)
    params = {}
    for i, (name, shp) in enumerate(shapes.items()):
        params[name] = 0.2 * jax.random.normal(keys[i], shp, jnp.float32)
    kbn = keys[len(shapes):]
    j = 0
    for name, c in (('bn1', conv1_nf), ('bn2', conv2_nf), ('bn3', conv3_nf)):
        g = 1.0 + 0.1 * jax.random.normal(kbn[j], (c,), jnp.float32); j += 1
        bta = 0.1 * jax.random.normal(kbn[j], (c,), jnp.float32); j += 1
        m = 0.1 * jax.random.normal(kbn[j], (c,), jnp.float32); j += 1
        v = 1.0 + 0.2 * jnp.abs(jax.random.normal(kbn[j], (c,), jnp.float32)); j += 1
        params[name] = (g, bta, m, v)
    return params


def prep_kernel_params(p, num_classes, eps=1e-5):
    H = p['lstm_whh'].shape[1]
    nc_pad = ((num_classes + 127) // 128) * 128     # lane-dense output store

    def fold(w, b, bn):
        # Fold eval-mode BatchNorm into the conv, and lay the weight out for the
        # im2col matmul: [Cout, Cin, K] -> [K, Cin, Cout] -> [K*Cin, Cout].
        g, bta, m, v = bn
        scale = g / jnp.sqrt(v + eps)
        shift = bta - m * scale
        w_eff = w * scale[:, None, None]
        b_eff = b * scale + shift
        K, Cin, Cout = w.shape[2], w.shape[1], w.shape[0]
        w_im2col = jnp.transpose(w_eff, (2, 1, 0)).reshape(K * Cin, Cout)
        return w_im2col.astype(jnp.bfloat16), b_eff[None, :].astype(jnp.float32)

    w1, b1 = fold(p['conv1_w'], p['conv1_b'], p['bn1'])
    w2, b2 = fold(p['conv2_w'], p['conv2_b'], p['bn2'])
    w3, b3 = fold(p['conv3_w'], p['conv3_b'], p['bn3'])

    # Fused final-FC weight: [H+C3, NCp] (single MXU push with K = H + C3).
    wfc = jnp.pad(p['fc_w'].T, ((0, 0), (0, nc_pad - num_classes)))
    bfc = jnp.pad(p['fc_b'][None, :], ((0, 0), (0, nc_pad - num_classes)))

    return {
        'wih': p['lstm_wih'].T.astype(jnp.bfloat16),          # [F, 4H]
        'whh': p['lstm_whh'].T.astype(jnp.float32),           # [H, 4H] f32 recurrence
        'bl': (p['lstm_bih'] + p['lstm_bhh'])[None, :].astype(jnp.float32),
        'w1': w1, 'b1': b1, 'w2': w2, 'b2': b2, 'w3': w3, 'b3': b3,
        'se1a': p['se1_w1'].astype(jnp.float32),              # [C1r, C1]
        'se1b': p['se1_w2'].T.astype(jnp.float32),            # [C1r, C1]
        'se2a': p['se2_w1'].astype(jnp.float32),              # [C2r, C2]
        'se2b': p['se2_w2'].T.astype(jnp.float32),            # [C2r, C2]
        'wfc': wfc.astype(jnp.bfloat16),                      # [H+C3, NCp]
        'bfc': bfc.astype(jnp.float32),                       # [1,    NCp]
    }


# ----------------------------------------------------------------------------
# Pure-JAX reference (PyTorch eval-mode semantics, f32)
# ----------------------------------------------------------------------------
def reference_forward(p, x, seq_lens, eps=1e-5):
    B, T, F = x.shape
    H = p['lstm_whh'].shape[1]
    wih, whh = p['lstm_wih'], p['lstm_whh']
    bias = p['lstm_bih'] + p['lstm_bhh']

    def step(carry, xt):
        h, c = carry
        g = xt @ wih.T + h @ whh.T + bias
        i = _sigmoid(g[:, :H]); f = _sigmoid(g[:, H:2 * H])
        gg = jnp.tanh(g[:, 2 * H:3 * H]); o = _sigmoid(g[:, 3 * H:])
        c = f * c + i * gg
        h = o * jnp.tanh(c)
        return (h, c), h

    h0 = jnp.zeros((B, H), jnp.float32)
    (_, _), hs = lax.scan(step, (h0, h0), jnp.swapaxes(x, 0, 1))
    tmax = jnp.max(seq_lens)
    h_last = hs[tmax - 1]                                         # [B, H]
    x1 = jnp.where((seq_lens == tmax)[:, None], h_last, 0.0)

    def conv1d(z, w, b):                                          # z: [B,Cin,L]
        K = w.shape[2]; Lout = z.shape[2] - K + 1
        out = jnp.zeros((z.shape[0], w.shape[0], Lout), jnp.float32)
        for j in range(K):
            out = out + jnp.einsum('bcl,oc->bol', z[:, :, j:j + Lout], w[:, :, j])
        return out + b[None, :, None]

    def bn(z, stats):
        g, bta, m, v = stats
        return ((z - m[None, :, None]) / jnp.sqrt(v[None, :, None] + eps)
                * g[None, :, None] + bta[None, :, None])

    def se(z, w1, w2):
        y = jnp.mean(z, axis=2)
        y = jnp.maximum(y @ w1.T, 0.0)
        y = _sigmoid(y @ w2.T)
        return z * y[:, :, None]

    x2 = jnp.swapaxes(x, 1, 2)                                    # [B, F, T]
    x2 = jnp.maximum(bn(conv1d(x2, p['conv1_w'], p['conv1_b']), p['bn1']), 0.0)
    x2 = se(x2, p['se1_w1'], p['se1_w2'])
    x2 = jnp.maximum(bn(conv1d(x2, p['conv2_w'], p['conv2_b']), p['bn2']), 0.0)
    x2 = se(x2, p['se2_w1'], p['se2_w2'])
    x2 = jnp.maximum(bn(conv1d(x2, p['conv3_w'], p['conv3_b']), p['bn3']), 0.0)
    x2 = jnp.mean(x2, axis=2)
    xall = jnp.concatenate([x1, x2], axis=1)
    return xall @ p['fc_w'].T + p['fc_b']


# ----------------------------------------------------------------------------
if __name__ == "__main__":
    B, T, F = 2, 16, 8          # batch, time, features (T >= 14 for valid convs)
    NC, H = 5, 32               # num_classes, num_lstm_out
    C1, C2, C3 = 16, 32, 16     # conv1_nf, conv2_nf, conv3_nf

    key = jax.random.PRNGKey(0)
    kx, kp = jax.random.split(key)
    x = jax.random.normal(kx, (B, T, F), jnp.float32)
    seq_lens = jnp.array([16, 12], dtype=jnp.int32)

    params = make_params(kp, num_classes=NC, num_features=F, num_lstm_out=H,
                         conv1_nf=C1, conv2_nf=C2, conv3_nf=C3)
    kparams = prep_kernel_params(params, NC)

    out = mlstm_fcn_pallas(x, seq_lens, kparams, NC)
    out = jax.block_until_ready(out)

    ref = reference_forward(params, x, seq_lens)
    # Kernel matmuls run with bf16 operands on the MXU (f32 accumulate) ->
    # looser tolerance than the all-f32 reference.
    np.testing.assert_allclose(np.asarray(out), np.asarray(ref),
                               rtol=5e-2, atol=5e-2)
    print("KERNEL_OK")
</pallas_src>

<mosaic_0001>
module attributes {stable_mosaic.version = 11 : i64} {
  func.func @_mlstm_fcn_kernel(%arg0: i32, %arg1: memref<1xi32, #tpu.memory_space<smem>>, %arg2: memref<16x8x8xbf16, #tpu.memory_space<vmem>>, %arg3: memref<8x1xf32, #tpu.memory_space<vmem>>, %arg4: memref<8x128xbf16, #tpu.memory_space<vmem>>, %arg5: memref<32x128xf32, #tpu.memory_space<vmem>>, %arg6: memref<1x128xf32, #tpu.memory_space<vmem>>, %arg7: memref<64x16xbf16, #tpu.memory_space<vmem>>, %arg8: memref<1x16xf32, #tpu.memory_space<vmem>>, %arg9: memref<80x32xbf16, #tpu.memory_space<vmem>>, %arg10: memref<1x32xf32, #tpu.memory_space<vmem>>, %arg11: memref<96x16xbf16, #tpu.memory_space<vmem>>, %arg12: memref<1x16xf32, #tpu.memory_space<vmem>>, %arg13: memref<1x16xf32, #tpu.memory_space<vmem>>, %arg14: memref<1x16xf32, #tpu.memory_space<vmem>>, %arg15: memref<2x32xf32, #tpu.memory_space<vmem>>, %arg16: memref<2x32xf32, #tpu.memory_space<vmem>>, %arg17: memref<48x128xbf16, #tpu.memory_space<vmem>>, %arg18: memref<1x128xf32, #tpu.memory_space<vmem>>, %arg19: memref<8x128xf32, #tpu.memory_space<vmem>>, %arg20: memref<16x8x128xbf16, #tpu.memory_space<vmem>>) attributes {dimension_semantics = [#tpu.dimension_semantics<parallel>], iteration_bounds = array<i64: 1>, scalar_prefetch = 1 : i64, scratch_operands = 1 : i64, tpu.core_type = #tpu.core_type<tc>, window_params = [{transform_indices = @transform_0, window_bounds = array<i64: 16, 8, 8>}, {transform_indices = @transform_1, window_bounds = array<i64: 8, 1>}, {pipeline_mode = #tpu.pipeline_mode<synchronous>, transform_indices = @transform_2, window_bounds = array<i64: 8, 128>}, {pipeline_mode = #tpu.pipeline_mode<synchronous>, transform_indices = @transform_3, window_bounds = array<i64: 32, 128>}, {pipeline_mode = #tpu.pipeline_mode<synchronous>, transform_indices = @transform_4, window_bounds = array<i64: 1, 128>}, {pipeline_mode = #tpu.pipeline_mode<synchronous>, transform_indices = @transform_5, window_bounds = array<i64: 64, 16>}, {pipeline_mode = #tpu.pipeline_mode<synchronous>, transform_indices = @transform_6, window_bounds = array<i64: 1, 16>}, {pipeline_mode = #tpu.pipeline_mode<synchronous>, transform_indices = @transform_7, window_bounds = array<i64: 80, 32>}, {pipeline_mode = #tpu.pipeline_mode<synchronous>, transform_indices = @transform_8, window_bounds = array<i64: 1, 32>}, {pipeline_mode = #tpu.pipeline_mode<synchronous>, transform_indices = @transform_9, window_bounds = array<i64: 96, 16>}, {pipeline_mode = #tpu.pipeline_mode<synchronous>, transform_indices = @transform_10, window_bounds = array<i64: 1, 16>}, {pipeline_mode = #tpu.pipeline_mode<synchronous>, transform_indices = @transform_11, window_bounds = array<i64: 1, 16>}, {pipeline_mode = #tpu.pipeline_mode<synchronous>, transform_indices = @transform_12, window_bounds = array<i64: 1, 16>}, {pipeline_mode = #tpu.pipeline_mode<synchronous>, transform_indices = @transform_13, window_bounds = array<i64: 2, 32>}, {pipeline_mode = #tpu.pipeline_mode<synchronous>, transform_indices = @transform_14, window_bounds = array<i64: 2, 32>}, {pipeline_mode = #tpu.pipeline_mode<synchronous>, transform_indices = @transform_15, window_bounds = array<i64: 48, 128>}, {pipeline_mode = #tpu.pipeline_mode<synchronous>, transform_indices = @transform_16, window_bounds = array<i64: 1, 128>}, {transform_indices = @transform_17, window_bounds = array<i64: 8, 128>}]} {
    %c0 = arith.constant 0 : index
    %c0_0 = arith.constant 0 : index
    %c0_1 = arith.constant 0 : index
    %0 = vector.load %arg2[%c0, %c0_0, %c0_1] : memref<16x8x8xbf16, #tpu.memory_space<vmem>>, vector<16x8x8xbf16>
    %1 = vector.shape_cast %0 : vector<16x8x8xbf16> to vector<128x8xbf16>
    %c0_2 = arith.constant 0 : index
    %c0_3 = arith.constant 0 : index
    %2 = vector.load %arg4[%c0_2, %c0_3] : memref<8x128xbf16, #tpu.memory_space<vmem>>, vector<8x128xbf16>
    %cst = arith.constant dense<0.000000e+00> : vector<128x128xf32>
    %3 = tpu.matmul %1, %2, %cst {dimension_numbers = #tpu.dot_dimension_numbers<[1], [0], [0], [1], [0, 0, 1, 1], [], []>} : vector<128x8xbf16>, vector<8x128xbf16>, vector<128x128xf32> -> vector<128x128xf32>
    %4 = vector.shape_cast %3 : vector<128x128xf32> to vector<16x8x128xf32>
    %5 = arith.truncf %4 : vector<16x8x128xf32> to vector<16x8x128xbf16>
    %c0_4 = arith.constant 0 : index
    %c0_5 = arith.constant 0 : index
    %c0_6 = arith.constant 0 : index
    %6 = vector.load %arg20[%c0_4, %c0_5, %c0_6] : memref<16x8x128xbf16, #tpu.memory_space<vmem>>, vector<16x8x128xbf16>
    tpu.vector_store %arg20[%c0_4, %c0_5, %c0_6], %5 {strides = array<i32>} : memref<16x8x128xbf16, #tpu.memory_space<vmem>>, vector<16x8x128xbf16>,
    %c0_7 = arith.constant 0 : index
    %c0_8 = arith.constant 0 : index
    %7 = vector.load %arg5[%c0_7, %c0_8] : memref<32x128xf32, #tpu.memory_space<vmem>>, vector<32x128xf32>
    %c0_9 = arith.constant 0 : index
    %c0_10 = arith.constant 0 : index
    %8 = vector.load %arg6[%c0_9, %c0_10] : memref<1x128xf32, #tpu.memory_space<vmem>>, vector<1x128xf32>
    %c0_11 = arith.constant 0 : index
    %c0_12 = arith.constant 0 : index
    %9 = vector.load %arg3[%c0_11, %c0_12] : memref<8x1xf32, #tpu.memory_space<vmem>>, vector<8x1xf32>
    %c0_13 = arith.constant 0 : index
    %10 = memref.load %arg1[%c0_13] : memref<1xi32, #tpu.memory_space<smem>>
    %cst_14 = arith.constant 0.000000e+00 : f32
    %11 = vector.broadcast %cst_14 : f32 to vector<8x32xf32>
    %c0_i32 = arith.constant 0 : i32
    %12 = arith.index_cast %c0_i32 : i32 to index
    %c0_15 = arith.constant 0 : index
    %c0_16 = arith.constant 0 : index
    %13 = vector.load %arg20[%12, %c0_15, %c0_16] : memref<16x8x128xbf16, #tpu.memory_space<vmem>>, vector<1x8x128xbf16>
    %14 = vector.shape_cast %13 : vector<1x8x128xbf16> to vector<8x128xbf16>
    %15 = arith.extf %14 : vector<8x128xbf16> to vector<8x128xf32>
    %16 = vector.broadcast %8 : vector<1x128xf32> to vector<8x128xf32>
    %17 = arith.addf %15, %16 : vector<8x128xf32>
    %cst_17 = arith.constant dense<0.000000e+00> : vector<8x128xf32>
    %18 = tpu.matmul %11, %7, %cst_17 {dimension_numbers = #tpu.dot_dimension_numbers<[1], [0], [0], [1], [0, 0, 1, 1], [], []>} : vector<8x32xf32>, vector<32x128xf32>, vector<8x128xf32> -> vector<8x128xf32>
    %19 = arith.addf %17, %18 : vector<8x128xf32>
    %20 = vector.extract_strided_slice %19 {offsets = [0, 0], sizes = [8, 32], strides = [1, 1]} : vector<8x128xf32> to vector<8x32xf32>
    %cst_18 = arith.constant 5.000000e-01 : f32
    %21 = vector.broadcast %cst_18 : f32 to vector<8x32xf32>
    %22 = arith.mulf %21, %20 : vector<8x32xf32>
    %23 = math.tanh %22 : vector<8x32xf32>
    %cst_19 = arith.constant 5.000000e-01 : f32
    %24 = vector.broadcast %cst_19 : f32 to vector<8x32xf32>
    %25 = arith.mulf %24, %23 : vector<8x32xf32>
    %cst_20 = arith.constant 5.000000e-01 : f32
    %26 = vector.broadcast %cst_20 : f32 to vector<8x32xf32>
    %27 = arith.addf %25, %26 : vector<8x32xf32>
    %28 = vector.extract_strided_slice %19 {offsets = [0, 32], sizes = [8, 32], strides = [1, 1]} : vector<8x128xf32> to vector<8x32xf32>
    %cst_21 = arith.constant 5.000000e-01 : f32
    %29 = vector.broadcast %cst_21 : f32 to vector<8x32xf32>
    %30 = arith.mulf %29, %28 : vector<8x32xf32>
    %31 = math.tanh %30 : vector<8x32xf32>
    %cst_22 = arith.constant 5.000000e-01 : f32
    %32 = vector.broadcast %cst_22 : f32 to vector<8x32xf32>
    %33 = arith.mulf %32, %31 : vector<8x32xf32>
    %cst_23 = arith.constant 5.000000e-01 : f32
    %34 = vector.broadcast %cst_23 : f32 to vector<8x32xf32>
    %35 = arith.addf %33, %34 : vector<8x32xf32>
    %36 = vector.extract_strided_slice %19 {offsets = [0, 64], sizes = [8, 32], strides = [1, 1]} : vector<8x128xf32> to vector<8x32xf32>
    %37 = math.tanh %36 : vector<8x32xf32>
    %38 = vector.extract_strided_slice %19 {offsets = [0, 96], sizes = [8, 32], strides = [1, 1]} : vector<8x128xf32> to vector<8x32xf32>
    %cst_24 = arith.constant 5.000000e-01 : f32
    %39 = vector.broadcast %cst_24 : f32 to vector<8x32xf32>
    %40 = arith.mulf %39, %38 : vector<8x32xf32>
    %41 = math.tanh %40 : vector<8x32xf32>
    %cst_25 = arith.constant 5.000000e-01 : f32
    %42 = vector.broadcast %cst_25 : f32 to vector<8x32xf32>
    %43 = arith.mulf %42, %41 : vector<8x32xf32>
    %cst_26 = arith.constant 5.000000e-01 : f32
    %44 = vector.broadcast %cst_26 : f32 to vector<8x32xf32>
    %45 = arith.addf %43, %44 : vector<8x32xf32>
    %46 = arith.mulf %35, %11 : vector<8x32xf32>
    %47 = arith.mulf %27, %37 : vector<8x32xf32>
    %48 = arith.addf %46, %47 : vector<8x32xf32>
    %49 = math.tanh %48 : vector<8x32xf32>
    %50 = arith.mulf %45, %49 : vector<8x32xf32>
    %51 = arith.cmpi slt, %c0_i32, %10 : i32
    %52 = arith.select %51, %50, %11 : vector<8x32xf32>
    %53 = arith.select %51, %48, %11 : vector<8x32xf32>
    %c1_i32 = arith.constant 1 : i32
    %54 = arith.index_cast %c1_i32 : i32 to index
    %c0_27 = arith.constant 0 : index
    %c0_28 = arith.constant 0 : index
    %55 = vector.load %arg20[%54, %c0_27, %c0_28] : memref<16x8x128xbf16, #tpu.memory_space<vmem>>, vector<1x8x128xbf16>
    %56 = vector.shape_cast %55 : vector<1x8x128xbf16> to vector<8x128xbf16>
    %57 = arith.extf %56 : vector<8x128xbf16> to vector<8x128xf32>
    %58 = vector.broadcast %8 : vector<1x128xf32> to vector<8x128xf32>
    %59 = arith.addf %57, %58 : vector<8x128xf32>
    %cst_29 = arith.constant dense<0.000000e+00> : vector<8x128xf32>
    %60 = tpu.matmul %52, %7, %cst_29 {dimension_numbers = #tpu.dot_dimension_numbers<[1], [0], [0], [1], [0, 0, 1, 1], [], []>} : vector<8x32xf32>, vector<32x128xf32>, vector<8x128xf32> -> vector<8x128xf32>
    %61 = arith.addf %59, %60 : vector<8x128xf32>
    %62 = vector.extract_strided_slice %61 {offsets = [0, 0], sizes = [8, 32], strides = [1, 1]} : vector<8x128xf32> to vector<8x32xf32>
    %cst_30 = arith.constant 5.000000e-01 : f32
    %63 = vector.broadcast %cst_30 : f32 to vector<8x32xf32>
    %64 = arith.mulf %63, %62 : vector<8x32xf32>
    %65 = math.tanh %64 : vector<8x32xf32>
    %cst_31 = arith.constant 5.000000e-01 : f32
    %66 = vector.broadcast %cst_31 : f32 to vector<8x32xf32>
    %67 = arith.mulf %66, %65 : vector<8x32xf32>
    %cst_32 = arith.constant 5.000000e-01 : f32
    %68 = vector.broadcast %cst_32 : f32 to vector<8x32xf32>
    %69 = arith.addf %67, %68 : vector<8x32xf32>
    %70 = vector.extract_strided_slice %61 {offsets = [0, 32], sizes = [8, 32], strides = [1, 1]} : vector<8x128xf32> to vector<8x32xf32>
    %cst_33 = arith.constant 5.000000e-01 : f32
    %71 = vector.broadcast %cst_33 : f32 to vector<8x32xf32>
    %72 = arith.mulf %71, %70 : vector<8x32xf32>
    %73 = math.tanh %72 : vector<8x32xf32>
    %cst_34 = arith.constant 5.000000e-01 : f32
    %74 = vector.broadcast %cst_34 : f32 to vector<8x32xf32>
    %75 = arith.mulf %74, %73 : vector<8x32xf32>
    %cst_35 = arith.constant 5.000000e-01 : f32
    %76 = vector.broadcast %cst_35 : f32 to vector<8x32xf32>
    %77 = arith.addf %75, %76 : vector<8x32xf32>
    %78 = vector.extract_strided_slice %61 {offsets = [0, 64], sizes = [8, 32], strides = [1, 1]} : vector<8x128xf32> to vector<8x32xf32>
    %79 = math.tanh %78 : vector<8x32xf32>
    %80 = vector.extract_strided_slice %61 {offsets = [0, 96], sizes = [8, 32], strides = [1, 1]} : vector<8x128xf32> to vector<8x32xf32>
    %cst_36 = arith.constant 5.000000e-01 : f32
    %81 = vector.broadcast %cst_36 : f32 to vector<8x32xf32>
    %82 = arith.mulf %81, %80 : vector<8x32xf32>
    %83 = math.tanh %82 : vector<8x32xf32>
    %cst_37 = arith.constant 5.000000e-01 : f32
    %84 = vector.broadcast %cst_37 : f32 to vector<8x32xf32>
    %85 = arith.mulf %84, %83 : vector<8x32xf32>
    %cst_38 = arith.constant 5.000000e-01 : f32
    %86 = vector.broadcast %cst_38 : f32 to vector<8x32xf32>
    %87 = arith.addf %85, %86 : vector<8x32xf32>
    %88 = arith.mulf %77, %53 : vector<8x32xf32>
    %89 = arith.mulf %69, %79 : vector<8x32xf32>
    %90 = arith.addf %88, %89 : vector<8x32xf32>
    %91 = math.tanh %90 : vector<8x32xf32>
    %92 = arith.mulf %87, %91 : vector<8x32xf32>
    %93 = arith.cmpi slt, %c1_i32, %10 : i32
    %94 = arith.select %93, %92, %52 : vector<8x32xf32>
    %95 = arith.select %93, %90, %53 : vector<8x32xf32>
    %c2_i32 = arith.constant 2 : i32
    %96 = arith.index_cast %c2_i32 : i32 to index
    %c0_39 = arith.constant 0 : index
    %c0_40 = arith.constant 0 : index
    %97 = vector.load %arg20[%96, %c0_39, %c0_40] : memref<16x8x128xbf16, #tpu.memory_space<vmem>>, vector<1x8x128xbf16>
    %98 = vector.shape_cast %97 : vector<1x8x128xbf16> to vector<8x128xbf16>
    %99 = arith.extf %98 : vector<8x128xbf16> to vector<8x128xf32>
    %100 = vector.broadcast %8 : vector<1x128xf32> to vector<8x128xf32>
    %101 = arith.addf %99, %100 : vector<8x128xf32>
    %cst_41 = arith.constant dense<0.000000e+00> : vector<8x128xf32>
    %102 = tpu.matmul %94, %7, %cst_41 {dimension_numbers = #tpu.dot_dimension_numbers<[1], [0], [0], [1], [0, 0, 1, 1], [], []>} : vector<8x32xf32>, vector<32x128xf32>, vector<8x128xf32> -> vector<8x128xf32>
    %103 = arith.addf %101, %102 : vector<8x128xf32>
    %104 = vector.extract_strided_slice %103 {offsets = [0, 0], sizes = [8, 32], strides = [1, 1]} : vector<8x128xf32> to vector<8x32xf32>
    %cst_42 = arith.constant 5.000000e-01 : f32
    %105 = vector.broadcast %cst_42 : f32 to vector<8x32xf32>
    %106 = arith.mulf %105, %104 : vector<8x32xf32>
    %107 = math.tanh %106 : vector<8x32xf32>
    %cst_43 = arith.constant 5.000000e-01 : f32
    %108 = vector.broadcast %cst_43 : f32 to vector<8x32xf32>
    %109 = arith.mulf %108, %107 : vector<8x32xf32>
    %cst_44 = arith.constant 5.000000e-01 : f32
    %110 = vector.broadcast %cst_44 : f32 to vector<8x32xf32>
    %111 = arith.addf %109, %110 : vector<8x32xf32>
    %112 = vector.extract_strided_slice %103 {offsets = [0, 32], sizes = [8, 32], strides = [1, 1]} : vector<8x128xf32> to vector<8x32xf32>
    %cst_45 = arith.constant 5.000000e-01 : f32
    %113 = vector.broadcast %cst_45 : f32 to vector<8x32xf32>
    %114 = arith.mulf %113, %112 : vector<8x32xf32>
    %115 = math.tanh %114 : vector<8x32xf32>
    %cst_46 = arith.constant 5.000000e-01 : f32
    %116 = vector.broadcast %cst_46 : f32 to vector<8x32xf32>
    %117 = arith.mulf %116, %115 : vector<8x32xf32>
    %cst_47 = arith.constant 5.000000e-01 : f32
    %118 = vector.broadcast %cst_47 : f32 to vector<8x32xf32>
    %119 = arith.addf %117, %118 : vector<8x32xf32>
    %120 = vector.extract_strided_slice %103 {offsets = [0, 64], sizes = [8, 32], strides = [1, 1]} : vector<8x128xf32> to vector<8x32xf32>
    %121 = math.tanh %120 : vector<8x32xf32>
    %122 = vector.extract_strided_slice %103 {offsets = [0, 96], sizes = [8, 32], strides = [1, 1]} : vector<8x128xf32> to vector<8x32xf32>
    %cst_48 = arith.constant 5.000000e-01 : f32
    %123 = vector.broadcast %cst_48 : f32 to vector<8x32xf32>
    %124 = arith.mulf %123, %122 : vector<8x32xf32>
    %125 = math.tanh %124 : vector<8x32xf32>
    %cst_49 = arith.constant 5.000000e-01 : f32
    %126 = vector.broadcast %cst_49 : f32 to vector<8x32xf32>
    %127 = arith.mulf %126, %125 : vector<8x32xf32>
    %cst_50 = arith.constant 5.000000e-01 : f32
    %128 = vector.broadcast %cst_50 : f32 to vector<8x32xf32>
    %129 = arith.addf %127, %128 : vector<8x32xf32>
    %130 = arith.mulf %119, %95 : vector<8x32xf32>
    %131 = arith.mulf %111, %121 : vector<8x32xf32>
    %132 = arith.addf %130, %131 : vector<8x32xf32>
    %133 = math.tanh %132 : vector<8x32xf32>
    %134 = arith.mulf %129, %133 : vector<8x32xf32>
    %135 = arith.cmpi slt, %c2_i32, %10 : i32
    %136 = arith.select %135, %134, %94 : vector<8x32xf32>
    %137 = arith.select %135, %132, %95 : vector<8x32xf32>
    %c3_i32 = arith.constant 3 : i32
    %138 = arith.index_cast %c3_i32 : i32 to index
    %c0_51 = arith.constant 0 : index
    %c0_52 = arith.constant 0 : index
    %139 = vector.load %arg20[%138, %c0_51, %c0_52] : memref<16x8x128xbf16, #tpu.memory_space<vmem>>, vector<1x8x128xbf16>
    %140 = vector.shape_cast %139 : vector<1x8x128xbf16> to vector<8x128xbf16>
    %141 = arith.extf %140 : vector<8x128xbf16> to vector<8x128xf32>
    %142 = vector.broadcast %8 : vector<1x128xf32> to vector<8x128xf32>
    %143 = arith.addf %141, %142 : vector<8x128xf32>
    %cst_53 = arith.constant dense<0.000000e+00> : vector<8x128xf32>
    %144 = tpu.matmul %136, %7, %cst_53 {dimension_numbers = #tpu.dot_dimension_numbers<[1], [0], [0], [1], [0, 0, 1, 1], [], []>} : vector<8x32xf32>, vector<32x128xf32>, vector<8x128xf32> -> vector<8x128xf32>
    %145 = arith.addf %143, %144 : vector<8x128xf32>
    %146 = vector.extract_strided_slice %145 {offsets = [0, 0], sizes = [8, 32], strides = [1, 1]} : vector<8x128xf32> to vector<8x32xf32>
    %cst_54 = arith.constant 5.000000e-01 : f32
    %147 = vector.broadcast %cst_54 : f32 to vector<8x32xf32>
    %148 = arith.mulf %147, %146 : vector<8x32xf32>
    %149 = math.tanh %148 : vector<8x32xf32>
    %cst_55 = arith.constant 5.000000e-01 : f32
    %150 = vector.broadcast %cst_55 : f32 to vector<8x32xf32>
    %151 = arith.mulf %150, %149 : vector<8x32xf32>
    %cst_56 = arith.constant 5.000000e-01 : f32
    %152 = vector.broadcast %cst_56 : f32 to vector<8x32xf32>
    %153 = arith.addf %151, %152 : vector<8x32xf32>
    %154 = vector.extract_strided_slice %145 {offsets = [0, 32], sizes = [8, 32], strides = [1, 1]} : vector<8x128xf32> to vector<8x32xf32>
    %cst_57 = arith.constant 5.000000e-01 : f32
    %155 = vector.broadcast %cst_57 : f32 to vector<8x32xf32>
    %156 = arith.mulf %155, %154 : vector<8x32xf32>
    %157 = math.tanh %156 : vector<8x32xf32>
    %cst_58 = arith.constant 5.000000e-01 : f32
    %158 = vector.broadcast %cst_58 : f32 to vector<8x32xf32>
    %159 = arith.mulf %158, %157 : vector<8x32xf32>
    %cst_59 = arith.constant 5.000000e-01 : f32
    %160 = vector.broadcast %cst_59 : f32 to vector<8x32xf32>
    %161 = arith.addf %159, %160 : vector<8x32xf32>
    %162 = vector.extract_strided_slice %145 {offsets = [0, 64], sizes = [8, 32], strides = [1, 1]} : vector<8x128xf32> to vector<8x32xf32>
    %163 = math.tanh %162 : vector<8x32xf32>
    %164 = vector.extract_strided_slice %145 {offsets = [0, 96], sizes = [8, 32], strides = [1, 1]} : vector<8x128xf32> to vector<8x32xf32>
    %cst_60 = arith.constant 5.000000e-01 : f32
    %165 = vector.broadcast %cst_60 : f32 to vector<8x32xf32>
    %166 = arith.mulf %165, %164 : vector<8x32xf32>
    %167 = math.tanh %166 : vector<8x32xf32>
    %cst_61 = arith.constant 5.000000e-01 : f32
    %168 = vector.broadcast %cst_61 : f32 to vector<8x32xf32>
    %169 = arith.mulf %168, %167 : vector<8x32xf32>
    %cst_62 = arith.constant 5.000000e-01 : f32
    %170 = vector.broadcast %cst_62 : f32 to vector<8x32xf32>
    %171 = arith.addf %169, %170 : vector<8x32xf32>
    %172 = arith.mulf %161, %137 : vector<8x32xf32>
    %173 = arith.mulf %153, %163 : vector<8x32xf32>
    %174 = arith.addf %172, %173 : vector<8x32xf32>
    %175 = math.tanh %174 : vector<8x32xf32>
    %176 = arith.mulf %171, %175 : vector<8x32xf32>
    %177 = arith.cmpi slt, %c3_i32, %10 : i32
    %178 = arith.select %177, %176, %136 : vector<8x32xf32>
    %179 = arith.select %177, %174, %137 : vector<8x32xf32>
    %c4_i32 = arith.constant 4 : i32
    %180 = arith.index_cast %c4_i32 : i32 to index
    %c0_63 = arith.constant 0 : index
    %c0_64 = arith.constant 0 : index
    %181 = vector.load %arg20[%180, %c0_63, %c0_64] : memref<16x8x128xbf16, #tpu.memory_space<vmem>>, vector<1x8x128xbf16>
    %182 = vector.shape_cast %181 : vector<1x8x128xbf16> to vector<8x128xbf16>
    %183 = arith.extf %182 : vector<8x128xbf16> to vector<8x128xf32>
    %184 = vector.broadcast %8 : vector<1x128xf32> to vector<8x128xf32>
    %185 = arith.addf %183, %184 : vector<8x128xf32>
    %cst_65 = arith.constant dense<0.000000e+00> : vector<8x128xf32>
    %186 = tpu.matmul %178, %7, %cst_65 {dimension_numbers = #tpu.dot_dimension_numbers<[1], [0], [0], [1], [0, 0, 1, 1], [], []>} : vector<8x32xf32>, vector<32x128xf32>, vector<8x128xf32> -> vector<8x128xf32>
    %187 = arith.addf %185, %186 : vector<8x128xf32>
    %188 = vector.extract_strided_slice %187 {offsets = [0, 0], sizes = [8, 32], strides = [1, 1]} : vector<8x128xf32> to vector<8x32xf32>
    %cst_66 = arith.constant 5.000000e-01 : f32
    %189 = vector.broadcast %cst_66 : f32 to vector<8x32xf32>
    %190 = arith.mulf %189, %188 : vector<8x32xf32>
    %191 = math.tanh %190 : vector<8x32xf32>
    %cst_67 = arith.constant 5.000000e-01 : f32
    %192 = vector.broadcast %cst_67 : f32 to vector<8x32xf32>
    %193 = arith.mulf %192, %191 : vector<8x32xf32>
    %cst_68 = arith.constant 5.000000e-01 : f32
    %194 = vector.broadcast %cst_68 : f32 to vector<8x32xf32>
    %195 = arith.addf %193, %194 : vector<8x32xf32>
    %196 = vector.extract_strided_slice %187 {offsets = [0, 32], sizes = [8, 32], strides = [1, 1]} : vector<8x128xf32> to vector<8x32xf32>
    %cst_69 = arith.constant 5.000000e-01 : f32
    %197 = vector.broadcast %cst_69 : f32 to vector<8x32xf32>
    %198 = arith.mulf %197, %196 : vector<8x32xf32>
    %199 = math.tanh %198 : vector<8x32xf32>
    %cst_70 = arith.constant 5.000000e-01 : f32
    %200 = vector.broadcast %cst_70 : f32 to vector<8x32xf32>
    %201 = arith.mulf %200, %199 : vector<8x32xf32>
    %cst_71 = arith.constant 5.000000e-01 : f32
    %202 = vector.broadcast %cst_71 : f32 to vector<8x32xf32>
    %203 = arith.addf %201, %202 : vector<8x32xf32>
    %204 = vector.extract_strided_slice %187 {offsets = [0, 64], sizes = [8, 32], strides = [1, 1]} : vector<8x128xf32> to vector<8x32xf32>
    %205 = math.tanh %204 : vector<8x32xf32>
    %206 = vector.extract_strided_slice %187 {offsets = [0, 96], sizes = [8, 32], strides = [1, 1]} : vector<8x128xf32> to vector<8x32xf32>
    %cst_72 = arith.constant 5.000000e-01 : f32
    %207 = vector.broadcast %cst_72 : f32 to vector<8x32xf32>
    %208 = arith.mulf %207, %206 : vector<8x32xf32>
    %209 = math.tanh %208 : vector<8x32xf32>
    %cst_73 = arith.constant 5.000000e-01 : f32
    %210 = vector.broadcast %cst_73 : f32 to vector<8x32xf32>
    %211 = arith.mulf %210, %209 : vector<8x32xf32>
    %cst_74 = arith.constant 5.000000e-01 : f32
    %212 = vector.broadcast %cst_74 : f32 to vector<8x32xf32>
    %213 = arith.addf %211, %212 : vector<8x32xf32>
    %214 = arith.mulf %203, %179 : vector<8x32xf32>
    %215 = arith.mulf %195, %205 : vector<8x32xf32>
    %216 = arith.addf %214, %215 : vector<8x32xf32>
    %217 = math.tanh %216 : vector<8x32xf32>
    %218 = arith.mulf %213, %217 : vector<8x32xf32>
    %219 = arith.cmpi slt, %c4_i32, %10 : i32
    %220 = arith.select %219, %218, %178 : vector<8x32xf32>
    %221 = arith.select %219, %216, %179 : vector<8x32xf32>
    %c5_i32 = arith.constant 5 : i32
    %222 = arith.index_cast %c5_i32 : i32 to index
    %c0_75 = arith.constant 0 : index
    %c0_76 = arith.constant 0 : index
    %223 = vector.load %arg20[%222, %c0_75, %c0_76] : memref<16x8x128xbf16, #tpu.memory_space<vmem>>, vector<1x8x128xbf16>
    %224 = vector.shape_cast %223 : vector<1x8x128xbf16> to vector<8x128xbf16>
    %225 = arith.extf %224 : vector<8x128xbf16> to vector<8x128xf32>
    %226 = vector.broadcast %8 : vector<1x128xf32> to vector<8x128xf32>
    %227 = arith.addf %225, %226 : vector<8x128xf32>
    %cst_77 = arith.constant dense<0.000000e+00> : vector<8x128xf32>
    %228 = tpu.matmul %220, %7, %cst_77 {dimension_numbers = #tpu.dot_dimension_numbers<[1], [0], [0], [1], [0, 0, 1, 1], [], []>} : vector<8x32xf32>, vector<32x128xf32>, vector<8x128xf32> -> vector<8x128xf32>
    %229 = arith.addf %227, %228 : vector<8x128xf32>
    %230 = vector.extract_strided_slice %229 {offsets = [0, 0], sizes = [8, 32], strides = [1, 1]} : vector<8x128xf32> to vector<8x32xf32>
    %cst_78 = arith.constant 5.000000e-01 : f32
    %231 = vector.broadcast %cst_78 : f32 to vector<8x32xf32>
    %232 = arith.mulf %231, %230 : vector<8x32xf32>
    %233 = math.tanh %232 : vector<8x32xf32>
    %cst_79 = arith.constant 5.000000e-01 : f32
    %234 = vector.broadcast %cst_79 : f32 to vector<8x32xf32>
    %235 = arith.mulf %234, %233 : vector<8x32xf32>
    %cst_80 = arith.constant 5.000000e-01 : f32
    %236 = vector.broadcast %cst_80 : f32 to vector<8x32xf32>
    %237 = arith.addf %235, %236 : vector<8x32xf32>
    %238 = vector.extract_strided_slice %229 {offsets = [0, 32], sizes = [8, 32], strides = [1, 1]} : vector<8x128xf32> to vector<8x32xf32>
    %cst_81 = arith.constant 5.000000e-01 : f32
    %239 = vector.broadcast %cst_81 : f32 to vector<8x32xf32>
    %240 = arith.mulf %239, %238 : vector<8x32xf32>
    %241 = math.tanh %240 : vector<8x32xf32>
    %cst_82 = arith.constant 5.000000e-01 : f32
    %242 = vector.broadcast %cst_82 : f32 to vector<8x32xf32>
    %243 = arith.mulf %242, %241 : vector<8x32xf32>
    %cst_83 = arith.constant 5.000000e-01 : f32
    %244 = vector.broadcast %cst_83 : f32 to vector<8x32xf32>
    %245 = arith.addf %243, %244 : vector<8x32xf32>
    %246 = vector.extract_strided_slice %229 {offsets = [0, 64], sizes = [8, 32], strides = [1, 1]} : vector<8x128xf32> to vector<8x32xf32>
    %247 = math.tanh %246 : vector<8x32xf32>
    %248 = vector.extract_strided_slice %229 {offsets = [0, 96], sizes = [8, 32], strides = [1, 1]} : vector<8x128xf32> to vector<8x32xf32>
    %cst_84 = arith.constant 5.000000e-01 : f32
    %249 = vector.broadcast %cst_84 : f32 to vector<8x32xf32>
    %250 = arith.mulf %249, %248 : vector<8x32xf32>
    %251 = math.tanh %250 : vector<8x32xf32>
    %cst_85 = arith.constant 5.000000e-01 : f32
    %252 = vector.broadcast %cst_85 : f32 to vector<8x32xf32>
    %253 = arith.mulf %252, %251 : vector<8x32xf32>
    %cst_86 = arith.constant 5.000000e-01 : f32
    %254 = vector.broadcast %cst_86 : f32 to vector<8x32xf32>
    %255 = arith.addf %253, %254 : vector<8x32xf32>
    %256 = arith.mulf %245, %221 : vector<8x32xf32>
    %257 = arith.mulf %237, %247 : vector<8x32xf32>
    %258 = arith.addf %256, %257 : vector<8x32xf32>
    %259 = math.tanh %258 : vector<8x32xf32>
    %260 = arith.mulf %255, %259 : vector<8x32xf32>
    %261 = arith.cmpi slt, %c5_i32, %10 : i32
    %262 = arith.select %261, %260, %220 : vector<8x32xf32>
    %263 = arith.select %261, %258, %221 : vector<8x32xf32>
    %c6_i32 = arith.constant 6 : i32
    %264 = arith.index_cast %c6_i32 : i32 to index
    %c0_87 = arith.constant 0 : index
    %c0_88 = arith.constant 0 : index
    %265 = vector.load %arg20[%264, %c0_87, %c0_88] : memref<16x8x128xbf16, #tpu.memory_space<vmem>>, vector<1x8x128xbf16>
    %266 = vector.shape_cast %265 : vector<1x8x128xbf16> to vector<8x128xbf16>
    %267 = arith.extf %266 : vector<8x128xbf16> to vector<8x128xf32>
    %268 = vector.broadcast %8 : vector<1x128xf32> to vector<8x128xf32>
    %269 = arith.addf %267, %268 : vector<8x128xf32>
    %cst_89 = arith.constant dense<0.000000e+00> : vector<8x128xf32>
    %270 = tpu.matmul %262, %7, %cst_89 {dimension_numbers = #tpu.dot_dimension_numbers<[1], [0], [0], [1], [0, 0, 1, 1], [], []>} : vector<8x32xf32>, vector<32x128xf32>, vector<8x128xf32> -> vector<8x128xf32>
    %271 = arith.addf %269, %270 : vector<8x128xf32>
    %272 = vector.extract_strided_slice %271 {offsets = [0, 0], sizes = [8, 32], strides = [1, 1]} : vector<8x128xf32> to vector<8x32xf32>
    %cst_90 = arith.constant 5.000000e-01 : f32
    %273 = vector.broadcast %cst_90 : f32 to vector<8x32xf32>
    %274 = arith.mulf %273, %272 : vector<8x32xf32>
    %275 = math.tanh %274 : vector<8x32xf32>
    %cst_91 = arith.constant 5.000000e-01 : f32
    %276 = vector.broadcast %cst_91 : f32 to vector<8x32xf32>
    %277 = arith.mulf %276, %275 : vector<8x32xf32>
    %cst_92 = arith.constant 5.000000e-01 : f32
    %278 = vector.broadcast %cst_92 : f32 to vector<8x32xf32>
    %279 = arith.addf %277, %278 : vector<8x32xf32>
    %280 = vector.extract_strided_slice %271 {offsets = [0, 32], sizes = [8, 32], strides = [1, 1]} : vector<8x128xf32> to vector<8x32xf32>
    %cst_93 = arith.constant 5.000000e-01 : f32
    %281 = vector.broadcast %cst_93 : f32 to vector<8x32xf32>
    %282 = arith.mulf %281, %280 : vector<8x32xf32>
    %283 = math.tanh %282 : vector<8x32xf32>
    %cst_94 = arith.constant 5.000000e-01 : f32
    %284 = vector.broadcast %cst_94 : f32 to vector<8x32xf32>
    %285 = arith.mulf %284, %283 : vector<8x32xf32>
    %cst_95 = arith.constant 5.000000e-01 : f32
    %286 = vector.broadcast %cst_95 : f32 to vector<8x32xf32>
    %287 = arith.addf %285, %286 : vector<8x32xf32>
    %288 = vector.extract_strided_slice %271 {offsets = [0, 64], sizes = [8, 32], strides = [1, 1]} : vector<8x128xf32> to vector<8x32xf32>
    %289 = math.tanh %288 : vector<8x32xf32>
    %290 = vector.extract_strided_slice %271 {offsets = [0, 96], sizes = [8, 32], strides = [1, 1]} : vector<8x128xf32> to vector<8x32xf32>
    %cst_96 = arith.constant 5.000000e-01 : f32
    %291 = vector.broadcast %cst_96 : f32 to vector<8x32xf32>
    %292 = arith.mulf %291, %290 : vector<8x32xf32>
    %293 = math.tanh %292 : vector<8x32xf32>
    %cst_97 = arith.constant 5.000000e-01 : f32
    %294 = vector.broadcast %cst_97 : f32 to vector<8x32xf32>
    %295 = arith.mulf %294, %293 : vector<8x32xf32>
    %cst_98 = arith.constant 5.000000e-01 : f32
    %296 = vector.broadcast %cst_98 : f32 to vector<8x32xf32>
    %297 = arith.addf %295, %296 : vector<8x32xf32>
    %298 = arith.mulf %287, %263 : vector<8x32xf32>
    %299 = arith.mulf %279, %289 : vector<8x32xf32>
    %300 = arith.addf %298, %299 : vector<8x32xf32>
    %301 = math.tanh %300 : vector<8x32xf32>
    %302 = arith.mulf %297, %301 : vector<8x32xf32>
    %303 = arith.cmpi slt, %c6_i32, %10 : i32
    %304 = arith.select %303, %302, %262 : vector<8x32xf32>
    %305 = arith.select %303, %300, %263 : vector<8x32xf32>
    %c7_i32 = arith.constant 7 : i32
    %306 = arith.index_cast %c7_i32 : i32 to index
    %c0_99 = arith.constant 0 : index
    %c0_100 = arith.constant 0 : index
    %307 = vector.load %arg20[%306, %c0_99, %c0_100] : memref<16x8x128xbf16, #tpu.memory_space<vmem>>, vector<1x8x128xbf16>
    %308 = vector.shape_cast %307 : vector<1x8x128xbf16> to vector<8x128xbf16>
    %309 = arith.extf %308 : vector<8x128xbf16> to vector<8x128xf32>
    %310 = vector.broadcast %8 : vector<1x128xf32> to vector<8x128xf32>
    %311 = arith.addf %309, %310 : vector<8x128xf32>
    %cst_101 = arith.constant dense<0.000000e+00> : vector<8x128xf32>
    %312 = tpu.matmul %304, %7, %cst_101 {dimension_numbers = #tpu.dot_dimension_numbers<[1], [0], [0], [1], [0, 0, 1, 1], [], []>} : vector<8x32xf32>, vector<32x128xf32>, vector<8x128xf32> -> vector<8x128xf32>
    %313 = arith.addf %311, %312 : vector<8x128xf32>
    %314 = vector.extract_strided_slice %313 {offsets = [0, 0], sizes = [8, 32], strides = [1, 1]} : vector<8x128xf32> to vector<8x32xf32>
    %cst_102 = arith.constant 5.000000e-01 : f32
    %315 = vector.broadcast %cst_102 : f32 to vector<8x32xf32>
    %316 = arith.mulf %315, %314 : vector<8x32xf32>
    %317 = math.tanh %316 : vector<8x32xf32>
    %cst_103 = arith.constant 5.000000e-01 : f32
    %318 = vector.broadcast %cst_103 : f32 to vector<8x32xf32>
    %319 = arith.mulf %318, %317 : vector<8x32xf32>
    %cst_104 = arith.constant 5.000000e-01 : f32
    %320 = vector.broadcast %cst_104 : f32 to vector<8x32xf32>
    %321 = arith.addf %319, %320 : vector<8x32xf32>
    %322 = vector.extract_strided_slice %313 {offsets = [0, 32], sizes = [8, 32], strides = [1, 1]} : vector<8x128xf32> to vector<8x32xf32>
    %cst_105 = arith.constant 5.000000e-01 : f32
    %323 = vector.broadcast %cst_105 : f32 to vector<8x32xf32>
    %324 = arith.mulf %323, %322 : vector<8x32xf32>
    %325 = math.tanh %324 : vector<8x32xf32>
    %cst_106 = arith.constant 5.000000e-01 : f32
    %326 = vector.broadcast %cst_106 : f32 to vector<8x32xf32>
    %327 = arith.mulf %326, %325 : vector<8x32xf32>
    %cst_107 = arith.constant 5.000000e-01 : f32
    %328 = vector.broadcast %cst_107 : f32 to vector<8x32xf32>
    %329 = arith.addf %327, %328 : vector<8x32xf32>
    %330 = vector.extract_strided_slice %313 {offsets = [0, 64], sizes = [8, 32], strides = [1, 1]} : vector<8x128xf32> to vector<8x32xf32>
    %331 = math.tanh %330 : vector<8x32xf32>
    %332 = vector.extract_strided_slice %313 {offsets = [0, 96], sizes = [8, 32], strides = [1, 1]} : vector<8x128xf32> to vector<8x32xf32>
    %cst_108 = arith.constant 5.000000e-01 : f32
    %333 = vector.broadcast %cst_108 : f32 to vector<8x32xf32>
    %334 = arith.mulf %333, %332 : vector<8x32xf32>
    %335 = math.tanh %334 : vector<8x32xf32>
    %cst_109 = arith.constant 5.000000e-01 : f32
    %336 = vector.broadcast %cst_109 : f32 to vector<8x32xf32>
    %337 = arith.mulf %336, %335 : vector<8x32xf32>
    %cst_110 = arith.constant 5.000000e-01 : f32
    %338 = vector.broadcast %cst_110 : f32 to vector<8x32xf32>
    %339 = arith.addf %337, %338 : vector<8x32xf32>
    %340 = arith.mulf %329, %305 : vector<8x32xf32>
    %341 = arith.mulf %321, %331 : vector<8x32xf32>
    %342 = arith.addf %340, %341 : vector<8x32xf32>
    %343 = math.tanh %342 : vector<8x32xf32>
    %344 = arith.mulf %339, %343 : vector<8x32xf32>
    %345 = arith.cmpi slt, %c7_i32, %10 : i32
    %346 = arith.select %345, %344, %304 : vector<8x32xf32>
    %347 = arith.select %345, %342, %305 : vector<8x32xf32>
    %c8_i32 = arith.constant 8 : i32
    %348 = arith.index_cast %c8_i32 : i32 to index
    %c0_111 = arith.constant 0 : index
    %c0_112 = arith.constant 0 : index
    %349 = vector.load %arg20[%348, %c0_111, %c0_112] : memref<16x8x128xbf16, #tpu.memory_space<vmem>>, vector<1x8x128xbf16>
    %350 = vector.shape_cast %349 : vector<1x8x128xbf16> to vector<8x128xbf16>
    %351 = arith.extf %350 : vector<8x128xbf16> to vector<8x128xf32>
    %352 = vector.broadcast %8 : vector<1x128xf32> to vector<8x128xf32>
    %353 = arith.addf %351, %352 : vector<8x128xf32>
    %cst_113 = arith.constant dense<0.000000e+00> : vector<8x128xf32>
    %354 = tpu.matmul %346, %7, %cst_113 {dimension_numbers = #tpu.dot_dimension_numbers<[1], [0], [0], [1], [0, 0, 1, 1], [], []>} : vector<8x32xf32>, vector<32x128xf32>, vector<8x128xf32> -> vector<8x128xf32>
    %355 = arith.addf %353, %354 : vector<8x128xf32>
    %356 = vector.extract_strided_slice %355 {offsets = [0, 0], sizes = [8, 32], strides = [1, 1]} : vector<8x128xf32> to vector<8x32xf32>
    %cst_114 = arith.constant 5.000000e-01 : f32
    %357 = vector.broadcast %cst_114 : f32 to vector<8x32xf32>
    %358 = arith.mulf %357, %356 : vector<8x32xf32>
    %359 = math.tanh %358 : vector<8x32xf32>
    %cst_115 = arith.constant 5.000000e-01 : f32
    %360 = vector.broadcast %cst_115 : f32 to vector<8x32xf32>
    %361 = arith.mulf %360, %359 : vector<8x32xf32>
    %cst_116 = arith.constant 5.000000e-01 : f32
    %362 = vector.broadcast %cst_116 : f32 to vector<8x32xf32>
    %363 = arith.addf %361, %362 : vector<8x32xf32>
    %364 = vector.extract_strided_slice %355 {offsets = [0, 32], sizes = [8, 32], strides = [1, 1]} : vector<8x128xf32> to vector<8x32xf32>
    %cst_117 = arith.constant 5.000000e-01 : f32
    %365 = vector.broadcast %cst_117 : f32 to vector<8x32xf32>
    %366 = arith.mulf %365, %364 : vector<8x32xf32>
    %367 = math.tanh %366 : vector<8x32xf32>
    %cst_118 = arith.constant 5.000000e-01 : f32
    %368 = vector.broadcast %cst_118 : f32 to vector<8x32xf32>
    %369 = arith.mulf %368, %367 : vector<8x32xf32>
    %cst_119 = arith.constant 5.000000e-01 : f32
    %370 = vector.broadcast %cst_119 : f32 to vector<8x32xf32>
    %371 = arith.addf %369, %370 : vector<8x32xf32>
    %372 = vector.extract_strided_slice %355 {offsets = [0, 64], sizes = [8, 32], strides = [1, 1]} : vector<8x128xf32> to vector<8x32xf32>
    %373 = math.tanh %372 : vector<8x32xf32>
    %374 = vector.extract_strided_slice %355 {offsets = [0, 96], sizes = [8, 32], strides = [1, 1]} : vector<8x128xf32> to vector<8x32xf32>
    %cst_120 = arith.constant 5.000000e-01 : f32
    %375 = vector.broadcast %cst_120 : f32 to vector<8x32xf32>
    %376 = arith.mulf %375, %374 : vector<8x32xf32>
    %377 = math.tanh %376 : vector<8x32xf32>
    %cst_121 = arith.constant 5.000000e-01 : f32
    %378 = vector.broadcast %cst_121 : f32 to vector<8x32xf32>
    %379 = arith.mulf %378, %377 : vector<8x32xf32>
    %cst_122 = arith.constant 5.000000e-01 : f32
    %380 = vector.broadcast %cst_122 : f32 to vector<8x32xf32>
    %381 = arith.addf %379, %380 : vector<8x32xf32>
    %382 = arith.mulf %371, %347 : vector<8x32xf32>
    %383 = arith.mulf %363, %373 : vector<8x32xf32>
    %384 = arith.addf %382, %383 : vector<8x32xf32>
    %385 = math.tanh %384 : vector<8x32xf32>
    %386 = arith.mulf %381, %385 : vector<8x32xf32>
    %387 = arith.cmpi slt, %c8_i32, %10 : i32
    %388 = arith.select %387, %386, %346 : vector<8x32xf32>
    %389 = arith.select %387, %384, %347 : vector<8x32xf32>
    %c9_i32 = arith.constant 9 : i32
    %390 = arith.index_cast %c9_i32 : i32 to index
    %c0_123 = arith.constant 0 : index
    %c0_124 = arith.constant 0 : index
    %391 = vector.load %arg20[%390, %c0_123, %c0_124] : memref<16x8x128xbf16, #tpu.memory_space<vmem>>, vector<1x8x128xbf16>
    %392 = vector.shape_cast %391 : vector<1x8x128xbf16> to vector<8x128xbf16>
    %393 = arith.extf %392 : vector<8x128xbf16> to vector<8x128xf32>
    %394 = vector.broadcast %8 : vector<1x128xf32> to vector<8x128xf32>
    %395 = arith.addf %393, %394 : vector<8x128xf32>
    %cst_125 = arith.constant dense<0.000000e+00> : vector<8x128xf32>
    %396 = tpu.matmul %388, %7, %cst_125 {dimension_numbers = #tpu.dot_dimension_numbers<[1], [0], [0], [1], [0, 0, 1, 1], [], []>} : vector<8x32xf32>, vector<32x128xf32>, vector<8x128xf32> -> vector<8x128xf32>
    %397 = arith.addf %395, %396 : vector<8x128xf32>
    %398 = vector.extract_strided_slice %397 {offsets = [0, 0], sizes = [8, 32], strides = [1, 1]} : vector<8x128xf32> to vector<8x32xf32>
    %cst_126 = arith.constant 5.000000e-01 : f32
    %399 = vector.broadcast %cst_126 : f32 to vector<8x32xf32>
    %400 = arith.mulf %399, %398 : vector<8x32xf32>
    %401 = math.tanh %400 : vector<8x32xf32>
    %cst_127 = arith.constant 5.000000e-01 : f32
    %402 = vector.broadcast %cst_127 : f32 to vector<8x32xf32>
    %403 = arith.mulf %402, %401 : vector<8x32xf32>
    %cst_128 = arith.constant 5.000000e-01 : f32
    %404 = vector.broadcast %cst_128 : f32 to vector<8x32xf32>
    %405 = arith.addf %403, %404 : vector<8x32xf32>
    %406 = vector.extract_strided_slice %397 {offsets = [0, 32], sizes = [8, 32], strides = [1, 1]} : vector<8x128xf32> to vector<8x32xf32>
    %cst_129 = arith.constant 5.000000e-01 : f32
    %407 = vector.broadcast %cst_129 : f32 to vector<8x32xf32>
    %408 = arith.mulf %407, %406 : vector<8x32xf32>
    %409 = math.tanh %408 : vector<8x32xf32>
    %cst_130 = arith.constant 5.000000e-01 : f32
    %410 = vector.broadcast %cst_130 : f32 to vector<8x32xf32>
    %411 = arith.mulf %410, %409 : vector<8x32xf32>
    %cst_131 = arith.constant 5.000000e-01 : f32
    %412 = vector.broadcast %cst_131 : f32 to vector<8x32xf32>
    %413 = arith.addf %411, %412 : vector<8x32xf32>
    %414 = vector.extract_strided_slice %397 {offsets = [0, 64], sizes = [8, 32], strides = [1, 1]} : vector<8x128xf32> to vector<8x32xf32>
    %415 = math.tanh %414 : vector<8x32xf32>
    %416 = vector.extract_strided_slice %397 {offsets = [0, 96], sizes = [8, 32], strides = [1, 1]} : vector<8x128xf32> to vector<8x32xf32>
    %cst_132 = arith.constant 5.000000e-01 : f32
    %417 = vector.broadcast %cst_132 : f32 to vector<8x32xf32>
    %418 = arith.mulf %417, %416 : vector<8x32xf32>
    %419 = math.tanh %418 : vector<8x32xf32>
    %cst_133 = arith.constant 5.000000e-01 : f32
    %420 = vector.broadcast %cst_133 : f32 to vector<8x32xf32>
    %421 = arith.mulf %420, %419 : vector<8x32xf32>
    %cst_134 = arith.constant 5.000000e-01 : f32
    %422 = vector.broadcast %cst_134 : f32 to vector<8x32xf32>
    %423 = arith.addf %421, %422 : vector<8x32xf32>
    %424 = arith.mulf %413, %389 : vector<8x32xf32>
    %425 = arith.mulf %405, %415 : vector<8x32xf32>
    %426 = arith.addf %424, %425 : vector<8x32xf32>
    %427 = math.tanh %426 : vector<8x32xf32>
    %428 = arith.mulf %423, %427 : vector<8x32xf32>
    %429 = arith.cmpi slt, %c9_i32, %10 : i32
    %430 = arith.select %429, %428, %388 : vector<8x32xf32>
    %431 = arith.select %429, %426, %389 : vector<8x32xf32>
    %c10_i32 = arith.constant 10 : i32
    %432 = arith.index_cast %c10_i32 : i32 to index
    %c0_135 = arith.constant 0 : index
    %c0_136 = arith.constant 0 : index
    %433 = vector.load %arg20[%432, %c0_135, %c0_136] : memref<16x8x128xbf16, #tpu.memory_space<vmem>>, vector<1x8x128xbf16>
    %434 = vector.shape_cast %433 : vector<1x8x128xbf16> to vector<8x128xbf16>
    %435 = arith.extf %434 : vector<8x128xbf16> to vector<8x128xf32>
    %436 = vector.broadcast %8 : vector<1x128xf32> to vector<8x128xf32>
    %437 = arith.addf %435, %436 : vector<8x128xf32>
    %cst_137 = arith.constant dense<0.000000e+00> : vector<8x128xf32>
    %438 = tpu.matmul %430, %7, %cst_137 {dimension_numbers = #tpu.dot_dimension_numbers<[1], [0], [0], [1], [0, 0, 1, 1], [], []>} : vector<8x32xf32>, vector<32x128xf32>, vector<8x128xf32> -> vector<8x128xf32>
    %439 = arith.addf %437, %438 : vector<8x128xf32>
    %440 = vector.extract_strided_slice %439 {offsets = [0, 0], sizes = [8, 32], strides = [1, 1]} : vector<8x128xf32> to vector<8x32xf32>
    %cst_138 = arith.constant 5.000000e-01 : f32
    %441 = vector.broadcast %cst_138 : f32 to vector<8x32xf32>
    %442 = arith.mulf %441, %440 : vector<8x32xf32>
    %443 = math.tanh %442 : vector<8x32xf32>
    %cst_139 = arith.constant 5.000000e-01 : f32
    %444 = vector.broadcast %cst_139 : f32 to vector<8x32xf32>
    %445 = arith.mulf %444, %443 : vector<8x32xf32>
    %cst_140 = arith.constant 5.000000e-01 : f32
    %446 = vector.broadcast %cst_140 : f32 to vector<8x32xf32>
    %447 = arith.addf %445, %446 : vector<8x32xf32>
    %448 = vector.extract_strided_slice %439 {offsets = [0, 32], sizes = [8, 32], strides = [1, 1]} : vector<8x128xf32> to vector<8x32xf32>
    %cst_141 = arith.constant 5.000000e-01 : f32
    %449 = vector.broadcast %cst_141 : f32 to vector<8x32xf32>
    %450 = arith.mulf %449, %448 : vector<8x32xf32>
    %451 = math.tanh %450 : vector<8x32xf32>
    %cst_142 = arith.constant 5.000000e-01 : f32
    %452 = vector.broadcast %cst_142 : f32 to vector<8x32xf32>
    %453 = arith.mulf %452, %451 : vector<8x32xf32>
    %cst_143 = arith.constant 5.000000e-01 : f32
    %454 = vector.broadcast %cst_143 : f32 to vector<8x32xf32>
    %455 = arith.addf %453, %454 : vector<8x32xf32>
    %456 = vector.extract_strided_slice %439 {offsets = [0, 64], sizes = [8, 32], strides = [1, 1]} : vector<8x128xf32> to vector<8x32xf32>
    %457 = math.tanh %456 : vector<8x32xf32>
    %458 = vector.extract_strided_slice %439 {offsets = [0, 96], sizes = [8, 32], strides = [1, 1]} : vector<8x128xf32> to vector<8x32xf32>
    %cst_144 = arith.constant 5.000000e-01 : f32
    %459 = vector.broadcast %cst_144 : f32 to vector<8x32xf32>
    %460 = arith.mulf %459, %458 : vector<8x32xf32>
    %461 = math.tanh %460 : vector<8x32xf32>
    %cst_145 = arith.constant 5.000000e-01 : f32
    %462 = vector.broadcast %cst_145 : f32 to vector<8x32xf32>
    %463 = arith.mulf %462, %461 : vector<8x32xf32>
    %cst_146 = arith.constant 5.000000e-01 : f32
    %464 = vector.broadcast %cst_146 : f32 to vector<8x32xf32>
    %465 = arith.addf %463, %464 : vector<8x32xf32>
    %466 = arith.mulf %455, %431 : vector<8x32xf32>
    %467 = arith.mulf %447, %457 : vector<8x32xf32>
    %468 = arith.addf %466, %467 : vector<8x32xf32>
    %469 = math.tanh %468 : vector<8x32xf32>
    %470 = arith.mulf %465, %469 : vector<8x32xf32>
    %471 = arith.cmpi slt, %c10_i32, %10 : i32
    %472 = arith.select %471, %470, %430 : vector<8x32xf32>
    %473 = arith.select %471, %468, %431 : vector<8x32xf32>
    %c11_i32 = arith.constant 11 : i32
    %474 = arith.index_cast %c11_i32 : i32 to index
    %c0_147 = arith.constant 0 : index
    %c0_148 = arith.constant 0 : index
    %475 = vector.load %arg20[%474, %c0_147, %c0_148] : memref<16x8x128xbf16, #tpu.memory_space<vmem>>, vector<1x8x128xbf16>
    %476 = vector.shape_cast %475 : vector<1x8x128xbf16> to vector<8x128xbf16>
    %477 = arith.extf %476 : vector<8x128xbf16> to vector<8x128xf32>
    %478 = vector.broadcast %8 : vector<1x128xf32> to vector<8x128xf32>
    %479 = arith.addf %477, %478 : vector<8x128xf32>
    %cst_149 = arith.constant dense<0.000000e+00> : vector<8x128xf32>
    %480 = tpu.matmul %472, %7, %cst_149 {dimension_numbers = #tpu.dot_dimension_numbers<[1], [0], [0], [1], [0, 0, 1, 1], [], []>} : vector<8x32xf32>, vector<32x128xf32>, vector<8x128xf32> -> vector<8x128xf32>
    %481 = arith.addf %479, %480 : vector<8x128xf32>
    %482 = vector.extract_strided_slice %481 {offsets = [0, 0], sizes = [8, 32], strides = [1, 1]} : vector<8x128xf32> to vector<8x32xf32>
    %cst_150 = arith.constant 5.000000e-01 : f32
    %483 = vector.broadcast %cst_150 : f32 to vector<8x32xf32>
    %484 = arith.mulf %483, %482 : vector<8x32xf32>
    %485 = math.tanh %484 : vector<8x32xf32>
    %cst_151 = arith.constant 5.000000e-01 : f32
    %486 = vector.broadcast %cst_151 : f32 to vector<8x32xf32>
    %487 = arith.mulf %486, %485 : vector<8x32xf32>
    %cst_152 = arith.constant 5.000000e-01 : f32
    %488 = vector.broadcast %cst_152 : f32 to vector<8x32xf32>
    %489 = arith.addf %487, %488 : vector<8x32xf32>
    %490 = vector.extract_strided_slice %481 {offsets = [0, 32], sizes = [8, 32], strides = [1, 1]} : vector<8x128xf32> to vector<8x32xf32>
    %cst_153 = arith.constant 5.000000e-01 : f32
    %491 = vector.broadcast %cst_153 : f32 to vector<8x32xf32>
    %492 = arith.mulf %491, %490 : vector<8x32xf32>
    %493 = math.tanh %492 : vector<8x32xf32>
    %cst_154 = arith.constant 5.000000e-01 : f32
    %494 = vector.broadcast %cst_154 : f32 to vector<8x32xf32>
    %495 = arith.mulf %494, %493 : vector<8x32xf32>
    %cst_155 = arith.constant 5.000000e-01 : f32
    %496 = vector.broadcast %cst_155 : f32 to vector<8x32xf32>
    %497 = arith.addf %495, %496 : vector<8x32xf32>
    %498 = vector.extract_strided_slice %481 {offsets = [0, 64], sizes = [8, 32], strides = [1, 1]} : vector<8x128xf32> to vector<8x32xf32>
    %499 = math.tanh %498 : vector<8x32xf32>
    %500 = vector.extract_strided_slice %481 {offsets = [0, 96], sizes = [8, 32], strides = [1, 1]} : vector<8x128xf32> to vector<8x32xf32>
    %cst_156 = arith.constant 5.000000e-01 : f32
    %501 = vector.broadcast %cst_156 : f32 to vector<8x32xf32>
    %502 = arith.mulf %501, %500 : vector<8x32xf32>
    %503 = math.tanh %502 : vector<8x32xf32>
    %cst_157 = arith.constant 5.000000e-01 : f32
    %504 = vector.broadcast %cst_157 : f32 to vector<8x32xf32>
    %505 = arith.mulf %504, %503 : vector<8x32xf32>
    %cst_158 = arith.constant 5.000000e-01 : f32
    %506 = vector.broadcast %cst_158 : f32 to vector<8x32xf32>
    %507 = arith.addf %505, %506 : vector<8x32xf32>
    %508 = arith.mulf %497, %473 : vector<8x32xf32>
    %509 = arith.mulf %489, %499 : vector<8x32xf32>
    %510 = arith.addf %508, %509 : vector<8x32xf32>
    %511 = math.tanh %510 : vector<8x32xf32>
    %512 = arith.mulf %507, %511 : vector<8x32xf32>
    %513 = arith.cmpi slt, %c11_i32, %10 : i32
    %514 = arith.select %513, %512, %472 : vector<8x32xf32>
    %515 = arith.select %513, %510, %473 : vector<8x32xf32>
    %c12_i32 = arith.constant 12 : i32
    %516 = arith.index_cast %c12_i32 : i32 to index
    %c0_159 = arith.constant 0 : index
    %c0_160 = arith.constant 0 : index
    %517 = vector.load %arg20[%516, %c0_159, %c0_160] : memref<16x8x128xbf16, #tpu.memory_space<vmem>>, vector<1x8x128xbf16>
    %518 = vector.shape_cast %517 : vector<1x8x128xbf16> to vector<8x128xbf16>
    %519 = arith.extf %518 : vector<8x128xbf16> to vector<8x128xf32>
    %520 = vector.broadcast %8 : vector<1x128xf32> to vector<8x128xf32>
    %521 = arith.addf %519, %520 : vector<8x128xf32>
    %cst_161 = arith.constant dense<0.000000e+00> : vector<8x128xf32>
    %522 = tpu.matmul %514, %7, %cst_161 {dimension_numbers = #tpu.dot_dimension_numbers<[1], [0], [0], [1], [0, 0, 1, 1], [], []>} : vector<8x32xf32>, vector<32x128xf32>, vector<8x128xf32> -> vector<8x128xf32>
    %523 = arith.addf %521, %522 : vector<8x128xf32>
    %524 = vector.extract_strided_slice %523 {offsets = [0, 0], sizes = [8, 32], strides = [1, 1]} : vector<8x128xf32> to vector<8x32xf32>
    %cst_162 = arith.constant 5.000000e-01 : f32
    %525 = vector.broadcast %cst_162 : f32 to vector<8x32xf32>
    %526 = arith.mulf %525, %524 : vector<8x32xf32>
    %527 = math.tanh %526 : vector<8x32xf32>
    %cst_163 = arith.constant 5.000000e-01 : f32
    %528 = vector.broadcast %cst_163 : f32 to vector<8x32xf32>
    %529 = arith.mulf %528, %527 : vector<8x32xf32>
    %cst_164 = arith.constant 5.000000e-01 : f32
    %530 = vector.broadcast %cst_164 : f32 to vector<8x32xf32>
    %531 = arith.addf %529, %530 : vector<8x32xf32>
    %532 = vector.extract_strided_slice %523 {offsets = [0, 32], sizes = [8, 32], strides = [1, 1]} : vector<8x128xf32> to vector<8x32xf32>
    %cst_165 = arith.constant 5.000000e-01 : f32
    %533 = vector.broadcast %cst_165 : f32 to vector<8x32xf32>
    %534 = arith.mulf %533, %532 : vector<8x32xf32>
    %535 = math.tanh %534 : vector<8x32xf32>
    %cst_166 = arith.constant 5.000000e-01 : f32
    %536 = vector.broadcast %cst_166 : f32 to vector<8x32xf32>
    %537 = arith.mulf %536, %535 : vector<8x32xf32>
    %cst_167 = arith.constant 5.000000e-01 : f32
    %538 = vector.broadcast %cst_167 : f32 to vector<8x32xf32>
    %539 = arith.addf %537, %538 : vector<8x32xf32>
    %540 = vector.extract_strided_slice %523 {offsets = [0, 64], sizes = [8, 32], strides = [1, 1]} : vector<8x128xf32> to vector<8x32xf32>
    %541 = math.tanh %540 : vector<8x32xf32>
    %542 = vector.extract_strided_slice %523 {offsets = [0, 96], sizes = [8, 32], strides = [1, 1]} : vector<8x128xf32> to vector<8x32xf32>
    %cst_168 = arith.constant 5.000000e-01 : f32
    %543 = vector.broadcast %cst_168 : f32 to vector<8x32xf32>
    %544 = arith.mulf %543, %542 : vector<8x32xf32>
    %545 = math.tanh %544 : vector<8x32xf32>
    %cst_169 = arith.constant 5.000000e-01 : f32
    %546 = vector.broadcast %cst_169 : f32 to vector<8x32xf32>
    %547 = arith.mulf %546, %545 : vector<8x32xf32>
    %cst_170 = arith.constant 5.000000e-01 : f32
    %548 = vector.broadcast %cst_170 : f32 to vector<8x32xf32>
    %549 = arith.addf %547, %548 : vector<8x32xf32>
    %550 = arith.mulf %539, %515 : vector<8x32xf32>
    %551 = arith.mulf %531, %541 : vector<8x32xf32>
    %552 = arith.addf %550, %551 : vector<8x32xf32>
    %553 = math.tanh %552 : vector<8x32xf32>
    %554 = arith.mulf %549, %553 : vector<8x32xf32>
    %555 = arith.cmpi slt, %c12_i32, %10 : i32
    %556 = arith.select %555, %554, %514 : vector<8x32xf32>
    %557 = arith.select %555, %552, %515 : vector<8x32xf32>
    %c13_i32 = arith.constant 13 : i32
    %558 = arith.index_cast %c13_i32 : i32 to index
    %c0_171 = arith.constant 0 : index
    %c0_172 = arith.constant 0 : index
    %559 = vector.load %arg20[%558, %c0_171, %c0_172] : memref<16x8x128xbf16, #tpu.memory_space<vmem>>, vector<1x8x128xbf16>
    %560 = vector.shape_cast %559 : vector<1x8x128xbf16> to vector<8x128xbf16>
    %561 = arith.extf %560 : vector<8x128xbf16> to vector<8x128xf32>
    %562 = vector.broadcast %8 : vector<1x128xf32> to vector<8x128xf32>
    %563 = arith.addf %561, %562 : vector<8x128xf32>
    %cst_173 = arith.constant dense<0.000000e+00> : vector<8x128xf32>
    %564 = tpu.matmul %556, %7, %cst_173 {dimension_numbers = #tpu.dot_dimension_numbers<[1], [0], [0], [1], [0, 0, 1, 1], [], []>} : vector<8x32xf32>, vector<32x128xf32>, vector<8x128xf32> -> vector<8x128xf32>
    %565 = arith.addf %563, %564 : vector<8x128xf32>
    %566 = vector.extract_strided_slice %565 {offsets = [0, 0], sizes = [8, 32], strides = [1, 1]} : vector<8x128xf32> to vector<8x32xf32>
    %cst_174 = arith.constant 5.000000e-01 : f32
    %567 = vector.broadcast %cst_174 : f32 to vector<8x32xf32>
    %568 = arith.mulf %567, %566 : vector<8x32xf32>
    %569 = math.tanh %568 : vector<8x32xf32>
    %cst_175 = arith.constant 5.000000e-01 : f32
    %570 = vector.broadcast %cst_175 : f32 to vector<8x32xf32>
    %571 = arith.mulf %570, %569 : vector<8x32xf32>
    %cst_176 = arith.constant 5.000000e-01 : f32
    %572 = vector.broadcast %cst_176 : f32 to vector<8x32xf32>
    %573 = arith.addf %571, %572 : vector<8x32xf32>
    %574 = vector.extract_strided_slice %565 {offsets = [0, 32], sizes = [8, 32], strides = [1, 1]} : vector<8x128xf32> to vector<8x32xf32>
    %cst_177 = arith.constant 5.000000e-01 : f32
    %575 = vector.broadcast %cst_177 : f32 to vector<8x32xf32>
    %576 = arith.mulf %575, %574 : vector<8x32xf32>
    %577 = math.tanh %576 : vector<8x32xf32>
    %cst_178 = arith.constant 5.000000e-01 : f32
    %578 = vector.broadcast %cst_178 : f32 to vector<8x32xf32>
    %579 = arith.mulf %578, %577 : vector<8x32xf32>
    %cst_179 = arith.constant 5.000000e-01 : f32
    %580 = vector.broadcast %cst_179 : f32 to vector<8x32xf32>
    %581 = arith.addf %579, %580 : vector<8x32xf32>
    %582 = vector.extract_strided_slice %565 {offsets = [0, 64], sizes = [8, 32], strides = [1, 1]} : vector<8x128xf32> to vector<8x32xf32>
    %583 = math.tanh %582 : vector<8x32xf32>
    %584 = vector.extract_strided_slice %565 {offsets = [0, 96], sizes = [8, 32], strides = [1, 1]} : vector<8x128xf32> to vector<8x32xf32>
    %cst_180 = arith.constant 5.000000e-01 : f32
    %585 = vector.broadcast %cst_180 : f32 to vector<8x32xf32>
    %586 = arith.mulf %585, %584 : vector<8x32xf32>
    %587 = math.tanh %586 : vector<8x32xf32>
    %cst_181 = arith.constant 5.000000e-01 : f32
    %588 = vector.broadcast %cst_181 : f32 to vector<8x32xf32>
    %589 = arith.mulf %588, %587 : vector<8x32xf32>
    %cst_182 = arith.constant 5.000000e-01 : f32
    %590 = vector.broadcast %cst_182 : f32 to vector<8x32xf32>
    %591 = arith.addf %589, %590 : vector<8x32xf32>
    %592 = arith.mulf %581, %557 : vector<8x32xf32>
    %593 = arith.mulf %573, %583 : vector<8x32xf32>
    %594 = arith.addf %592, %593 : vector<8x32xf32>
    %595 = math.tanh %594 : vector<8x32xf32>
    %596 = arith.mulf %591, %595 : vector<8x32xf32>
    %597 = arith.cmpi slt, %c13_i32, %10 : i32
    %598 = arith.select %597, %596, %556 : vector<8x32xf32>
    %599 = arith.select %597, %594, %557 : vector<8x32xf32>
    %c14_i32 = arith.constant 14 : i32
    %600 = arith.index_cast %c14_i32 : i32 to index
    %c0_183 = arith.constant 0 : index
    %c0_184 = arith.constant 0 : index
    %601 = vector.load %arg20[%600, %c0_183, %c0_184] : memref<16x8x128xbf16, #tpu.memory_space<vmem>>, vector<1x8x128xbf16>
    %602 = vector.shape_cast %601 : vector<1x8x128xbf16> to vector<8x128xbf16>
    %603 = arith.extf %602 : vector<8x128xbf16> to vector<8x128xf32>
    %604 = vector.broadcast %8 : vector<1x128xf32> to vector<8x128xf32>
    %605 = arith.addf %603, %604 : vector<8x128xf32>
    %cst_185 = arith.constant dense<0.000000e+00> : vector<8x128xf32>
    %606 = tpu.matmul %598, %7, %cst_185 {dimension_numbers = #tpu.dot_dimension_numbers<[1], [0], [0], [1], [0, 0, 1, 1], [], []>} : vector<8x32xf32>, vector<32x128xf32>, vector<8x128xf32> -> vector<8x128xf32>
    %607 = arith.addf %605, %606 : vector<8x128xf32>
    %608 = vector.extract_strided_slice %607 {offsets = [0, 0], sizes = [8, 32], strides = [1, 1]} : vector<8x128xf32> to vector<8x32xf32>
    %cst_186 = arith.constant 5.000000e-01 : f32
    %609 = vector.broadcast %cst_186 : f32 to vector<8x32xf32>
    %610 = arith.mulf %609, %608 : vector<8x32xf32>
    %611 = math.tanh %610 : vector<8x32xf32>
    %cst_187 = arith.constant 5.000000e-01 : f32
    %612 = vector.broadcast %cst_187 : f32 to vector<8x32xf32>
    %613 = arith.mulf %612, %611 : vector<8x32xf32>
    %cst_188 = arith.constant 5.000000e-01 : f32
    %614 = vector.broadcast %cst_188 : f32 to vector<8x32xf32>
    %615 = arith.addf %613, %614 : vector<8x32xf32>
    %616 = vector.extract_strided_slice %607 {offsets = [0, 32], sizes = [8, 32], strides = [1, 1]} : vector<8x128xf32> to vector<8x32xf32>
    %cst_189 = arith.constant 5.000000e-01 : f32
    %617 = vector.broadcast %cst_189 : f32 to vector<8x32xf32>
    %618 = arith.mulf %617, %616 : vector<8x32xf32>
    %619 = math.tanh %618 : vector<8x32xf32>
    %cst_190 = arith.constant 5.000000e-01 : f32
    %620 = vector.broadcast %cst_190 : f32 to vector<8x32xf32>
    %621 = arith.mulf %620, %619 : vector<8x32xf32>
    %cst_191 = arith.constant 5.000000e-01 : f32
    %622 = vector.broadcast %cst_191 : f32 to vector<8x32xf32>
    %623 = arith.addf %621, %622 : vector<8x32xf32>
    %624 = vector.extract_strided_slice %607 {offsets = [0, 64], sizes = [8, 32], strides = [1, 1]} : vector<8x128xf32> to vector<8x32xf32>
    %625 = math.tanh %624 : vector<8x32xf32>
    %626 = vector.extract_strided_slice %607 {offsets = [0, 96], sizes = [8, 32], strides = [1, 1]} : vector<8x128xf32> to vector<8x32xf32>
    %cst_192 = arith.constant 5.000000e-01 : f32
    %627 = vector.broadcast %cst_192 : f32 to vector<8x32xf32>
    %628 = arith.mulf %627, %626 : vector<8x32xf32>
    %629 = math.tanh %628 : vector<8x32xf32>
    %cst_193 = arith.constant 5.000000e-01 : f32
    %630 = vector.broadcast %cst_193 : f32 to vector<8x32xf32>
    %631 = arith.mulf %630, %629 : vector<8x32xf32>
    %cst_194 = arith.constant 5.000000e-01 : f32
    %632 = vector.broadcast %cst_194 : f32 to vector<8x32xf32>
    %633 = arith.addf %631, %632 : vector<8x32xf32>
    %634 = arith.mulf %623, %599 : vector<8x32xf32>
    %635 = arith.mulf %615, %625 : vector<8x32xf32>
    %636 = arith.addf %634, %635 : vector<8x32xf32>
    %637 = math.tanh %636 : vector<8x32xf32>
    %638 = arith.mulf %633, %637 : vector<8x32xf32>
    %639 = arith.cmpi slt, %c14_i32, %10 : i32
    %640 = arith.select %639, %638, %598 : vector<8x32xf32>
    %641 = arith.select %639, %636, %599 : vector<8x32xf32>
    %c15_i32 = arith.constant 15 : i32
    %642 = arith.index_cast %c15_i32 : i32 to index
    %c0_195 = arith.constant 0 : index
    %c0_196 = arith.constant 0 : index
    %643 = vector.load %arg20[%642, %c0_195, %c0_196] : memref<16x8x128xbf16, #tpu.memory_space<vmem>>, vector<1x8x128xbf16>
    %644 = vector.shape_cast %643 : vector<1x8x128xbf16> to vector<8x128xbf16>
    %645 = arith.extf %644 : vector<8x128xbf16> to vector<8x128xf32>
    %646 = vector.broadcast %8 : vector<1x128xf32> to vector<8x128xf32>
    %647 = arith.addf %645, %646 : vector<8x128xf32>
    %cst_197 = arith.constant dense<0.000000e+00> : vector<8x128xf32>
    %648 = tpu.matmul %640, %7, %cst_197 {dimension_numbers = #tpu.dot_dimension_numbers<[1], [0], [0], [1], [0, 0, 1, 1], [], []>} : vector<8x32xf32>, vector<32x128xf32>, vector<8x128xf32> -> vector<8x128xf32>
    %649 = arith.addf %647, %648 : vector<8x128xf32>
    %650 = vector.extract_strided_slice %649 {offsets = [0, 0], sizes = [8, 32], strides = [1, 1]} : vector<8x128xf32> to vector<8x32xf32>
    %cst_198 = arith.constant 5.000000e-01 : f32
    %651 = vector.broadcast %cst_198 : f32 to vector<8x32xf32>
    %652 = arith.mulf %651, %650 : vector<8x32xf32>
    %653 = math.tanh %652 : vector<8x32xf32>
    %cst_199 = arith.constant 5.000000e-01 : f32
    %654 = vector.broadcast %cst_199 : f32 to vector<8x32xf32>
    %655 = arith.mulf %654, %653 : vector<8x32xf32>
    %cst_200 = arith.constant 5.000000e-01 : f32
    %656 = vector.broadcast %cst_200 : f32 to vector<8x32xf32>
    %657 = arith.addf %655, %656 : vector<8x32xf32>
    %658 = vector.extract_strided_slice %649 {offsets = [0, 32], sizes = [8, 32], strides = [1, 1]} : vector<8x128xf32> to vector<8x32xf32>
    %cst_201 = arith.constant 5.000000e-01 : f32
    %659 = vector.broadcast %cst_201 : f32 to vector<8x32xf32>
    %660 = arith.mulf %659, %658 : vector<8x32xf32>
    %661 = math.tanh %660 : vector<8x32xf32>
    %cst_202 = arith.constant 5.000000e-01 : f32
    %662 = vector.broadcast %cst_202 : f32 to vector<8x32xf32>
    %663 = arith.mulf %662, %661 : vector<8x32xf32>
    %cst_203 = arith.constant 5.000000e-01 : f32
    %664 = vector.broadcast %cst_203 : f32 to vector<8x32xf32>
    %665 = arith.addf %663, %664 : vector<8x32xf32>
    %666 = vector.extract_strided_slice %649 {offsets = [0, 64], sizes = [8, 32], strides = [1, 1]} : vector<8x128xf32> to vector<8x32xf32>
    %667 = math.tanh %666 : vector<8x32xf32>
    %668 = vector.extract_strided_slice %649 {offsets = [0, 96], sizes = [8, 32], strides = [1, 1]} : vector<8x128xf32> to vector<8x32xf32>
    %cst_204 = arith.constant 5.000000e-01 : f32
    %669 = vector.broadcast %cst_204 : f32 to vector<8x32xf32>
    %670 = arith.mulf %669, %668 : vector<8x32xf32>
    %671 = math.tanh %670 : vector<8x32xf32>
    %cst_205 = arith.constant 5.000000e-01 : f32
    %672 = vector.broadcast %cst_205 : f32 to vector<8x32xf32>
    %673 = arith.mulf %672, %671 : vector<8x32xf32>
    %cst_206 = arith.constant 5.000000e-01 : f32
    %674 = vector.broadcast %cst_206 : f32 to vector<8x32xf32>
    %675 = arith.addf %673, %674 : vector<8x32xf32>
    %676 = arith.mulf %665, %641 : vector<8x32xf32>
    %677 = arith.mulf %657, %667 : vector<8x32xf32>
    %678 = arith.addf %676, %677 : vector<8x32xf32>
    %679 = math.tanh %678 : vector<8x32xf32>
    %680 = arith.mulf %675, %679 : vector<8x32xf32>
    %681 = arith.cmpi slt, %c15_i32, %10 : i32
    %682 = arith.select %681, %680, %640 : vector<8x32xf32>
    %683 = arith.select %681, %678, %641 : vector<8x32xf32>
    %c16_i32 = arith.constant 16 : i32
    %684 = vector.broadcast %9 : vector<8x1xf32> to vector<8x32xf32>
    %685 = arith.mulf %682, %684 : vector<8x32xf32>
    %c0_207 = arith.constant 0 : index
    %c0_208 = arith.constant 0 : index
    %686 = vector.load %arg8[%c0_207, %c0_208] : memref<1x16xf32, #tpu.memory_space<vmem>>, vector<1x16xf32>
    %687 = arith.extf %0 : vector<16x8x8xbf16> to vector<16x8x8xf32>
    %688 = vector.extract_strided_slice %687 {offsets = [0, 0, 0], sizes = [9, 8, 8], strides = [1, 1, 1]} : vector<16x8x8xf32> to vector<9x8x8xf32>
    %689 = vector.extract_strided_slice %687 {offsets = [1, 0, 0], sizes = [9, 8, 8], strides = [1, 1, 1]} : vector<16x8x8xf32> to vector<9x8x8xf32>
    %690 = vector.extract_strided_slice %687 {offsets = [2, 0, 0], sizes = [9, 8, 8], strides = [1, 1, 1]} : vector<16x8x8xf32> to vector<9x8x8xf32>
    %691 = vector.extract_strided_slice %687 {offsets = [3, 0, 0], sizes = [9, 8, 8], strides = [1, 1, 1]} : vector<16x8x8xf32> to vector<9x8x8xf32>
    %692 = vector.extract_strided_slice %687 {offsets = [4, 0, 0], sizes = [9, 8, 8], strides = [1, 1, 1]} : vector<16x8x8xf32> to vector<9x8x8xf32>
    %693 = vector.extract_strided_slice %687 {offsets = [5, 0, 0], sizes = [9, 8, 8], strides = [1, 1, 1]} : vector<16x8x8xf32> to vector<9x8x8xf32>
    %694 = vector.extract_strided_slice %687 {offsets = [6, 0, 0], sizes = [9, 8, 8], strides = [1, 1, 1]} : vector<16x8x8xf32> to vector<9x8x8xf32>
    %695 = vector.extract_strided_slice %687 {offsets = [7, 0, 0], sizes = [9, 8, 8], strides = [1, 1, 1]} : vector<16x8x8xf32> to vector<9x8x8xf32>
    %696 = tpu.concatenate %688, %689, %690, %691, %692, %693, %694, %695 in 2 : vector<9x8x8xf32>, vector<9x8x8xf32>, vector<9x8x8xf32>, vector<9x8x8xf32>, vector<9x8x8xf32>, vector<9x8x8xf32>, vector<9x8x8xf32>, vector<9x8x8xf32> -> vector<9x8x64xf32>
    %697 = vector.shape_cast %696 : vector<9x8x64xf32> to vector<72x64xf32>
    %698 = arith.truncf %697 : vector<72x64xf32> to vector<72x64xbf16>
    %c0_209 = arith.constant 0 : index
    %c0_210 = arith.constant 0 : index
    %699 = vector.load %arg7[%c0_209, %c0_210] : memref<64x16xbf16, #tpu.memory_space<vmem>>, vector<64x16xbf16>
    %cst_211 = arith.constant dense<0.000000e+00> : vector<72x16xf32>
    %700 = tpu.matmul %698, %699, %cst_211 {dimension_numbers = #tpu.dot_dimension_numbers<[1], [0], [0], [1], [0, 0, 1, 1], [], []>} : vector<72x64xbf16>, vector<64x16xbf16>, vector<72x16xf32> -> vector<72x16xf32>
    %701 = vector.broadcast %686 : vector<1x16xf32> to vector<72x16xf32>
    %702 = arith.addf %700, %701 : vector<72x16xf32>
    %cst_212 = arith.constant 0.000000e+00 : f32
    %703 = vector.broadcast %cst_212 : f32 to vector<72x16xf32>
    %704 = arith.maximumf %702, %703 : vector<72x16xf32>
    %705 = vector.shape_cast %704 : vector<72x16xf32> to vector<9x8x16xf32>
    %cst_213 = arith.constant dense<0.000000e+00> : vector<8x16xf32>
    %706 = vector.multi_reduction <add>, %705, %cst_213 [0] : vector<9x8x16xf32> to vector<8x16xf32>
    %cst_214 = arith.constant 0.111111112 : f32
    %707 = vector.broadcast %cst_214 : f32 to vector<8x16xf32>
    %708 = arith.mulf %706, %707 : vector<8x16xf32>
    %c0_215 = arith.constant 0 : index
    %c0_216 = arith.constant 0 : index
    %709 = vector.load %arg13[%c0_215, %c0_216] : memref<1x16xf32, #tpu.memory_space<vmem>>, vector<1x16xf32>
    %c0_217 = arith.constant 0 : index
    %c0_218 = arith.constant 0 : index
    %710 = vector.load %arg14[%c0_217, %c0_218] : memref<1x16xf32, #tpu.memory_space<vmem>>, vector<1x16xf32>
    %cst_219 = arith.constant 0.000000e+00 : f32
    %711 = vector.broadcast %cst_219 : f32 to vector<8x16xf32>
    %712 = vector.broadcast %709 : vector<1x16xf32> to vector<8x16xf32>
    %713 = arith.mulf %708, %712 : vector<8x16xf32>
    %cst_220 = arith.constant dense<0.000000e+00> : vector<8xf32>
    %714 = vector.multi_reduction <add>, %713, %cst_220 [1] : vector<8x16xf32> to vector<8xf32>
    %715 = vector.shape_cast %714 : vector<8xf32> to vector<8x1xf32>
    %cst_221 = arith.constant 0.000000e+00 : f32
    %716 = vector.broadcast %cst_221 : f32 to vector<8x1xf32>
    %717 = arith.maximumf %715, %716 : vector<8x1xf32>
    %718 = vector.broadcast %717 : vector<8x1xf32> to vector<8x16xf32>
    %719 = vector.broadcast %710 : vector<1x16xf32> to vector<8x16xf32>
    %720 = arith.mulf %718, %719 : vector<8x16xf32>
    %721 = arith.addf %711, %720 : vector<8x16xf32>
    %cst_222 = arith.constant 5.000000e-01 : f32
    %722 = vector.broadcast %cst_222 : f32 to vector<8x16xf32>
    %723 = arith.mulf %722, %721 : vector<8x16xf32>
    %724 = math.tanh %723 : vector<8x16xf32>
    %cst_223 = arith.constant 5.000000e-01 : f32
    %725 = vector.broadcast %cst_223 : f32 to vector<8x16xf32>
    %726 = arith.mulf %725, %724 : vector<8x16xf32>
    %cst_224 = arith.constant 5.000000e-01 : f32
    %727 = vector.broadcast %cst_224 : f32 to vector<8x16xf32>
    %728 = arith.addf %726, %727 : vector<8x16xf32>
    %729 = vector.shape_cast %728 : vector<8x16xf32> to vector<1x8x16xf32>
    %730 = vector.broadcast %729 : vector<1x8x16xf32> to vector<9x8x16xf32>
    %731 = arith.mulf %705, %730 : vector<9x8x16xf32>
    %c0_225 = arith.constant 0 : index
    %c0_226 = arith.constant 0 : index
    %732 = vector.load %arg10[%c0_225, %c0_226] : memref<1x32xf32, #tpu.memory_space<vmem>>, vector<1x32xf32>
    %733 = vector.extract_strided_slice %731 {offsets = [0, 0, 0], sizes = [5, 8, 16], strides = [1, 1, 1]} : vector<9x8x16xf32> to vector<5x8x16xf32>
    %734 = vector.extract_strided_slice %731 {offsets = [1, 0, 0], sizes = [5, 8, 16], strides = [1, 1, 1]} : vector<9x8x16xf32> to vector<5x8x16xf32>
    %735 = vector.extract_strided_slice %731 {offsets = [2, 0, 0], sizes = [5, 8, 16], strides = [1, 1, 1]} : vector<9x8x16xf32> to vector<5x8x16xf32>
    %736 = vector.extract_strided_slice %731 {offsets = [3, 0, 0], sizes = [5, 8, 16], strides = [1, 1, 1]} : vector<9x8x16xf32> to vector<5x8x16xf32>
    %737 = vector.extract_strided_slice %731 {offsets = [4, 0, 0], sizes = [5, 8, 16], strides = [1, 1, 1]} : vector<9x8x16xf32> to vector<5x8x16xf32>
    %738 = tpu.concatenate %733, %734, %735, %736, %737 in 2 : vector<5x8x16xf32>, vector<5x8x16xf32>, vector<5x8x16xf32>, vector<5x8x16xf32>, vector<5x8x16xf32> -> vector<5x8x80xf32>
    %739 = vector.shape_cast %738 : vector<5x8x80xf32> to vector<40x80xf32>
    %740 = arith.truncf %739 : vector<40x80xf32> to vector<40x80xbf16>
    %c0_227 = arith.constant 0 : index
    %c0_228 = arith.constant 0 : index
    %741 = vector.load %arg9[%c0_227, %c0_228] : memref<80x32xbf16, #tpu.memory_space<vmem>>, vector<80x32xbf16>
    %cst_229 = arith.constant dense<0.000000e+00> : vector<40x32xf32>
    %742 = tpu.matmul %740, %741, %cst_229 {dimension_numbers = #tpu.dot_dimension_numbers<[1], [0], [0], [1], [0, 0, 1, 1], [], []>} : vector<40x80xbf16>, vector<80x32xbf16>, vector<40x32xf32> -> vector<40x32xf32>
    %743 = vector.broadcast %732 : vector<1x32xf32> to vector<40x32xf32>
    %744 = arith.addf %742, %743 : vector<40x32xf32>
    %cst_230 = arith.constant 0.000000e+00 : f32
    %745 = vector.broadcast %cst_230 : f32 to vector<40x32xf32>
    %746 = arith.maximumf %744, %745 : vector<40x32xf32>
    %747 = vector.shape_cast %746 : vector<40x32xf32> to vector<5x8x32xf32>
    %cst_231 = arith.constant dense<0.000000e+00> : vector<8x32xf32>
    %748 = vector.multi_reduction <add>, %747, %cst_231 [0] : vector<5x8x32xf32> to vector<8x32xf32>
    %cst_232 = arith.constant 2.000000e-01 : f32
    %749 = vector.broadcast %cst_232 : f32 to vector<8x32xf32>
    %750 = arith.mulf %748, %749 : vector<8x32xf32>
    %c0_233 = arith.constant 0 : index
    %c0_234 = arith.constant 0 : index
    %751 = vector.load %arg15[%c0_233, %c0_234] : memref<2x32xf32, #tpu.memory_space<vmem>>, vector<2x32xf32>
    %c0_235 = arith.constant 0 : index
    %c0_236 = arith.constant 0 : index
    %752 = vector.load %arg16[%c0_235, %c0_236] : memref<2x32xf32, #tpu.memory_space<vmem>>, vector<2x32xf32>
    %cst_237 = arith.constant 0.000000e+00 : f32
    %753 = vector.broadcast %cst_237 : f32 to vector<8x32xf32>
    %754 = vector.extract_strided_slice %751 {offsets = [0, 0], sizes = [1, 32], strides = [1, 1]} : vector<2x32xf32> to vector<1x32xf32>
    %755 = vector.broadcast %754 : vector<1x32xf32> to vector<8x32xf32>
    %756 = arith.mulf %750, %755 : vector<8x32xf32>
    %cst_238 = arith.constant dense<0.000000e+00> : vector<8xf32>
    %757 = vector.multi_reduction <add>, %756, %cst_238 [1] : vector<8x32xf32> to vector<8xf32>
    %758 = vector.shape_cast %757 : vector<8xf32> to vector<8x1xf32>
    %cst_239 = arith.constant 0.000000e+00 : f32
    %759 = vector.broadcast %cst_239 : f32 to vector<8x1xf32>
    %760 = arith.maximumf %758, %759 : vector<8x1xf32>
    %761 = vector.extract_strided_slice %752 {offsets = [0, 0], sizes = [1, 32], strides = [1, 1]} : vector<2x32xf32> to vector<1x32xf32>
    %762 = vector.broadcast %760 : vector<8x1xf32> to vector<8x32xf32>
    %763 = vector.broadcast %761 : vector<1x32xf32> to vector<8x32xf32>
    %764 = arith.mulf %762, %763 : vector<8x32xf32>
    %765 = arith.addf %753, %764 : vector<8x32xf32>
    %766 = vector.extract_strided_slice %751 {offsets = [1, 0], sizes = [1, 32], strides = [1, 1]} : vector<2x32xf32> to vector<1x32xf32>
    %767 = vector.broadcast %766 : vector<1x32xf32> to vector<8x32xf32>
    %768 = arith.mulf %750, %767 : vector<8x32xf32>
    %cst_240 = arith.constant dense<0.000000e+00> : vector<8xf32>
    %769 = vector.multi_reduction <add>, %768, %cst_240 [1] : vector<8x32xf32> to vector<8xf32>
    %770 = vector.shape_cast %769 : vector<8xf32> to vector<8x1xf32>
    %cst_241 = arith.constant 0.000000e+00 : f32
    %771 = vector.broadcast %cst_241 : f32 to vector<8x1xf32>
    %772 = arith.maximumf %770, %771 : vector<8x1xf32>
    %773 = vector.extract_strided_slice %752 {offsets = [1, 0], sizes = [1, 32], strides = [1, 1]} : vector<2x32xf32> to vector<1x32xf32>
    %774 = vector.broadcast %772 : vector<8x1xf32> to vector<8x32xf32>
    %775 = vector.broadcast %773 : vector<1x32xf32> to vector<8x32xf32>
    %776 = arith.mulf %774, %775 : vector<8x32xf32>
    %777 = arith.addf %765, %776 : vector<8x32xf32>
    %cst_242 = arith.constant 5.000000e-01 : f32
    %778 = vector.broadcast %cst_242 : f32 to vector<8x32xf32>
    %779 = arith.mulf %778, %777 : vector<8x32xf32>
    %780 = math.tanh %779 : vector<8x32xf32>
    %cst_243 = arith.constant 5.000000e-01 : f32
    %781 = vector.broadcast %cst_243 : f32 to vector<8x32xf32>
    %782 = arith.mulf %781, %780 : vector<8x32xf32>
    %cst_244 = arith.constant 5.000000e-01 : f32
    %783 = vector.broadcast %cst_244 : f32 to vector<8x32xf32>
    %784 = arith.addf %782, %783 : vector<8x32xf32>
    %785 = vector.shape_cast %784 : vector<8x32xf32> to vector<1x8x32xf32>
    %786 = vector.broadcast %785 : vector<1x8x32xf32> to vector<5x8x32xf32>
    %787 = arith.mulf %747, %786 : vector<5x8x32xf32>
    %c0_245 = arith.constant 0 : index
    %c0_246 = arith.constant 0 : index
    %788 = vector.load %arg12[%c0_245, %c0_246] : memref<1x16xf32, #tpu.memory_space<vmem>>, vector<1x16xf32>
    %789 = vector.extract_strided_slice %787 {offsets = [0, 0, 0], sizes = [3, 8, 32], strides = [1, 1, 1]} : vector<5x8x32xf32> to vector<3x8x32xf32>
    %790 = vector.extract_strided_slice %787 {offsets = [1, 0, 0], sizes = [3, 8, 32], strides = [1, 1, 1]} : vector<5x8x32xf32> to vector<3x8x32xf32>
    %791 = vector.extract_strided_slice %787 {offsets = [2, 0, 0], sizes = [3, 8, 32], strides = [1, 1, 1]} : vector<5x8x32xf32> to vector<3x8x32xf32>
    %792 = tpu.concatenate %789, %790, %791 in 2 : vector<3x8x32xf32>, vector<3x8x32xf32>, vector<3x8x32xf32> -> vector<3x8x96xf32>
    %793 = vector.shape_cast %792 : vector<3x8x96xf32> to vector<24x96xf32>
    %794 = arith.truncf %793 : vector<24x96xf32> to vector<24x96xbf16>
    %c0_247 = arith.constant 0 : index
    %c0_248 = arith.constant 0 : index
    %795 = vector.load %arg11[%c0_247, %c0_248] : memref<96x16xbf16, #tpu.memory_space<vmem>>, vector<96x16xbf16>
    %cst_249 = arith.constant dense<0.000000e+00> : vector<24x16xf32>
    %796 = tpu.matmul %794, %795, %cst_249 {dimension_numbers = #tpu.dot_dimension_numbers<[1], [0], [0], [1], [0, 0, 1, 1], [], []>} : vector<24x96xbf16>, vector<96x16xbf16>, vector<24x16xf32> -> vector<24x16xf32>
    %797 = vector.broadcast %788 : vector<1x16xf32> to vector<24x16xf32>
    %798 = arith.addf %796, %797 : vector<24x16xf32>
    %cst_250 = arith.constant 0.000000e+00 : f32
    %799 = vector.broadcast %cst_250 : f32 to vector<24x16xf32>
    %800 = arith.maximumf %798, %799 : vector<24x16xf32>
    %801 = vector.shape_cast %800 : vector<24x16xf32> to vector<3x8x16xf32>
    %cst_251 = arith.constant dense<0.000000e+00> : vector<8x16xf32>
    %802 = vector.multi_reduction <add>, %801, %cst_251 [0] : vector<3x8x16xf32> to vector<8x16xf32>
    %cst_252 = arith.constant 0.333333343 : f32
    %803 = vector.broadcast %cst_252 : f32 to vector<8x16xf32>
    %804 = arith.mulf %802, %803 : vector<8x16xf32>
    %805 = tpu.concatenate %685, %804 in 1 : vector<8x32xf32>, vector<8x16xf32> -> vector<8x48xf32>
    %806 = arith.truncf %805 : vector<8x48xf32> to vector<8x48xbf16>
    %c0_253 = arith.constant 0 : index
    %c0_254 = arith.constant 0 : index
    %807 = vector.load %arg17[%c0_253, %c0_254] : memref<48x128xbf16, #tpu.memory_space<vmem>>, vector<48x128xbf16>
    %cst_255 = arith.constant dense<0.000000e+00> : vector<8x128xf32>
    %808 = tpu.matmul %806, %807, %cst_255 {dimension_numbers = #tpu.dot_dimension_numbers<[1], [0], [0], [1], [0, 0, 1, 1], [], []>} : vector<8x48xbf16>, vector<48x128xbf16>, vector<8x128xf32> -> vector<8x128xf32>
    %c0_256 = arith.constant 0 : index
    %c0_257 = arith.constant 0 : index
    %809 = vector.load %arg18[%c0_256, %c0_257] : memref<1x128xf32, #tpu.memory_space<vmem>>, vector<1x128xf32>
    %810 = vector.broadcast %809 : vector<1x128xf32> to vector<8x128xf32>
    %811 = arith.addf %808, %810 : vector<8x128xf32>
    %c0_258 = arith.constant 0 : index
    %c0_259 = arith.constant 0 : index
    %812 = vector.load %arg19[%c0_258, %c0_259] : memref<8x128xf32, #tpu.memory_space<vmem>>, vector<8x128xf32>
    tpu.vector_store %arg19[%c0_258, %c0_259], %811 {strides = array<i32>} : memref<8x128xf32, #tpu.memory_space<vmem>>, vector<8x128xf32>,
    return
  }
  func.func @transform_0(%arg0: i32, %arg1: memref<1xi32, #tpu.memory_space<smem>>) -> (i32, i32, i32) {
    %c0_i32 = arith.constant 0 : i32
    %c0_i32_0 = arith.constant 0 : i32
    %c0_i32_1 = arith.constant 0 : i32
    return %c0_i32, %arg0, %c0_i32_0 : i32, i32, i32
  }
  func.func @transform_1(%arg0: i32, %arg1: memref<1xi32, #tpu.memory_space<smem>>) -> (i32, i32) {
    %c0_i32 = arith.constant 0 : i32
    %c0_i32_0 = arith.constant 0 : i32
    return %arg0, %c0_i32 : i32, i32
  }
  func.func @transform_2(%arg0: i32, %arg1: memref<1xi32, #tpu.memory_space<smem>>) -> (i32, i32) {
    %c0_i32 = arith.constant 0 : i32
    %c0_i32_0 = arith.constant 0 : i32
    %c0_i32_1 = arith.constant 0 : i32
    return %c0_i32, %c0_i32_0 : i32, i32
  }
  func.func @transform_3(%arg0: i32, %arg1: memref<1xi32, #tpu.memory_space<smem>>) -> (i32, i32) {
    %c0_i32 = arith.constant 0 : i32
    %c0_i32_0 = arith.constant 0 : i32
    %c0_i32_1 = arith.constant 0 : i32
    return %c0_i32, %c0_i32_0 : i32, i32
  }
  func.func @transform_4(%arg0: i32, %arg1: memref<1xi32, #tpu.memory_space<smem>>) -> (i32, i32) {
    %c0_i32 = arith.constant 0 : i32
    %c0_i32_0 = arith.constant 0 : i32
    %c0_i32_1 = arith.constant 0 : i32
    return %c0_i32, %c0_i32_0 : i32, i32
  }
  func.func @transform_5(%arg0: i32, %arg1: memref<1xi32, #tpu.memory_space<smem>>) -> (i32, i32) {
    %c0_i32 = arith.constant 0 : i32
    %c0_i32_0 = arith.constant 0 : i32
    %c0_i32_1 = arith.constant 0 : i32
    return %c0_i32, %c0_i32_0 : i32, i32
  }
  func.func @transform_6(%arg0: i32, %arg1: memref<1xi32, #tpu.memory_space<smem>>) -> (i32, i32) {
    %c0_i32 = arith.constant 0 : i32
    %c0_i32_0 = arith.constant 0 : i32
    %c0_i32_1 = arith.constant 0 : i32
    return %c0_i32, %c0_i32_0 : i32, i32
  }
  func.func @transform_7(%arg0: i32, %arg1: memref<1xi32, #tpu.memory_space<smem>>) -> (i32, i32) {
    %c0_i32 = arith.constant 0 : i32
    %c0_i32_0 = arith.constant 0 : i32
    %c0_i32_1 = arith.constant 0 : i32
    return %c0_i32, %c0_i32_0 : i32, i32
  }
  func.func @transform_8(%arg0: i32, %arg1: memref<1xi32, #tpu.memory_space<smem>>) -> (i32, i32) {
    %c0_i32 = arith.constant 0 : i32
    %c0_i32_0 = arith.constant 0 : i32
    %c0_i32_1 = arith.constant 0 : i32
    return %c0_i32, %c0_i32_0 : i32, i32
  }
  func.func @transform_9(%arg0: i32, %arg1: memref<1xi32, #tpu.memory_space<smem>>) -> (i32, i32) {
    %c0_i32 = arith.constant 0 : i32
    %c0_i32_0 = arith.constant 0 : i32
    %c0_i32_1 = arith.constant 0 : i32
    return %c0_i32, %c0_i32_0 : i32, i32
  }
  func.func @transform_10(%arg0: i32, %arg1: memref<1xi32, #tpu.memory_space<smem>>) -> (i32, i32) {
    %c0_i32 = arith.constant 0 : i32
    %c0_i32_0 = arith.constant 0 : i32
    %c0_i32_1 = arith.constant 0 : i32
    return %c0_i32, %c0_i32_0 : i32, i32
  }
  func.func @transform_11(%arg0: i32, %arg1: memref<1xi32, #tpu.memory_space<smem>>) -> (i32, i32) {
    %c0_i32 = arith.constant 0 : i32
    %c0_i32_0 = arith.constant 0 : i32
    %c0_i32_1 = arith.constant 0 : i32
    return %c0_i32, %c0_i32_0 : i32, i32
  }
  func.func @transform_12(%arg0: i32, %arg1: memref<1xi32, #tpu.memory_space<smem>>) -> (i32, i32) {
    %c0_i32 = arith.constant 0 : i32
    %c0_i32_0 = arith.constant 0 : i32
    %c0_i32_1 = arith.constant 0 : i32
    return %c0_i32, %c0_i32_0 : i32, i32
  }
  func.func @transform_13(%arg0: i32, %arg1: memref<1xi32, #tpu.memory_space<smem>>) -> (i32, i32) {
    %c0_i32 = arith.constant 0 : i32
    %c0_i32_0 = arith.constant 0 : i32
    %c0_i32_1 = arith.constant 0 : i32
    return %c0_i32, %c0_i32_0 : i32, i32
  }
  func.func @transform_14(%arg0: i32, %arg1: memref<1xi32, #tpu.memory_space<smem>>) -> (i32, i32) {
    %c0_i32 = arith.constant 0 : i32
    %c0_i32_0 = arith.constant 0 : i32
    %c0_i32_1 = arith.constant 0 : i32
    return %c0_i32, %c0_i32_0 : i32, i32
  }
  func.func @transform_15(%arg0: i32, %arg1: memref<1xi32, #tpu.memory_space<smem>>) -> (i32, i32) {
    %c0_i32 = arith.constant 0 : i32
    %c0_i32_0 = arith.constant 0 : i32
    %c0_i32_1 = arith.constant 0 : i32
    return %c0_i32, %c0_i32_0 : i32, i32
  }
  func.func @transform_16(%arg0: i32, %arg1: memref<1xi32, #tpu.memory_space<smem>>) -> (i32, i32) {
    %c0_i32 = arith.constant 0 : i32
    %c0_i32_0 = arith.constant 0 : i32
    %c0_i32_1 = arith.constant 0 : i32
    return %c0_i32, %c0_i32_0 : i32, i32
  }
  func.func @transform_17(%arg0: i32, %arg1: memref<1xi32, #tpu.memory_space<smem>>) -> (i32, i32) {
    %c0_i32 = arith.constant 0 : i32
    %c0_i32_0 = arith.constant 0 : i32
    return %arg0, %c0_i32 : i32, i32
  }
}

</mosaic_0001>

<llo_original>
// kernel: tpu_custom_call.1
$region0: #{tpu_custom_call.1}
  #allocation0 [shape = 'u32[]', space=smem, size = 0x4, offset = 0x4, fixed_abs, tag = 'smem constant byte address 0x4 - core index']
  #allocation1 [shape = 'u32[144,128]{1,0:T(1,128)}', space=vmem, size = 0x12000, scoped, tag = 'internal scratch']
  #allocation2 [shape = 'bf16[16,8,128]{2,1,0:T(8,128)(2,1)}', space=vmem, size = 0x8000, scoped, tag = 'scratch operand']
  #allocation3 [shape = 's32[1]{0}', space=sflag, size = 0x4, scoped, tag = 'scoped memory for tpu_custom_call.1']
  #allocation4 [shape = 's32[1]{0:T(128)S(6)}', space=smem, size = 0x200, scoped, tag = 'prefetched SMEM operand 0']
  %s0 = inlined_call_operand.<no memory space> [shape: s32[1], index: 0, kind: input, shape index: {}]
  %s1 = inlined_call_operand.hbm [shape: bf16[16,8,8], index: 1, kind: input, shape index: {}]
  %s2 = inlined_call_operand.hbm [shape: f32[8,1], index: 2, kind: input, shape index: {}]
  %s3 = inlined_call_operand.hbm [shape: bf16[8,128], index: 3, kind: input, shape index: {}]
  %s4 = inlined_call_operand.hbm [shape: f32[32,128], index: 4, kind: input, shape index: {}]
  %s5 = inlined_call_operand.hbm [shape: f32[1,128], index: 5, kind: input, shape index: {}]
  %s6 = inlined_call_operand.hbm [shape: bf16[64,16], index: 6, kind: input, shape index: {}]
  %s7 = inlined_call_operand.hbm [shape: f32[1,16], index: 7, kind: input, shape index: {}]
  %s8 = inlined_call_operand.hbm [shape: bf16[80,32], index: 8, kind: input, shape index: {}]
  %s9 = inlined_call_operand.hbm [shape: f32[1,32], index: 9, kind: input, shape index: {}]
  %s10 = inlined_call_operand.hbm [shape: bf16[96,16], index: 10, kind: input, shape index: {}]
  %s11 = inlined_call_operand.hbm [shape: f32[1,16], index: 11, kind: input, shape index: {}]
  %s12 = inlined_call_operand.hbm [shape: f32[1,16], index: 12, kind: input, shape index: {}]
  %s13 = inlined_call_operand.hbm [shape: f32[1,16], index: 13, kind: input, shape index: {}]
  %s14 = inlined_call_operand.hbm [shape: f32[2,32], index: 14, kind: input, shape index: {}]
  %s15 = inlined_call_operand.hbm [shape: f32[2,32], index: 15, kind: input, shape index: {}]
  %s16 = inlined_call_operand.hbm [shape: bf16[48,128], index: 16, kind: input, shape index: {}]
  %s17 = inlined_call_operand.hbm [shape: f32[1,128], index: 17, kind: input, shape index: {}]
  %s18 = inlined_call_operand.hbm [shape: f32[8,128], index: 18, kind: output, shape index: {}]
  %s19 = sld [smem:[#allocation0]]
  $region146: #{tpu_custom_call.1} parent=0
    _
  %s21 = ssub.s32 1, %s19
  %s22 = scalar_select 0, %s21, %s19
  %23 = sst [smem:[#allocation4]] %s0
  $region1: #{tpu_custom_call.1} parent=0
    #allocation5 [shape = 'u8[32768]{0}', space=vmem, size = 0x8000, scoped, tag = 'input window, operand 1, single buffered']
    #allocation6 [shape = 's32[1]{0}', space=sflag, size = 0x4, scoped, tag = 'scoped memory for tpu_custom_call.1']
    #allocation7 [shape = 's32[1]{0}', space=sflag, size = 0x4, scoped, tag = 'scoped memory for tpu_custom_call.1']
    #allocation8 [shape = 'u8[4096]{0}', space=vmem, size = 0x1000, scoped, tag = 'input window, operand 2, single buffered']
    #allocation9 [shape = 's32[1]{0}', space=sflag, size = 0x4, scoped, tag = 'scoped memory for tpu_custom_call.1']
    #allocation10 [shape = 'u8[2048]{0}', space=vmem, size = 0x800, scoped, tag = 'input window, operand 3, single buffered']
    #allocation11 [shape = 'u8[16384]{0}', space=vmem, size = 0x4000, scoped, tag = 'input window, operand 4, single buffered']
    #allocation12 [shape = 's32[1]{0}', space=sflag, size = 0x4, scoped, tag = 'scoped memory for tpu_custom_call.1']
    #allocation13 [shape = 'u8[512]{0}', space=vmem, size = 0x400, scoped, tag = 'input window, operand 5, single buffered']
    #allocation14 [shape = 'u8[16384]{0}', space=vmem, size = 0x4000, scoped, tag = 'input window, operand 6, single buffered']
    #allocation15 [shape = 's32[1]{0}', space=sflag, size = 0x4, scoped, tag = 'scoped memory for tpu_custom_call.1']
    #allocation16 [shape = 'u8[512]{0}', space=vmem, size = 0x400, scoped, tag = 'input window, operand 7, single buffered']
    #allocation17 [shape = 'u8[20480]{0}', space=vmem, size = 0x5000, scoped, tag = 'input window, operand 8, single buffered']
    #allocation18 [shape = 's32[1]{0}', space=sflag, size = 0x4, scoped, tag = 'scoped memory for tpu_custom_call.1']
    #allocation19 [shape = 'u8[512]{0}', space=vmem, size = 0x400, scoped, tag = 'input window, operand 9, single buffered']
    #allocation20 [shape = 'u8[24576]{0}', space=vmem, size = 0x6000, scoped, tag = 'input window, operand 10, single buffered']
    #allocation21 [shape = 's32[1]{0}', space=sflag, size = 0x4, scoped, tag = 'scoped memory for tpu_custom_call.1']
    #allocation22 [shape = 'u8[512]{0}', space=vmem, size = 0x400, scoped, tag = 'input window, operand 11, single buffered']
    #allocation23 [shape = 'u8[512]{0}', space=vmem, size = 0x400, scoped, tag = 'input window, operand 12, single buffered']
    #allocation24 [shape = 's32[1]{0}', space=sflag, size = 0x4, scoped, tag = 'scoped memory for tpu_custom_call.1']
    #allocation25 [shape = 'u8[512]{0}', space=vmem, size = 0x400, scoped, tag = 'input window, operand 13, single buffered']
    #allocation26 [shape = 'u8[1024]{0}', space=vmem, size = 0x400, scoped, tag = 'input window, operand 14, single buffered']
    #allocation27 [shape = 's32[1]{0}', space=sflag, size = 0x4, scoped, tag = 'scoped memory for tpu_custom_call.1']
    #allocation28 [shape = 'u8[1024]{0}', space=vmem, size = 0x400, scoped, tag = 'input window, operand 15, single buffered']
    #allocation29 [shape = 'u8[12288]{0}', space=vmem, size = 0x3000, scoped, tag = 'input window, operand 16, single buffered']
    #allocation30 [shape = 's32[1]{0}', space=sflag, size = 0x4, scoped, tag = 'scoped memory for tpu_custom_call.1']
    #allocation31 [shape = 'u8[512]{0}', space=vmem, size = 0x400, scoped, tag = 'input window, operand 17, single buffered']
    #allocation32 [shape = 'u8[4096]{0}', space=vmem, size = 0x1000, scoped, tag = 'output window, operand 0, single buffered']
    %24 = vsyncpa [#allocation6], 0
    %25 = vsyncpa [#allocation9], 0
    %26 = vsyncpa [#allocation12], 0
    %27 = vsyncpa [#allocation15], 0
    %28 = vsyncpa [#allocation18], 0
    %29 = vsyncpa [#allocation21], 0
    %30 = vsyncpa [#allocation24], 0
    %31 = vsyncpa [#allocation27], 0
    %32 = vsyncpa [#allocation30], 0
    %33 = vsyncpa [#allocation7], 0
    // Predicated region
    $region2: #{tpu_custom_call.1} parent=1 // pred_check
      _
    $region3: #{tpu_custom_call.1} parent=1 // pred_check_branch
      %35 = sbr.rel (0) target = $region5
    $region4: #{tpu_custom_call.1} parent=1 // pred_region
      %s37 = ssub.s32 1024, 1024
      %38 = vsyncadd [#allocation6], %s37
      %s39 = sshll.u32 [#allocation5], 4
      %s40 = int_to_ptr.vmem [resolvable:$true] %s39
      %45 = dma.hbm_to_vmem [thread:$0]  %s1, 1024, %s40, [#allocation6], 64, 64, 4
    $region5: #{tpu_custom_call.1} parent=1 // pred_fallthru
      _
    // Predicated region
    $region6: #{tpu_custom_call.1} parent=1 // pred_check
      _
    $region7: #{tpu_custom_call.1} parent=1 // pred_check_branch
      %47 = sbr.rel (0) target = $region9
    $region8: #{tpu_custom_call.1} parent=1 // pred_region
      %s49 = ssub.s32 128, 128
      %50 = vsyncadd [#allocation9], %s49
      %s52 = sshll.u32 [#allocation8], 4
      %s53 = int_to_ptr.vmem [resolvable:$true] %s52
      %55 = dma.hbm_to_vmem [thread:$0]  %s2, 128, %s53, [#allocation9]
    $region9: #{tpu_custom_call.1} parent=1 // pred_fallthru
      _
    // Predicated region
    $region10: #{tpu_custom_call.1} parent=1 // pred_check
      _
    $region11: #{tpu_custom_call.1} parent=1 // pred_check_branch
      %57 = sbr.rel (0) target = $region13
    $region12: #{tpu_custom_call.1} parent=1 // pred_region
      %s59 = ssub.s32 64, 64
      %60 = vsyncadd [#allocation9], %s59
      %s62 = sshll.u32 [#allocation10], 4
      %s63 = int_to_ptr.vmem [resolvable:$true] %s62
      %65 = dma.hbm_to_vmem [thread:$0]  %s3, 64, %s63, [#allocation9]
    $region13: #{tpu_custom_call.1} parent=1 // pred_fallthru
      _
    // Predicated region
    $region14: #{tpu_custom_call.1} parent=1 // pred_check
      _
    $region15: #{tpu_custom_call.1} parent=1 // pred_check_branch
      %67 = sbr.rel (0) target = $region17
    $region16: #{tpu_custom_call.1} parent=1 // pred_region
      %s69 = ssub.s32 512, 512
      %70 = vsyncadd [#allocation12], %s69
      %s71 = sshll.u32 [#allocation11], 4
      %s72 = int_to_ptr.vmem [resolvable:$true] %s71
      %77 = dma.hbm_to_vmem [thread:$0]  %s4, 512, %s72, [#allocation12], 128, 128, 8
    $region17: #{tpu_custom_call.1} parent=1 // pred_fallthru
      _
    // Predicated region
    $region18: #{tpu_custom_call.1} parent=1 // pred_check
      _
    $region19: #{tpu_custom_call.1} parent=1 // pred_check_branch
      %79 = sbr.rel (0) target = $region21
    $region20: #{tpu_custom_call.1} parent=1 // pred_region
      %s81 = ssub.s32 16, 16
      %82 = vsyncadd [#allocation12], %s81
      %s84 = sshll.u32 [#allocation13], 4
      %s85 = int_to_ptr.vmem [resolvable:$true] %s84
      %87 = dma.hbm_to_vmem [thread:$0]  %s5, 16, %s85, [#allocation12]
    $region21: #{tpu_custom_call.1} parent=1 // pred_fallthru
      _
    // Predicated region
    $region22: #{tpu_custom_call.1} parent=1 // pred_check
      _
    $region23: #{tpu_custom_call.1} parent=1 // pred_check_branch
      %89 = sbr.rel (0) target = $region25
    $region24: #{tpu_custom_call.1} parent=1 // pred_region
      %s91 = ssub.s32 512, 512
      %92 = vsyncadd [#allocation15], %s91
      %s93 = sshll.u32 [#allocation14], 4
      %s94 = int_to_ptr.vmem [resolvable:$true] %s93
      %99 = dma.hbm_to_vmem [thread:$0]  %s6, 512, %s94, [#allocation15], 64, 64, 4
    $region25: #{tpu_custom_call.1} parent=1 // pred_fallthru
      _
    // Predicated region
    $region26: #{tpu_custom_call.1} parent=1 // pred_check
      _
    $region27: #{tpu_custom_call.1} parent=1 // pred_check_branch
      %101 = sbr.rel (0) target = $region29
    $region28: #{tpu_custom_call.1} parent=1 // pred_region
      %s103 = ssub.s32 16, 16
      %104 = vsyncadd [#allocation15], %s103
      %s106 = sshll.u32 [#allocation16], 4
      %s107 = int_to_ptr.vmem [resolvable:$true] %s106
      %109 = dma.hbm_to_vmem [thread:$0]  %s7, 16, %s107, [#allocation15]
    $region29: #{tpu_custom_call.1} parent=1 // pred_fallthru
      _
    // Predicated region
    $region30: #{tpu_custom_call.1} parent=1 // pred_check
      _
    $region31: #{tpu_custom_call.1} parent=1 // pred_check_branch
      %111 = sbr.rel (0) target = $region33
    $region32: #{tpu_custom_call.1} parent=1 // pred_region
      %s113 = ssub.s32 640, 640
      %114 = vsyncadd [#allocation18], %s113
      %s115 = sshll.u32 [#allocation17], 4
      %s116 = int_to_ptr.vmem [resolvable:$true] %s115
      %121 = dma.hbm_to_vmem [thread:$0]  %s8, 640, %s116, [#allocation18], 64, 64, 4
    $region33: #{tpu_custom_call.1} parent=1 // pred_fallthru
      _
    // Predicated region
    $region34: #{tpu_custom_call.1} parent=1 // pred_check
      _
    $region35: #{tpu_custom_call.1} parent=1 // pred_check_branch
      %123 = sbr.rel (0) target = $region37
    $region36: #{tpu_custom_call.1} parent=1 // pred_region
      %s125 = ssub.s32 16, 16
      %126 = vsyncadd [#allocation18], %s125
      %s128 = sshll.u32 [#allocation19], 4
      %s129 = int_to_ptr.vmem [resolvable:$true] %s128
      %131 = dma.hbm_to_vmem [thread:$0]  %s9, 16, %s129, [#allocation18]
    $region37: #{tpu_custom_call.1} parent=1 // pred_fallthru
      _
    // Predicated region
    $region38: #{tpu_custom_call.1} parent=1 // pred_check
      _
    $region39: #{tpu_custom_call.1} parent=1 // pred_check_branch
      %133 = sbr.rel (0) target = $region41
    $region40: #{tpu_custom_call.1} parent=1 // pred_region
      %s135 = ssub.s32 768, 768
      %136 = vsyncadd [#allocation21], %s135
      %s137 = sshll.u32 [#allocation20], 4
      %s138 = int_to_ptr.vmem [resolvable:$true] %s137
      %143 = dma.hbm_to_vmem [thread:$0]  %s10, 768, %s138, [#allocation21], 64, 64, 4
    $region41: #{tpu_custom_call.1} parent=1 // pred_fallthru
      _
    // Predicated region
    $region42: #{tpu_custom_call.1} parent=1 // pred_check
      _
    $region43: #{tpu_custom_call.1} parent=1 // pred_check_branch
      %145 = sbr.rel (0) target = $region45
    $region44: #{tpu_custom_call.1} parent=1 // pred_region
      %s147 = ssub.s32 16, 16
      %148 = vsyncadd [#allocation21], %s147
      %s150 = sshll.u32 [#allocation22], 4
      %s151 = int_to_ptr.vmem [resolvable:$true] %s150
      %153 = dma.hbm_to_vmem [thread:$0]  %s11, 16, %s151, [#allocation21]
    $region45: #{tpu_custom_call.1} parent=1 // pred_fallthru
      _
    // Predicated region
    $region46: #{tpu_custom_call.1} parent=1 // pred_check
      _
    $region47: #{tpu_custom_call.1} parent=1 // pred_check_branch
      %155 = sbr.rel (0) target = $region49
    $region48: #{tpu_custom_call.1} parent=1 // pred_region
      %s157 = ssub.s32 16, 16
      %158 = vsyncadd [#allocation24], %s157
      %s160 = sshll.u32 [#allocation23], 4
      %s161 = int_to_ptr.vmem [resolvable:$true] %s160
      %163 = dma.hbm_to_vmem [thread:$0]  %s12, 16, %s161, [#allocation24]
    $region49: #{tpu_custom_call.1} parent=1 // pred_fallthru
      _
    // Predicated region
    $region50: #{tpu_custom_call.1} parent=1 // pred_check
      _
    $region51: #{tpu_custom_call.1} parent=1 // pred_check_branch
      %165 = sbr.rel (0) target = $region53
    $region52: #{tpu_custom_call.1} parent=1 // pred_region
      %s167 = ssub.s32 16, 16
      %168 = vsyncadd [#allocation24], %s167
      %s170 = sshll.u32 [#allocation25], 4
      %s171 = int_to_ptr.vmem [resolvable:$true] %s170
      %173 = dma.hbm_to_vmem [thread:$0]  %s13, 16, %s171, [#allocation24]
    $region53: #{tpu_custom_call.1} parent=1 // pred_fallthru
      _
    // Predicated region
    $region54: #{tpu_custom_call.1} parent=1 // pred_check
      _
    $region55: #{tpu_custom_call.1} parent=1 // pred_check_branch
      %175 = sbr.rel (0) target = $region57
    $region56: #{tpu_custom_call.1} parent=1 // pred_region
      %s177 = ssub.s32 32, 32
      %178 = vsyncadd [#allocation27], %s177
      %s180 = sshll.u32 [#allocation26], 4
      %s181 = int_to_ptr.vmem [resolvable:$true] %s180
      %183 = dma.hbm_to_vmem [thread:$0]  %s14, 32, %s181, [#allocation27]
    $region57: #{tpu_custom_call.1} parent=1 // pred_fallthru
      _
    // Predicated region
    $region58: #{tpu_custom_call.1} parent=1 // pred_check
      _
    $region59: #{tpu_custom_call.1} parent=1 // pred_check_branch
      %185 = sbr.rel (0) target = $region61
    $region60: #{tpu_custom_call.1} parent=1 // pred_region
      %s187 = ssub.s32 32, 32
      %188 = vsyncadd [#allocation27], %s187
      %s190 = sshll.u32 [#allocation28], 4
      %s191 = int_to_ptr.vmem [resolvable:$true] %s190
      %193 = dma.hbm_to_vmem [thread:$0]  %s15, 32, %s191, [#allocation27]
    $region61: #{tpu_custom_call.1} parent=1 // pred_fallthru
      _
    // Predicated region
    $region62: #{tpu_custom_call.1} parent=1 // pred_check
      _
    $region63: #{tpu_custom_call.1} parent=1 // pred_check_branch
      %195 = sbr.rel (0) target = $region65
    $region64: #{tpu_custom_call.1} parent=1 // pred_region
      %s197 = ssub.s32 384, 384
      %198 = vsyncadd [#allocation30], %s197
      %s199 = sshll.u32 [#allocation29], 4
      %s200 = int_to_ptr.vmem [resolvable:$true] %s199
      %205 = dma.hbm_to_vmem [thread:$0]  %s16, 384, %s200, [#allocation30], 64, 64, 4
    $region65: #{tpu_custom_call.1} parent=1 // pred_fallthru
      _
    // Predicated region
    $region66: #{tpu_custom_call.1} parent=1 // pred_check
      _
    $region67: #{tpu_custom_call.1} parent=1 // pred_check_branch
      %207 = sbr.rel (0) target = $region69
    $region68: #{tpu_custom_call.1} parent=1 // pred_region
      %s209 = ssub.s32 16, 16
      %210 = vsyncadd [#allocation30], %s209
      %s212 = sshll.u32 [#allocation31], 4
      %s213 = int_to_ptr.vmem [resolvable:$true] %s212
      %215 = dma.hbm_to_vmem [thread:$0]  %s17, 16, %s213, [#allocation30]
    $region69: #{tpu_custom_call.1} parent=1 // pred_fallthru
      _
    // Predicated region
    $region70: #{tpu_custom_call.1} parent=1 // pred_check
      _
    $region71: #{tpu_custom_call.1} parent=1 // pred_check_branch
      %217 = sbr.rel (0) target = $region73
    $region72: #{tpu_custom_call.1} parent=1 // pred_region
      %218 = dma.done [#allocation6], 1024
    $region73: #{tpu_custom_call.1} parent=1 // pred_fallthru
      _
    // Predicated region
    $region74: #{tpu_custom_call.1} parent=1 // pred_check
      _
    $region75: #{tpu_custom_call.1} parent=1 // pred_check_branch
      %220 = sbr.rel (0) target = $region77
    $region76: #{tpu_custom_call.1} parent=1 // pred_region
      %221 = dma.done [#allocation9], 128
    $region77: #{tpu_custom_call.1} parent=1 // pred_fallthru
      _
    // Predicated region
    $region78: #{tpu_custom_call.1} parent=1 // pred_check
      _
    $region79: #{tpu_custom_call.1} parent=1 // pred_check_branch
      %223 = sbr.rel (0) target = $region81
    $region80: #{tpu_custom_call.1} parent=1 // pred_region
      %224 = dma.done [#allocation9], 64
    $region81: #{tpu_custom_call.1} parent=1 // pred_fallthru
      _
    // Predicated region
    $region82: #{tpu_custom_call.1} parent=1 // pred_check
      _
    $region83: #{tpu_custom_call.1} parent=1 // pred_check_branch
      %226 = sbr.rel (0) target = $region85
    $region84: #{tpu_custom_call.1} parent=1 // pred_region
      %227 = dma.done [#allocation12], 512
    $region85: #{tpu_custom_call.1} parent=1 // pred_fallthru
      _
    // Predicated region
    $region86: #{tpu_custom_call.1} parent=1 // pred_check
      _
    $region87: #{tpu_custom_call.1} parent=1 // pred_check_branch
      %229 = sbr.rel (0) target = $region89
    $region88: #{tpu_custom_call.1} parent=1 // pred_region
      %230 = dma.done [#allocation12], 16
    $region89: #{tpu_custom_call.1} parent=1 // pred_fallthru
      _
    // Predicated region
    $region90: #{tpu_custom_call.1} parent=1 // pred_check
      _
    $region91: #{tpu_custom_call.1} parent=1 // pred_check_branch
      %232 = sbr.rel (0) target = $region93
    $region92: #{tpu_custom_call.1} parent=1 // pred_region
      %233 = dma.done [#allocation15], 512
    $region93: #{tpu_custom_call.1} parent=1 // pred_fallthru
      _
    // Predicated region
    $region94: #{tpu_custom_call.1} parent=1 // pred_check
      _
    $region95: #{tpu_custom_call.1} parent=1 // pred_check_branch
      %235 = sbr.rel (0) target = $region97
    $region96: #{tpu_custom_call.1} parent=1 // pred_region
      %236 = dma.done [#allocation15], 16
    $region97: #{tpu_custom_call.1} parent=1 // pred_fallthru
      _
    // Predicated region
    $region98: #{tpu_custom_call.1} parent=1 // pred_check
      _
    $region99: #{tpu_custom_call.1} parent=1 // pred_check_branch
      %238 = sbr.rel (0) target = $region101
    $region100: #{tpu_custom_call.1} parent=1 // pred_region
      %239 = dma.done [#allocation18], 640
    $region101: #{tpu_custom_call.1} parent=1 // pred_fallthru
      _
    // Predicated region
    $region102: #{tpu_custom_call.1} parent=1 // pred_check
      _
    $region103: #{tpu_custom_call.1} parent=1 // pred_check_branch
      %241 = sbr.rel (0) target = $region105
    $region104: #{tpu_custom_call.1} parent=1 // pred_region
      %242 = dma.done [#allocation18], 16
    $region105: #{tpu_custom_call.1} parent=1 // pred_fallthru
      _
    // Predicated region
    $region106: #{tpu_custom_call.1} parent=1 // pred_check
      _
    $region107: #{tpu_custom_call.1} parent=1 // pred_check_branch
      %244 = sbr.rel (0) target = $region109
    $region108: #{tpu_custom_call.1} parent=1 // pred_region
      %245 = dma.done [#allocation21], 768
    $region109: #{tpu_custom_call.1} parent=1 // pred_fallthru
      _
    // Predicated region
    $region110: #{tpu_custom_call.1} parent=1 // pred_check
      _
    $region111: #{tpu_custom_call.1} parent=1 // pred_check_branch
      %247 = sbr.rel (0) target = $region113
    $region112: #{tpu_custom_call.1} parent=1 // pred_region
      %248 = dma.done [#allocation21], 16
    $region113: #{tpu_custom_call.1} parent=1 // pred_fallthru
      _
    // Predicated region
    $region114: #{tpu_custom_call.1} parent=1 // pred_check
      _
    $region115: #{tpu_custom_call.1} parent=1 // pred_check_branch
      %250 = sbr.rel (0) target = $region117
    $region116: #{tpu_custom_call.1} parent=1 // pred_region
      %251 = dma.done [#allocation24], 16
    $region117: #{tpu_custom_call.1} parent=1 // pred_fallthru
      _
    // Predicated region
    $region118: #{tpu_custom_call.1} parent=1 // pred_check
      _
    $region119: #{tpu_custom_call.1} parent=1 // pred_check_branch
      %253 = sbr.rel (0) target = $region121
    $region120: #{tpu_custom_call.1} parent=1 // pred_region
      %254 = dma.done [#allocation24], 16
    $region121: #{tpu_custom_call.1} parent=1 // pred_fallthru
      _
    // Predicated region
    $region122: #{tpu_custom_call.1} parent=1 // pred_check
      _
    $region123: #{tpu_custom_call.1} parent=1 // pred_check_branch
      %256 = sbr.rel (0) target = $region125
    $region124: #{tpu_custom_call.1} parent=1 // pred_region
      %257 = dma.done [#allocation27], 32
    $region125: #{tpu_custom_call.1} parent=1 // pred_fallthru
      _
    // Predicated region
    $region126: #{tpu_custom_call.1} parent=1 // pred_check
      _
    $region127: #{tpu_custom_call.1} parent=1 // pred_check_branch
      %259 = sbr.rel (0) target = $region129
    $region128: #{tpu_custom_call.1} parent=1 // pred_region
      %260 = dma.done [#allocation27], 32
    $region129: #{tpu_custom_call.1} parent=1 // pred_fallthru
      _
    // Predicated region
    $region130: #{tpu_custom_call.1} parent=1 // pred_check
      _
    $region131: #{tpu_custom_call.1} parent=1 // pred_check_branch
      %262 = sbr.rel (0) target = $region133
    $region132: #{tpu_custom_call.1} parent=1 // pred_region
      %263 = dma.done [#allocation30], 384
    $region133: #{tpu_custom_call.1} parent=1 // pred_fallthru
      _
    // Predicated region
    $region134: #{tpu_custom_call.1} parent=1 // pred_check
      _
    $region135: #{tpu_custom_call.1} parent=1 // pred_check_branch
      %265 = sbr.rel (0) target = $region137
    $region136: #{tpu_custom_call.1} parent=1 // pred_region
      %266 = dma.done [#allocation30], 16
    $region137: #{tpu_custom_call.1} parent=1 // pred_fallthru
      _
    %v268 = vld [vmem:[#allocation5] sm:$0xf]
    %v269 = vld [vmem:[#allocation5 + $0x4] sm:$0xf]
    %v270 = vld [vmem:[#allocation5 + $0x8] sm:$0xf]
    %v271 = vld [vmem:[#allocation5 + $0xc] sm:$0xf]
    %v272 = vld [vmem:[#allocation5 + $0x10] sm:$0xf]
    %v273 = vld [vmem:[#allocation5 + $0x14] sm:$0xf]
    %v274 = vld [vmem:[#allocation5 + $0x18] sm:$0xf]
    %v275 = vld [vmem:[#allocation5 + $0x1c] sm:$0xf]
    %v276 = vld [vmem:[#allocation5 + $0x20] sm:$0xf]
    %v277 = vld [vmem:[#allocation5 + $0x24] sm:$0xf]
    %v278 = vld [vmem:[#allocation5 + $0x28] sm:$0xf]
    %v279 = vld [vmem:[#allocation5 + $0x2c] sm:$0xf]
    %v280 = vld [vmem:[#allocation5 + $0x30] sm:$0xf]
    %v281 = vld [vmem:[#allocation5 + $0x34] sm:$0xf]
    %v282 = vld [vmem:[#allocation5 + $0x38] sm:$0xf]
    %v283 = vld [vmem:[#allocation5 + $0x3c] sm:$0xf]
    %v284 = vld [vmem:[#allocation10] sm:$0xf]
    %v301 = vunpack.c.l.b16 %v268
    %v302 = vunpack.c.l.b16 %v269
    %v303 = vunpack.c.l.b16 %v270
    %v304 = vunpack.c.l.b16 %v271
    %v305 = vunpack.c.l.b16 %v272
    %v306 = vunpack.c.l.b16 %v273
    %v307 = vunpack.c.l.b16 %v274
    %v308 = vunpack.c.l.b16 %v275
    %v309 = vunpack.c.l.b16 %v276
    %v310 = vunpack.c.l.b16 %v277
    %v311 = vunpack.c.l.b16 %v278
    %v312 = vunpack.c.l.b16 %v279
    %v313 = vunpack.c.l.b16 %v280
    %v314 = vunpack.c.l.b16 %v281
    %v315 = vunpack.c.l.b16 %v282
    %v316 = vunpack.c.l.b16 %v283
    %v317 = vpack.c.b16 %v302, %v301
    %v318 = vpack.c.b16 %v304, %v303
    %v319 = vpack.c.b16 %v306, %v305
    %v320 = vpack.c.b16 %v308, %v307
    %v321 = vpack.c.b16 %v310, %v309
    %v322 = vpack.c.b16 %v312, %v311
    %v323 = vpack.c.b16 %v314, %v313
    %v324 = vpack.c.b16 %v316, %v315
    %vm325 = vcmask 64512
    %v327 = vsel %vm325, %v317, 0
    %v330 = vsel %vm325, %v318, 0
    %v333 = vsel %vm325, %v319, 0
    %v336 = vsel %vm325, %v320, 0
    %v339 = vsel %vm325, %v321, 0
    %v342 = vsel %vm325, %v322, 0
    %v345 = vsel %vm325, %v323, 0
    %v348 = vsel %vm325, %v324, 0
    %vm350 = vcmask 1043456
    %v352 = vsel %vm350, %v284, 0
    %354 = vmatprep.subr.bf16.mxu0 0
    %355 = vmatpush1.bf16.msra.mxu0 %v352
    %356 = vmatprep.subr.bf16.mxu0 0
    %357 = vmatpush1.bf16.msra.mxu0 0
    %358 = vmatprep.subr.bf16.mxu0 0
    %359 = vmatpush1.bf16.msra.mxu0 0
    %360 = vmatprep.subr.bf16.mxu0 0
    %361 = vmatpush1.bf16.msra.mxu0 0
    %362 = vmatprep.subr.bf16.mxu0 0
    %363 = vmatpush1.bf16.msra.mxu0 0
    %364 = vmatprep.subr.bf16.mxu0 0
    %365 = vmatpush1.bf16.msra.mxu0 0
    %366 = vmatprep.subr.bf16.mxu0 0
    %367 = vmatpush1.bf16.msra.mxu0 0
    %368 = vmatprep.subr.bf16.mxu0 0
    %369 = vmatpush1.bf16.msra.mxu0 0
    %370 = vmatprep.subr.bf16.mxu0 0
    %371 = vmatpush1.bf16.msra.mxu0 0
    %372 = vmatprep.subr.bf16.mxu0 0
    %373 = vmatpush1.bf16.msra.mxu0 0
    %374 = vmatprep.subr.bf16.mxu0 0
    %375 = vmatpush1.bf16.msra.mxu0 0
    %376 = vmatprep.subr.bf16.mxu0 0
    %377 = vmatpush1.bf16.msra.mxu0 0
    %378 = vmatprep.subr.bf16.mxu0 0
    %379 = vmatpush1.bf16.msra.mxu0 0
    %380 = vmatprep.subr.bf16.mxu0 0
    %381 = vmatpush1.bf16.msra.mxu0 0
    %382 = vmatprep.subr.bf16.mxu0 0
    %383 = vmatpush1.bf16.msra.mxu0 0
    %384 = vmatprep.subr.bf16.mxu0 0
    %385 = vmatpush1.bf16.msra.mxu0 0
    %386 = vmatprep.mubr.bf16.mxu0 0
    %387 = vmatmul.mubr.bf16.gmra.mrb[0].mxu0 %v327
    %v388 = vpop.f32.mrb[0].mxu0
    %v389 = vadd.f32 0.0, %v388
    %v390 = vpop.f32.mrb[0].mxu0
    %v391 = vpop.f32.mrb[0].mxu0
    %v392 = vadd.f32 0.0, %v391
    %v393 = vpop.f32.mrb[0].mxu0
    %394 = vmatprep.mubr.bf16.mxu0 0
    %395 = vmatmul.mubr.bf16.gmra.mrb[0].mxu0 %v330
    %v396 = vpop.f32.mrb[0].mxu0
    %v397 = vadd.f32 0.0, %v396
    %v398 = vpop.f32.mrb[0].mxu0
    %v399 = vpop.f32.mrb[0].mxu0
    %v400 = vadd.f32 0.0, %v399
    %v401 = vpop.f32.mrb[0].mxu0
    %402 = vmatprep.mubr.bf16.mxu0 0
    %403 = vmatmul.mubr.bf16.gmra.mrb[0].mxu0 %v333
    %v404 = vpop.f32.mrb[0].mxu0
    %v405 = vadd.f32 0.0, %v404
    %v406 = vpop.f32.mrb[0].mxu0
    %v407 = vpop.f32.mrb[0].mxu0
    %v408 = vadd.f32 0.0, %v407
    %v409 = vpop.f32.mrb[0].mxu0
    %410 = vmatprep.mubr.bf16.mxu0 0
    %411 = vmatmul.mubr.bf16.gmra.mrb[0].mxu0 %v336
    %v412 = vpop.f32.mrb[0].mxu0
    %v413 = vadd.f32 0.0, %v412
    %v414 = vpop.f32.mrb[0].mxu0
    %v415 = vpop.f32.mrb[0].mxu0
    %v416 = vadd.f32 0.0, %v415
    %v417 = vpop.f32.mrb[0].mxu0
    %418 = vmatprep.mubr.bf16.mxu0 0
    %419 = vmatmul.mubr.bf16.gmra.mrb[0].mxu0 %v339
    %v420 = vpop.f32.mrb[0].mxu0
    %v421 = vadd.f32 0.0, %v420
    %v422 = vpop.f32.mrb[0].mxu0
    %v423 = vpop.f32.mrb[0].mxu0
    %v424 = vadd.f32 0.0, %v423
    %v425 = vpop.f32.mrb[0].mxu0
    %426 = vmatprep.mubr.bf16.mxu0 0
    %427 = vmatmul.mubr.bf16.gmra.mrb[0].mxu0 %v342
    %v428 = vpop.f32.mrb[0].mxu0
    %v429 = vadd.f32 0.0, %v428
    %v430 = vpop.f32.mrb[0].mxu0
    %v431 = vpop.f32.mrb[0].mxu0
    %v432 = vadd.f32 0.0, %v431
    %v433 = vpop.f32.mrb[0].mxu0
    %434 = vmatprep.mubr.bf16.mxu0 0
    %435 = vmatmul.mubr.bf16.gmra.mrb[0].mxu0 %v345
    %v436 = vpop.f32.mrb[0].mxu0
    %v437 = vadd.f32 0.0, %v436
    %v438 = vpop.f32.mrb[0].mxu0
    %v439 = vpop.f32.mrb[0].mxu0
    %v440 = vadd.f32 0.0, %v439
    %v441 = vpop.f32.mrb[0].mxu0
    %442 = vmatprep.mubr.bf16.mxu0 0
    %443 = vmatmul.mubr.bf16.gmra.mrb[0].mxu0 %v348
    %v444 = vpop.f32.mrb[0].mxu0
    %v445 = vadd.f32 0.0, %v444
    %v446 = vpop.f32.mrb[0].mxu0
    %v447 = vpop.f32.mrb[0].mxu0
    %v448 = vadd.f32 0.0, %v447
    %v449 = vpop.f32.mrb[0].mxu0
    %450 = vdwg.mxu0
    %v451 = vpack.c.bf16 %v389, %v389
    %v452 = vpack.c.bf16 %v392, %v392
    %v453 = vpack.c.bf16 %v397, %v397
    %v454 = vpack.c.bf16 %v400, %v400
    %v455 = vpack.c.bf16 %v405, %v405
    %v456 = vpack.c.bf16 %v408, %v408
    %v457 = vpack.c.bf16 %v413, %v413
    %v458 = vpack.c.bf16 %v416, %v416
    %v459 = vpack.c.bf16 %v421, %v421
    %v460 = vpack.c.bf16 %v424, %v424
    %v461 = vpack.c.bf16 %v429, %v429
    %v462 = vpack.c.bf16 %v432, %v432
    %v463 = vpack.c.bf16 %v437, %v437
    %v464 = vpack.c.bf16 %v440, %v440
    %v465 = vpack.c.bf16 %v445, %v445
    %v466 = vpack.c.bf16 %v448, %v448
    %467 = vst [vmem:[#allocation2] sm:$0xf] %v451
    %468 = vst [vmem:[#allocation2 + $0x4] sm:$0xf] %v452
    %469 = vst [vmem:[#allocation2 + $0x8] sm:$0xf] %v453
    %470 = vst [vmem:[#allocation2 + $0xc] sm:$0xf] %v454
    %471 = vst [vmem:[#allocation2 + $0x10] sm:$0xf] %v455
    %472 = vst [vmem:[#allocation2 + $0x14] sm:$0xf] %v456
    %473 = vst [vmem:[#allocation2 + $0x18] sm:$0xf] %v457
    %474 = vst [vmem:[#allocation2 + $0x1c] sm:$0xf] %v458
    %475 = vst [vmem:[#allocation2 + $0x20] sm:$0xf] %v459
    %476 = vst [vmem:[#allocation2 + $0x24] sm:$0xf] %v460
    %477 = vst [vmem:[#allocation2 + $0x28] sm:$0xf] %v461
    %478 = vst [vmem:[#allocation2 + $0x2c] sm:$0xf] %v462
    %479 = vst [vmem:[#allocation2 + $0x30] sm:$0xf] %v463
    %480 = vst [vmem:[#allocation2 + $0x34] sm:$0xf] %v464
    %481 = vst [vmem:[#allocation2 + $0x38] sm:$0xf] %v465
    %482 = vst [vmem:[#allocation2 + $0x3c] sm:$0xf] %v466
    %v483 = vld [vmem:[#allocation11] sm:$0xff]
    %v484 = vld [vmem:[#allocation11 + $0x8] sm:$0xff]
    %v485 = vld [vmem:[#allocation11 + $0x10] sm:$0xff]
    %v486 = vld [vmem:[#allocation11 + $0x18] sm:$0xff]
    %v487 = vld [vmem:[#allocation13] sm:$0x1]
    %v488 = vld [vmem:[#allocation8] sm:$0xff]
    %s489 = sld [smem:[#allocation4]]
    %v490 = vld [vmem:[#allocation2] sm:$0xf]
    %v491 = vunpack.c.l.bf16 %v490
    %v493 = vlaneseq
    %v494 = vshrl.u32 %v493, 7
    %v495 = vsub.s32 0, %v494
    %v496 = vrot.slane %v487, %v495
    %v498 = vadd.f32 %v491, %v496
    %vm499 = vcmask 261120
    %v501 = vsel %vm499, 0.0, 0
    %503 = vmatprep.subr.mxu0 0.0
    %504 = vmatpush1.msra.mxu0 %v483
    %505 = vmatprep.subr.mxu0 0.0
    %506 = vmatpush1.msra.mxu0 %v484
    %507 = vmatprep.subr.mxu0 0.0
    %508 = vmatpush1.msra.mxu0 %v485
    %509 = vmatprep.subr.mxu0 0.0
    %510 = vmatpush1.msra.mxu0 %v486
    %511 = vmatprep.subr.mxu0 0.0
    %512 = vmatpush1.msra.mxu0 0.0
    %513 = vmatprep.subr.mxu0 0.0
    %514 = vmatpush1.msra.mxu0 0.0
    %515 = vmatprep.subr.mxu0 0.0
    %516 = vmatpush1.msra.mxu0 0.0
    %517 = vmatprep.subr.mxu0 0.0
    %518 = vmatpush1.msra.mxu0 0.0
    %519 = vmatprep.subr.mxu0 0.0
    %520 = vmatpush1.msra.mxu0 0.0
    %521 = vmatprep.subr.mxu0 0.0
    %522 = vmatpush1.msra.mxu0 0.0
    %523 = vmatprep.subr.mxu0 0.0
    %524 = vmatpush1.msra.mxu0 0.0
    %525 = vmatprep.subr.mxu0 0.0
    %526 = vmatpush1.msra.mxu0 0.0
    %527 = vmatprep.subr.mxu0 0.0
    %528 = vmatpush1.msra.mxu0 0.0
    %529 = vmatprep.subr.mxu0 0.0
    %530 = vmatpush1.msra.mxu0 0.0
    %531 = vmatprep.subr.mxu0 0.0
    %532 = vmatpush1.msra.mxu0 0.0
    %533 = vmatprep.subr.mxu0 0.0
    %534 = vmatpush1.msra.mxu0 0.0
    %535 = vmatprep.subr.mxu0 0.0
    %536 = vmatpush1.msra.mxu0 0.0
    %537 = vmatprep.subr.mxu0 0.0
    %538 = vmatpush1.msra.mxu0 0.0
    %539 = vmatprep.subr.mxu0 0.0
    %540 = vmatpush1.msra.mxu0 0.0
    %541 = vmatprep.subr.mxu0 0.0
    %542 = vmatpush1.msra.mxu0 0.0
    %543 = vmatprep.subr.mxu0 0.0
    %544 = vmatpush1.msra.mxu0 0.0
    %545 = vmatprep.subr.mxu0 0.0
    %546 = vmatpush1.msra.mxu0 0.0
    %547 = vmatprep.subr.mxu0 0.0
    %548 = vmatpush1.msra.mxu0 0.0
    %549 = vmatprep.subr.mxu0 0.0
    %550 = vmatpush1.msra.mxu0 0.0
    %551 = vmatprep.subr.mxu0 0.0
    %552 = vmatpush1.msra.mxu0 0.0
    %553 = vmatprep.subr.mxu0 0.0
    %554 = vmatpush1.msra.mxu0 0.0
    %555 = vmatprep.subr.mxu0 0.0
    %556 = vmatpush1.msra.mxu0 0.0
    %557 = vmatprep.subr.mxu0 0.0
    %558 = vmatpush1.msra.mxu0 0.0
    %559 = vmatprep.subr.mxu0 0.0
    %560 = vmatpush1.msra.mxu0 0.0
    %561 = vmatprep.subr.mxu0 0.0
    %562 = vmatpush1.msra.mxu0 0.0
    %563 = vmatprep.subr.mxu0 0.0
    %564 = vmatpush1.msra.mxu0 0.0
    %565 = vmatprep.subr.mxu0 0.0
    %566 = vmatpush1.msra.mxu0 0.0
    %567 = vmatprep.mubr.f32.mxu0 0.0
    %568 = vmatmul.mubr.f32.gmra.mrb[0].mxu0 %v501
    %v569 = vpop.f32.mrb[0].mxu0
    %v570 = vadd.f32 0.0, %v569
    %v571 = vpop.f32.mrb[0].mxu0
    %572 = vdwg.mxu0
    %v573 = vadd.f32 %v498, %v570
    %v574 = vmul.f32 %v573, 0.5
    %v575 = vtanh.pop %v574
    %v576 = vmul.f32 %v575, 0.5
    %v577 = vadd.f32 %v576, 0.5
    %v578 = vtanh.pop %v573
    %v579 = vmul.f32 %v577, 0.0
    %581 = vrot.lane.b32.xlu0 %v578, 64
    %v582 = vpop.permute.xlu0 %581
    %v584 = vmul.f32 %v577, %v582
    %586 = vrot.lane.b32.xlu0 %v584, 32
    %v587 = vpop.permute.xlu0 %586
    %v589 = vadd.f32 %v579, %v587
    %v590 = vtanh.pop %v589
    %592 = vrot.lane.b32.xlu0 %v590, 64
    %v593 = vpop.permute.xlu0 %592
    %v595 = vmul.f32 %v577, %v593
    %p596 = scmp.gt.s32.totalorder %s489, 0
    %s597 = scalar_select %p596, 1, 0
    %v598 = vstv %s597
    %vm599 = vcmp.eq.s32.totalorder %v598, 1
    %v600 = vsel %vm599, %v595, 0.0
    %v601 = vsel %vm599, %v589, 0.0
    %s602 = scalar_lea.vmem [#allocation2], 4
    %v603 = vld [vmem:[%s602] sm:$0xf]
    %v604 = vunpack.c.l.bf16 %v603
    %v605 = vadd.f32 %v604, %v496
    %607 = vrot.lane.b32.xlu0 %v600, 32
    %v608 = vpop.permute.xlu0 %607
    %v609 = vsel %vm499, %v608, 0
    %611 = vmatprep.subr.mxu0 0.0
    %612 = vmatpush1.msra.mxu0 %v483
    %613 = vmatprep.subr.mxu0 0.0
    %614 = vmatpush1.msra.mxu0 %v484
    %615 = vmatprep.subr.mxu0 0.0
    %616 = vmatpush1.msra.mxu0 %v485
    %617 = vmatprep.subr.mxu0 0.0
    %618 = vmatpush1.msra.mxu0 %v486
    %619 = vmatprep.subr.mxu0 0.0
    %620 = vmatpush1.msra.mxu0 0.0
    %621 = vmatprep.subr.mxu0 0.0
    %622 = vmatpush1.msra.mxu0 0.0
    %623 = vmatprep.subr.mxu0 0.0
    %624 = vmatpush1.msra.mxu0 0.0
    %625 = vmatprep.subr.mxu0 0.0
    %626 = vmatpush1.msra.mxu0 0.0
    %627 = vmatprep.subr.mxu0 0.0
    %628 = vmatpush1.msra.mxu0 0.0
    %629 = vmatprep.subr.mxu0 0.0
    %630 = vmatpush1.msra.mxu0 0.0
    %631 = vmatprep.subr.mxu0 0.0
    %632 = vmatpush1.msra.mxu0 0.0
    %633 = vmatprep.subr.mxu0 0.0
    %634 = vmatpush1.msra.mxu0 0.0
    %635 = vmatprep.subr.mxu0 0.0
    %636 = vmatpush1.msra.mxu0 0.0
    %637 = vmatprep.subr.mxu0 0.0
    %638 = vmatpush1.msra.mxu0 0.0
    %639 = vmatprep.subr.mxu0 0.0
    %640 = vmatpush1.msra.mxu0 0.0
    %641 = vmatprep.subr.mxu0 0.0
    %642 = vmatpush1.msra.mxu0 0.0
    %643 = vmatprep.subr.mxu0 0.0
    %644 = vmatpush1.msra.mxu0 0.0
    %645 = vmatprep.subr.mxu0 0.0
    %646 = vmatpush1.msra.mxu0 0.0
    %647 = vmatprep.subr.mxu0 0.0
    %648 = vmatpush1.msra.mxu0 0.0
    %649 = vmatprep.subr.mxu0 0.0
    %650 = vmatpush1.msra.mxu0 0.0
    %651 = vmatprep.subr.mxu0 0.0
    %652 = vmatpush1.msra.mxu0 0.0
    %653 = vmatprep.subr.mxu0 0.0
    %654 = vmatpush1.msra.mxu0 0.0
    %655 = vmatprep.subr.mxu0 0.0
    %656 = vmatpush1.msra.mxu0 0.0
    %657 = vmatprep.subr.mxu0 0.0
    %658 = vmatpush1.msra.mxu0 0.0
    %659 = vmatprep.subr.mxu0 0.0
    %660 = vmatpush1.msra.mxu0 0.0
    %661 = vmatprep.subr.mxu0 0.0
    %662 = vmatpush1.msra.mxu0 0.0
    %663 = vmatprep.subr.mxu0 0.0
    %664 = vmatpush1.msra.mxu0 0.0
    %665 = vmatprep.subr.mxu0 0.0
    %666 = vmatpush1.msra.mxu0 0.0
    %667 = vmatprep.subr.mxu0 0.0
    %668 = vmatpush1.msra.mxu0 0.0
    %669 = vmatprep.subr.mxu0 0.0
    %670 = vmatpush1.msra.mxu0 0.0
    %671 = vmatprep.subr.mxu0 0.0
    %672 = vmatpush1.msra.mxu0 0.0
    %673 = vmatprep.subr.mxu0 0.0
    %674 = vmatpush1.msra.mxu0 0.0
    %675 = vmatprep.mubr.f32.mxu0 0.0
    %676 = vmatmul.mubr.f32.gmra.mrb[0].mxu0 %v609
    %v677 = vpop.f32.mrb[0].mxu0
    %v678 = vadd.f32 0.0, %v677
    %v679 = vpop.f32.mrb[0].mxu0
    %680 = vdwg.mxu0
    %v681 = vadd.f32 %v605, %v678
    %v682 = vmul.f32 %v681, 0.5
    %v683 = vtanh.pop %v682
    %v684 = vmul.f32 %v683, 0.5
    %v685 = vadd.f32 %v684, 0.5
    %v686 = vtanh.pop %v681
    %v687 = vmul.f32 %v685, %v601
    %689 = vrot.lane.b32.xlu0 %v686, 64
    %v690 = vpop.permute.xlu0 %689
    %v692 = vmul.f32 %v685, %v690
    %694 = vrot.lane.b32.xlu0 %v692, 32
    %v695 = vpop.permute.xlu0 %694
    %v697 = vadd.f32 %v687, %v695
    %v698 = vtanh.pop %v697
    %700 = vrot.lane.b32.xlu0 %v698, 64
    %v701 = vpop.permute.xlu0 %700
    %v703 = vmul.f32 %v685, %v701
    %p704 = scmp.gt.s32.totalorder %s489, 1
    %s705 = scalar_select %p704, 1, 0
    %v706 = vstv %s705
    %vm707 = vcmp.eq.s32.totalorder %v706, 1
    %v708 = vsel %vm707, %v703, %v600
    %v709 = vsel %vm707, %v697, %v601
    %s710 = scalar_lea.vmem [#allocation2], 8
    %v711 = vld [vmem:[%s710] sm:$0xf]
    %v712 = vunpack.c.l.bf16 %v711
    %v713 = vadd.f32 %v712, %v496
    %715 = vrot.lane.b32.xlu0 %v708, 32
    %v716 = vpop.permute.xlu0 %715
    %v717 = vsel %vm499, %v716, 0
    %719 = vmatprep.subr.mxu0 0.0
    %720 = vmatpush1.msra.mxu0 %v483
    %721 = vmatprep.subr.mxu0 0.0
    %722 = vmatpush1.msra.mxu0 %v484
    %723 = vmatprep.subr.mxu0 0.0
    %724 = vmatpush1.msra.mxu0 %v485
    %725 = vmatprep.subr.mxu0 0.0
    %726 = vmatpush1.msra.mxu0 %v486
    %727 = vmatprep.subr.mxu0 0.0
    %728 = vmatpush1.msra.mxu0 0.0
    %729 = vmatprep.subr.mxu0 0.0
    %730 = vmatpush1.msra.mxu0 0.0
    %731 = vmatprep.subr.mxu0 0.0
    %732 = vmatpush1.msra.mxu0 0.0
    %733 = vmatprep.subr.mxu0 0.0
    %734 = vmatpush1.msra.mxu0 0.0
    %735 = vmatprep.subr.mxu0 0.0
    %736 = vmatpush1.msra.mxu0 0.0
    %737 = vmatprep.subr.mxu0 0.0
    %738 = vmatpush1.msra.mxu0 0.0
    %739 = vmatprep.subr.mxu0 0.0
    %740 = vmatpush1.msra.mxu0 0.0
    %741 = vmatprep.subr.mxu0 0.0
    %742 = vmatpush1.msra.mxu0 0.0
    %743 = vmatprep.subr.mxu0 0.0
    %744 = vmatpush1.msra.mxu0 0.0
    %745 = vmatprep.subr.mxu0 0.0
    %746 = vmatpush1.msra.mxu0 0.0
    %747 = vmatprep.subr.mxu0 0.0
    %748 = vmatpush1.msra.mxu0 0.0
    %749 = vmatprep.subr.mxu0 0.0
    %750 = vmatpush1.msra.mxu0 0.0
    %751 = vmatprep.subr.mxu0 0.0
    %752 = vmatpush1.msra.mxu0 0.0
    %753 = vmatprep.subr.mxu0 0.0
    %754 = vmatpush1.msra.mxu0 0.0
    %755 = vmatprep.subr.mxu0 0.0
    %756 = vmatpush1.msra.mxu0 0.0
    %757 = vmatprep.subr.mxu0 0.0
    %758 = vmatpush1.msra.mxu0 0.0
    %759 = vmatprep.subr.mxu0 0.0
    %760 = vmatpush1.msra.mxu0 0.0
    %761 = vmatprep.subr.mxu0 0.0
    %762 = vmatpush1.msra.mxu0 0.0
    %763 = vmatprep.subr.mxu0 0.0
    %764 = vmatpush1.msra.mxu0 0.0
    %765 = vmatprep.subr.mxu0 0.0
    %766 = vmatpush1.msra.mxu0 0.0
    %767 = vmatprep.subr.mxu0 0.0
    %768 = vmatpush1.msra.mxu0 0.0
    %769 = vmatprep.subr.mxu0 0.0
    %770 = vmatpush1.msra.mxu0 0.0
    %771 = vmatprep.subr.mxu0 0.0
    %772 = vmatpush1.msra.mxu0 0.0
    %773 = vmatprep.subr.mxu0 0.0
    %774 = vmatpush1.msra.mxu0 0.0
    %775 = vmatprep.subr.mxu0 0.0
    %776 = vmatpush1.msra.mxu0 0.0
    %777 = vmatprep.subr.mxu0 0.0
    %778 = vmatpush1.msra.mxu0 0.0
    %779 = vmatprep.subr.mxu0 0.0
    %780 = vmatpush1.msra.mxu0 0.0
    %781 = vmatprep.subr.mxu0 0.0
    %782 = vmatpush1.msra.mxu0 0.0
    %783 = vmatprep.mubr.f32.mxu0 0.0
    %784 = vmatmul.mubr.f32.gmra.mrb[0].mxu0 %v717
    %v785 = vpop.f32.mrb[0].mxu0
    %v786 = vadd.f32 0.0, %v785
    %v787 = vpop.f32.mrb[0].mxu0
    %788 = vdwg.mxu0
    %v789 = vadd.f32 %v713, %v786
    %v790 = vmul.f32 %v789, 0.5
    %v791 = vtanh.pop %v790
    %v792 = vmul.f32 %v791, 0.5
    %v793 = vadd.f32 %v792, 0.5
    %v794 = vtanh.pop %v789
    %v795 = vmul.f32 %v793, %v709
    %797 = vrot.lane.b32.xlu0 %v794, 64
    %v798 = vpop.permute.xlu0 %797
    %v800 = vmul.f32 %v793, %v798
    %802 = vrot.lane.b32.xlu0 %v800, 32
    %v803 = vpop.permute.xlu0 %802
    %v805 = vadd.f32 %v795, %v803
    %v806 = vtanh.pop %v805
    %808 = vrot.lane.b32.xlu0 %v806, 64
    %v809 = vpop.permute.xlu0 %808
    %v811 = vmul.f32 %v793, %v809
    %p812 = scmp.gt.s32.totalorder %s489, 2
    %s813 = scalar_select %p812, 1, 0
    %v814 = vstv %s813
    %vm815 = vcmp.eq.s32.totalorder %v814, 1
    %v816 = vsel %vm815, %v811, %v708
    %v817 = vsel %vm815, %v805, %v709
    %s818 = scalar_lea.vmem [#allocation2], 12
    %v819 = vld [vmem:[%s818] sm:$0xf]
    %v820 = vunpack.c.l.bf16 %v819
    %v821 = vadd.f32 %v820, %v496
    %823 = vrot.lane.b32.xlu0 %v816, 32
    %v824 = vpop.permute.xlu0 %823
    %v825 = vsel %vm499, %v824, 0
    %827 = vmatprep.subr.mxu0 0.0
    %828 = vmatpush1.msra.mxu0 %v483
    %829 = vmatprep.subr.mxu0 0.0
    %830 = vmatpush1.msra.mxu0 %v484
    %831 = vmatprep.subr.mxu0 0.0
    %832 = vmatpush1.msra.mxu0 %v485
    %833 = vmatprep.subr.mxu0 0.0
    %834 = vmatpush1.msra.mxu0 %v486
    %835 = vmatprep.subr.mxu0 0.0
    %836 = vmatpush1.msra.mxu0 0.0
    %837 = vmatprep.subr.mxu0 0.0
    %838 = vmatpush1.msra.mxu0 0.0
    %839 = vmatprep.subr.mxu0 0.0
    %840 = vmatpush1.msra.mxu0 0.0
    %841 = vmatprep.subr.mxu0 0.0
    %842 = vmatpush1.msra.mxu0 0.0
    %843 = vmatprep.subr.mxu0 0.0
    %844 = vmatpush1.msra.mxu0 0.0
    %845 = vmatprep.subr.mxu0 0.0
    %846 = vmatpush1.msra.mxu0 0.0
    %847 = vmatprep.subr.mxu0 0.0
    %848 = vmatpush1.msra.mxu0 0.0
    %849 = vmatprep.subr.mxu0 0.0
    %850 = vmatpush1.msra.mxu0 0.0
    %851 = vmatprep.subr.mxu0 0.0
    %852 = vmatpush1.msra.mxu0 0.0
    %853 = vmatprep.subr.mxu0 0.0
    %854 = vmatpush1.msra.mxu0 0.0
    %855 = vmatprep.subr.mxu0 0.0
    %856 = vmatpush1.msra.mxu0 0.0
    %857 = vmatprep.subr.mxu0 0.0
    %858 = vmatpush1.msra.mxu0 0.0
    %859 = vmatprep.subr.mxu0 0.0
    %860 = vmatpush1.msra.mxu0 0.0
    %861 = vmatprep.subr.mxu0 0.0
    %862 = vmatpush1.msra.mxu0 0.0
    %863 = vmatprep.subr.mxu0 0.0
    %864 = vmatpush1.msra.mxu0 0.0
    %865 = vmatprep.subr.mxu0 0.0
    %866 = vmatpush1.msra.mxu0 0.0
    %867 = vmatprep.subr.mxu0 0.0
    %868 = vmatpush1.msra.mxu0 0.0
    %869 = vmatprep.subr.mxu0 0.0
    %870 = vmatpush1.msra.mxu0 0.0
    %871 = vmatprep.subr.mxu0 0.0
    %872 = vmatpush1.msra.mxu0 0.0
    %873 = vmatprep.subr.mxu0 0.0
    %874 = vmatpush1.msra.mxu0 0.0
    %875 = vmatprep.subr.mxu0 0.0
    %876 = vmatpush1.msra.mxu0 0.0
    %877 = vmatprep.subr.mxu0 0.0
    %878 = vmatpush1.msra.mxu0 0.0
    %879 = vmatprep.subr.mxu0 0.0
    %880 = vmatpush1.msra.mxu0 0.0
    %881 = vmatprep.subr.mxu0 0.0
    %882 = vmatpush1.msra.mxu0 0.0
    %883 = vmatprep.subr.mxu0 0.0
    %884 = vmatpush1.msra.mxu0 0.0
    %885 = vmatprep.subr.mxu0 0.0
    %886 = vmatpush1.msra.mxu0 0.0
    %887 = vmatprep.subr.mxu0 0.0
    %888 = vmatpush1.msra.mxu0 0.0
    %889 = vmatprep.subr.mxu0 0.0
    %890 = vmatpush1.msra.mxu0 0.0
    %891 = vmatprep.mubr.f32.mxu0 0.0
    %892 = vmatmul.mubr.f32.gmra.mrb[0].mxu0 %v825
    %v893 = vpop.f32.mrb[0].mxu0
    %v894 = vadd.f32 0.0, %v893
    %v895 = vpop.f32.mrb[0].mxu0
    %896 = vdwg.mxu0
    %v897 = vadd.f32 %v821, %v894
    %v898 = vmul.f32 %v897, 0.5
    %v899 = vtanh.pop %v898
    %v900 = vmul.f32 %v899, 0.5
    %v901 = vadd.f32 %v900, 0.5
    %v902 = vtanh.pop %v897
    %v903 = vmul.f32 %v901, %v817
    %905 = vrot.lane.b32.xlu0 %v902, 64
    %v906 = vpop.permute.xlu0 %905
    %v908 = vmul.f32 %v901, %v906
    %910 = vrot.lane.b32.xlu0 %v908, 32
    %v911 = vpop.permute.xlu0 %910
    %v913 = vadd.f32 %v903, %v911
    %v914 = vtanh.pop %v913
    %916 = vrot.lane.b32.xlu0 %v914, 64
    %v917 = vpop.permute.xlu0 %916
    %v919 = vmul.f32 %v901, %v917
    %p920 = scmp.gt.s32.totalorder %s489, 3
    %s921 = scalar_select %p920, 1, 0
    %v922 = vstv %s921
    %vm923 = vcmp.eq.s32.totalorder %v922, 1
    %v924 = vsel %vm923, %v919, %v816
    %v925 = vsel %vm923, %v913, %v817
    %s926 = scalar_lea.vmem [#allocation2], 16
    %v927 = vld [vmem:[%s926] sm:$0xf]
    %v928 = vunpack.c.l.bf16 %v927
    %v929 = vadd.f32 %v928, %v496
    %931 = vrot.lane.b32.xlu0 %v924, 32
    %v932 = vpop.permute.xlu0 %931
    %v933 = vsel %vm499, %v932, 0
    %935 = vmatprep.subr.mxu0 0.0
    %936 = vmatpush1.msra.mxu0 %v483
    %937 = vmatprep.subr.mxu0 0.0
    %938 = vmatpush1.msra.mxu0 %v484
    %939 = vmatprep.subr.mxu0 0.0
    %940 = vmatpush1.msra.mxu0 %v485
    %941 = vmatprep.subr.mxu0 0.0
    %942 = vmatpush1.msra.mxu0 %v486
    %943 = vmatprep.subr.mxu0 0.0
    %944 = vmatpush1.msra.mxu0 0.0
    %945 = vmatprep.subr.mxu0 0.0
    %946 = vmatpush1.msra.mxu0 0.0
    %947 = vmatprep.subr.mxu0 0.0
    %948 = vmatpush1.msra.mxu0 0.0
    %949 = vmatprep.subr.mxu0 0.0
    %950 = vmatpush1.msra.mxu0 0.0
    %951 = vmatprep.subr.mxu0 0.0
    %952 = vmatpush1.msra.mxu0 0.0
    %953 = vmatprep.subr.mxu0 0.0
    %954 = vmatpush1.msra.mxu0 0.0
    %955 = vmatprep.subr.mxu0 0.0
    %956 = vmatpush1.msra.mxu0 0.0
    %957 = vmatprep.subr.mxu0 0.0
    %958 = vmatpush1.msra.mxu0 0.0
    %959 = vmatprep.subr.mxu0 0.0
    %960 = vmatpush1.msra.mxu0 0.0
    %961 = vmatprep.subr.mxu0 0.0
    %962 = vmatpush1.msra.mxu0 0.0
    %963 = vmatprep.subr.mxu0 0.0
    %964 = vmatpush1.msra.mxu0 0.0
    %965 = vmatprep.subr.mxu0 0.0
    %966 = vmatpush1.msra.mxu0 0.0
    %967 = vmatprep.subr.mxu0 0.0
    %968 = vmatpush1.msra.mxu0 0.0
    %969 = vmatprep.subr.mxu0 0.0
    %970 = vmatpush1.msra.mxu0 0.0
    %971 = vmatprep.subr.mxu0 0.0
    %972 = vmatpush1.msra.mxu0 0.0
    %973 = vmatprep.subr.mxu0 0.0
    %974 = vmatpush1.msra.mxu0 0.0
    %975 = vmatprep.subr.mxu0 0.0
    %976 = vmatpush1.msra.mxu0 0.0
    %977 = vmatprep.subr.mxu0 0.0
    %978 = vmatpush1.msra.mxu0 0.0
    %979 = vmatprep.subr.mxu0 0.0
    %980 = vmatpush1.msra.mxu0 0.0
    %981 = vmatprep.subr.mxu0 0.0
    %982 = vmatpush1.msra.mxu0 0.0
    %983 = vmatprep.subr.mxu0 0.0
    %984 = vmatpush1.msra.mxu0 0.0
    %985 = vmatprep.subr.mxu0 0.0
    %986 = vmatpush1.msra.mxu0 0.0
    %987 = vmatprep.subr.mxu0 0.0
    %988 = vmatpush1.msra.mxu0 0.0
    %989 = vmatprep.subr.mxu0 0.0
    %990 = vmatpush1.msra.mxu0 0.0
    %991 = vmatprep.subr.mxu0 0.0
    %992 = vmatpush1.msra.mxu0 0.0
    %993 = vmatprep.subr.mxu0 0.0
    %994 = vmatpush1.msra.mxu0 0.0
    %995 = vmatprep.subr.mxu0 0.0
    %996 = vmatpush1.msra.mxu0 0.0
    %997 = vmatprep.subr.mxu0 0.0
    %998 = vmatpush1.msra.mxu0 0.0
    %999 = vmatprep.mubr.f32.mxu0 0.0
    %1000 = vmatmul.mubr.f32.gmra.mrb[0].mxu0 %v933
    %v1001 = vpop.f32.mrb[0].mxu0
    %v1002 = vadd.f32 0.0, %v1001
    %v1003 = vpop.f32.mrb[0].mxu0
    %1004 = vdwg.mxu0
    %v1005 = vadd.f32 %v929, %v1002
    %v1006 = vmul.f32 %v1005, 0.5
    %v1007 = vtanh.pop %v1006
    %v1008 = vmul.f32 %v1007, 0.5
    %v1009 = vadd.f32 %v1008, 0.5
    %v1010 = vtanh.pop %v1005
    %v1011 = vmul.f32 %v1009, %v925
    %1013 = vrot.lane.b32.xlu0 %v1010, 64
    %v1014 = vpop.permute.xlu0 %1013
    %v1016 = vmul.f32 %v1009, %v1014
    %1018 = vrot.lane.b32.xlu0 %v1016, 32
    %v1019 = vpop.permute.xlu0 %1018
    %v1021 = vadd.f32 %v1011, %v1019
    %v1022 = vtanh.pop %v1021
    %1024 = vrot.lane.b32.xlu0 %v1022, 64
    %v1025 = vpop.permute.xlu0 %1024
    %v1027 = vmul.f32 %v1009, %v1025
    %p1028 = scmp.gt.s32.totalorder %s489, 4
    %s1029 = scalar_select %p1028, 1, 0
    %v1030 = vstv %s1029
    %vm1031 = vcmp.eq.s32.totalorder %v1030, 1
    %v1032 = vsel %vm1031, %v1027, %v924
    %v1033 = vsel %vm1031, %v1021, %v925
    %s1034 = scalar_lea.vmem [#allocation2], 20
    %v1035 = vld [vmem:[%s1034] sm:$0xf]
    %v1036 = vunpack.c.l.bf16 %v1035
    %v1037 = vadd.f32 %v1036, %v496
    %1039 = vrot.lane.b32.xlu0 %v1032, 32
    %v1040 = vpop.permute.xlu0 %1039
    %v1041 = vsel %vm499, %v1040, 0
    %1043 = vmatprep.subr.mxu0 0.0
    %1044 = vmatpush1.msra.mxu0 %v483
    %1045 = vmatprep.subr.mxu0 0.0
    %1046 = vmatpush1.msra.mxu0 %v484
    %1047 = vmatprep.subr.mxu0 0.0
    %1048 = vmatpush1.msra.mxu0 %v485
    %1049 = vmatprep.subr.mxu0 0.0
    %1050 = vmatpush1.msra.mxu0 %v486
    %1051 = vmatprep.subr.mxu0 0.0
    %1052 = vmatpush1.msra.mxu0 0.0
    %1053 = vmatprep.subr.mxu0 0.0
    %1054 = vmatpush1.msra.mxu0 0.0
    %1055 = vmatprep.subr.mxu0 0.0
    %1056 = vmatpush1.msra.mxu0 0.0
    %1057 = vmatprep.subr.mxu0 0.0
    %1058 = vmatpush1.msra.mxu0 0.0
    %1059 = vmatprep.subr.mxu0 0.0
    %1060 = vmatpush1.msra.mxu0 0.0
    %1061 = vmatprep.subr.mxu0 0.0
    %1062 = vmatpush1.msra.mxu0 0.0
    %1063 = vmatprep.subr.mxu0 0.0
    %1064 = vmatpush1.msra.mxu0 0.0
    %1065 = vmatprep.subr.mxu0 0.0
    %1066 = vmatpush1.msra.mxu0 0.0
    %1067 = vmatprep.subr.mxu0 0.0
    %1068 = vmatpush1.msra.mxu0 0.0
    %1069 = vmatprep.subr.mxu0 0.0
    %1070 = vmatpush1.msra.mxu0 0.0
    %1071 = vmatprep.subr.mxu0 0.0
    %1072 = vmatpush1.msra.mxu0 0.0
    %1073 = vmatprep.subr.mxu0 0.0
    %1074 = vmatpush1.msra.mxu0 0.0
    %1075 = vmatprep.subr.mxu0 0.0
    %1076 = vmatpush1.msra.mxu0 0.0
    %1077 = vmatprep.subr.mxu0 0.0
    %1078 = vmatpush1.msra.mxu0 0.0
    %1079 = vmatprep.subr.mxu0 0.0
    %1080 = vmatpush1.msra.mxu0 0.0
    %1081 = vmatprep.subr.mxu0 0.0
    %1082 = vmatpush1.msra.mxu0 0.0
    %1083 = vmatprep.subr.mxu0 0.0
    %1084 = vmatpush1.msra.mxu0 0.0
    %1085 = vmatprep.subr.mxu0 0.0
    %1086 = vmatpush1.msra.mxu0 0.0
    %1087 = vmatprep.subr.mxu0 0.0
    %1088 = vmatpush1.msra.mxu0 0.0
    %1089 = vmatprep.subr.mxu0 0.0
    %1090 = vmatpush1.msra.mxu0 0.0
    %1091 = vmatprep.subr.mxu0 0.0
    %1092 = vmatpush1.msra.mxu0 0.0
    %1093 = vmatprep.subr.mxu0 0.0
    %1094 = vmatpush1.msra.mxu0 0.0
    %1095 = vmatprep.subr.mxu0 0.0
    %1096 = vmatpush1.msra.mxu0 0.0
    %1097 = vmatprep.subr.mxu0 0.0
    %1098 = vmatpush1.msra.mxu0 0.0
    %1099 = vmatprep.subr.mxu0 0.0
    %1100 = vmatpush1.msra.mxu0 0.0
    %1101 = vmatprep.subr.mxu0 0.0
    %1102 = vmatpush1.msra.mxu0 0.0
    %1103 = vmatprep.subr.mxu0 0.0
    %1104 = vmatpush1.msra.mxu0 0.0
    %1105 = vmatprep.subr.mxu0 0.0
    %1106 = vmatpush1.msra.mxu0 0.0
    %1107 = vmatprep.mubr.f32.mxu0 0.0
    %1108 = vmatmul.mubr.f32.gmra.mrb[0].mxu0 %v1041
    %v1109 = vpop.f32.mrb[0].mxu0
    %v1110 = vadd.f32 0.0, %v1109
    %v1111 = vpop.f32.mrb[0].mxu0
    %1112 = vdwg.mxu0
    %v1113 = vadd.f32 %v1037, %v1110
    %v1114 = vmul.f32 %v1113, 0.5
    %v1115 = vtanh.pop %v1114
    %v1116 = vmul.f32 %v1115, 0.5
    %v1117 = vadd.f32 %v1116, 0.5
    %v1118 = vtanh.pop %v1113
    %v1119 = vmul.f32 %v1117, %v1033
    %1121 = vrot.lane.b32.xlu0 %v1118, 64
    %v1122 = vpop.permute.xlu0 %1121
    %v1124 = vmul.f32 %v1117, %v1122
    %1126 = vrot.lane.b32.xlu0 %v1124, 32
    %v1127 = vpop.permute.xlu0 %1126
    %v1129 = vadd.f32 %v1119, %v1127
    %v1130 = vtanh.pop %v1129
    %1132 = vrot.lane.b32.xlu0 %v1130, 64
    %v1133 = vpop.permute.xlu0 %1132
    %v1135 = vmul.f32 %v1117, %v1133
    %p1136 = scmp.gt.s32.totalorder %s489, 5
    %s1137 = scalar_select %p1136, 1, 0
    %v1138 = vstv %s1137
    %vm1139 = vcmp.eq.s32.totalorder %v1138, 1
    %v1140 = vsel %vm1139, %v1135, %v1032
    %v1141 = vsel %vm1139, %v1129, %v1033
    %s1142 = scalar_lea.vmem [#allocation2], 24
    %v1143 = vld [vmem:[%s1142] sm:$0xf]
    %v1144 = vunpack.c.l.bf16 %v1143
    %v1145 = vadd.f32 %v1144, %v496
    %1147 = vrot.lane.b32.xlu0 %v1140, 32
    %v1148 = vpop.permute.xlu0 %1147
    %v1149 = vsel %vm499, %v1148, 0
    %1151 = vmatprep.subr.mxu0 0.0
    %1152 = vmatpush1.msra.mxu0 %v483
    %1153 = vmatprep.subr.mxu0 0.0
    %1154 = vmatpush1.msra.mxu0 %v484
    %1155 = vmatprep.subr.mxu0 0.0
    %1156 = vmatpush1.msra.mxu0 %v485
    %1157 = vmatprep.subr.mxu0 0.0
    %1158 = vmatpush1.msra.mxu0 %v486
    %1159 = vmatprep.subr.mxu0 0.0
    %1160 = vmatpush1.msra.mxu0 0.0
    %1161 = vmatprep.subr.mxu0 0.0
    %1162 = vmatpush1.msra.mxu0 0.0
    %1163 = vmatprep.subr.mxu0 0.0
    %1164 = vmatpush1.msra.mxu0 0.0
    %1165 = vmatprep.subr.mxu0 0.0
    %1166 = vmatpush1.msra.mxu0 0.0
    %1167 = vmatprep.subr.mxu0 0.0
    %1168 = vmatpush1.msra.mxu0 0.0
    %1169 = vmatprep.subr.mxu0 0.0
    %1170 = vmatpush1.msra.mxu0 0.0
    %1171 = vmatprep.subr.mxu0 0.0
    %1172 = vmatpush1.msra.mxu0 0.0
    %1173 = vmatprep.subr.mxu0 0.0
    %1174 = vmatpush1.msra.mxu0 0.0
    %1175 = vmatprep.subr.mxu0 0.0
    %1176 = vmatpush1.msra.mxu0 0.0
    %1177 = vmatprep.subr.mxu0 0.0
    %1178 = vmatpush1.msra.mxu0 0.0
    %1179 = vmatprep.subr.mxu0 0.0
    %1180 = vmatpush1.msra.mxu0 0.0
    %1181 = vmatprep.subr.mxu0 0.0
    %1182 = vmatpush1.msra.mxu0 0.0
    %1183 = vmatprep.subr.mxu0 0.0
    %1184 = vmatpush1.msra.mxu0 0.0
    %1185 = vmatprep.subr.mxu0 0.0
    %1186 = vmatpush1.msra.mxu0 0.0
    %1187 = vmatprep.subr.mxu0 0.0
    %1188 = vmatpush1.msra.mxu0 0.0
    %1189 = vmatprep.subr.mxu0 0.0
    %1190 = vmatpush1.msra.mxu0 0.0
    %1191 = vmatprep.subr.mxu0 0.0
    %1192 = vmatpush1.msra.mxu0 0.0
    %1193 = vmatprep.subr.mxu0 0.0
    %1194 = vmatpush1.msra.mxu0 0.0
    %1195 = vmatprep.subr.mxu0 0.0
    %1196 = vmatpush1.msra.mxu0 0.0
    %1197 = vmatprep.subr.mxu0 0.0
    %1198 = vmatpush1.msra.mxu0 0.0
    %1199 = vmatprep.subr.mxu0 0.0
    %1200 = vmatpush1.msra.mxu0 0.0
    %1201 = vmatprep.subr.mxu0 0.0
    %1202 = vmatpush1.msra.mxu0 0.0
    %1203 = vmatprep.subr.mxu0 0.0
    %1204 = vmatpush1.msra.mxu0 0.0
    %1205 = vmatprep.subr.mxu0 0.0
    %1206 = vmatpush1.msra.mxu0 0.0
    %1207 = vmatprep.subr.mxu0 0.0
    %1208 = vmatpush1.msra.mxu0 0.0
    %1209 = vmatprep.subr.mxu0 0.0
    %1210 = vmatpush1.msra.mxu0 0.0
    %1211 = vmatprep.subr.mxu0 0.0
    %1212 = vmatpush1.msra.mxu0 0.0
    %1213 = vmatprep.subr.mxu0 0.0
    %1214 = vmatpush1.msra.mxu0 0.0
    %1215 = vmatprep.mubr.f32.mxu0 0.0
    %1216 = vmatmul.mubr.f32.gmra.mrb[0].mxu0 %v1149
    %v1217 = vpop.f32.mrb[0].mxu0
    %v1218 = vadd.f32 0.0, %v1217
    %v1219 = vpop.f32.mrb[0].mxu0
    %1220 = vdwg.mxu0
    %v1221 = vadd.f32 %v1145, %v1218
    %v1222 = vmul.f32 %v1221, 0.5
    %v1223 = vtanh.pop %v1222
    %v1224 = vmul.f32 %v1223, 0.5
    %v1225 = vadd.f32 %v1224, 0.5
    %v1226 = vtanh.pop %v1221
    %v1227 = vmul.f32 %v1225, %v1141
    %1229 = vrot.lane.b32.xlu0 %v1226, 64
    %v1230 = vpop.permute.xlu0 %1229
    %v1232 = vmul.f32 %v1225, %v1230
    %1234 = vrot.lane.b32.xlu0 %v1232, 32
    %v1235 = vpop.permute.xlu0 %1234
    %v1237 = vadd.f32 %v1227, %v1235
    %v1238 = vtanh.pop %v1237
    %1240 = vrot.lane.b32.xlu0 %v1238, 64
    %v1241 = vpop.permute.xlu0 %1240
    %v1243 = vmul.f32 %v1225, %v1241
    %p1244 = scmp.gt.s32.totalorder %s489, 6
    %s1245 = scalar_select %p1244, 1, 0
    %v1246 = vstv %s1245
    %vm1247 = vcmp.eq.s32.totalorder %v1246, 1
    %v1248 = vsel %vm1247, %v1243, %v1140
    %v1249 = vsel %vm1247, %v1237, %v1141
    %s1250 = scalar_lea.vmem [#allocation2], 28
    %v1251 = vld [vmem:[%s1250] sm:$0xf]
    %v1252 = vunpack.c.l.bf16 %v1251
    %v1253 = vadd.f32 %v1252, %v496
    %1255 = vrot.lane.b32.xlu0 %v1248, 32
    %v1256 = vpop.permute.xlu0 %1255
    %v1257 = vsel %vm499, %v1256, 0
    %1259 = vmatprep.subr.mxu0 0.0
    %1260 = vmatpush1.msra.mxu0 %v483
    %1261 = vmatprep.subr.mxu0 0.0
    %1262 = vmatpush1.msra.mxu0 %v484
    %1263 = vmatprep.subr.mxu0 0.0
    %1264 = vmatpush1.msra.mxu0 %v485
    %1265 = vmatprep.subr.mxu0 0.0
    %1266 = vmatpush1.msra.mxu0 %v486
    %1267 = vmatprep.subr.mxu0 0.0
    %1268 = vmatpush1.msra.mxu0 0.0
    %1269 = vmatprep.subr.mxu0 0.0
    %1270 = vmatpush1.msra.mxu0 0.0
    %1271 = vmatprep.subr.mxu0 0.0
    %1272 = vmatpush1.msra.mxu0 0.0
    %1273 = vmatprep.subr.mxu0 0.0
    %1274 = vmatpush1.msra.mxu0 0.0
    %1275 = vmatprep.subr.mxu0 0.0
    %1276 = vmatpush1.msra.mxu0 0.0
    %1277 = vmatprep.subr.mxu0 0.0
    %1278 = vmatpush1.msra.mxu0 0.0
    %1279 = vmatprep.subr.mxu0 0.0
    %1280 = vmatpush1.msra.mxu0 0.0
    %1281 = vmatprep.subr.mxu0 0.0
    %1282 = vmatpush1.msra.mxu0 0.0
    %1283 = vmatprep.subr.mxu0 0.0
    %1284 = vmatpush1.msra.mxu0 0.0
    %1285 = vmatprep.subr.mxu0 0.0
    %1286 = vmatpush1.msra.mxu0 0.0
    %1287 = vmatprep.subr.mxu0 0.0
    %1288 = vmatpush1.msra.mxu0 0.0
    %1289 = vmatprep.subr.mxu0 0.0
    %1290 = vmatpush1.msra.mxu0 0.0
    %1291 = vmatprep.subr.mxu0 0.0
    %1292 = vmatpush1.msra.mxu0 0.0
    %1293 = vmatprep.subr.mxu0 0.0
    %1294 = vmatpush1.msra.mxu0 0.0
    %1295 = vmatprep.subr.mxu0 0.0
    %1296 = vmatpush1.msra.mxu0 0.0
    %1297 = vmatprep.subr.mxu0 0.0
    %1298 = vmatpush1.msra.mxu0 0.0
    %1299 = vmatprep.subr.mxu0 0.0
    %1300 = vmatpush1.msra.mxu0 0.0
    %1301 = vmatprep.subr.mxu0 0.0
    %1302 = vmatpush1.msra.mxu0 0.0
    %1303 = vmatprep.subr.mxu0 0.0
    %1304 = vmatpush1.msra.mxu0 0.0
    %1305 = vmatprep.subr.mxu0 0.0
    %1306 = vmatpush1.msra.mxu0 0.0
    %1307 = vmatprep.subr.mxu0 0.0
    %1308 = vmatpush1.msra.mxu0 0.0
    %1309 = vmatprep.subr.mxu0 0.0
    %1310 = vmatpush1.msra.mxu0 0.0
    %1311 = vmatprep.subr.mxu0 0.0
    %1312 = vmatpush1.msra.mxu0 0.0
    %1313 = vmatprep.subr.mxu0 0.0
    %1314 = vmatpush1.msra.mxu0 0.0
    %1315 = vmatprep.subr.mxu0 0.0
    %1316 = vmatpush1.msra.mxu0 0.0
    %1317 = vmatprep.subr.mxu0 0.0
    %1318 = vmatpush1.msra.mxu0 0.0
    %1319 = vmatprep.subr.mxu0 0.0
    %1320 = vmatpush1.msra.mxu0 0.0
    %1321 = vmatprep.subr.mxu0 0.0
    %1322 = vmatpush1.msra.mxu0 0.0
    %1323 = vmatprep.mubr.f32.mxu0 0.0
    %1324 = vmatmul.mubr.f32.gmra.mrb[0].mxu0 %v1257
    %v1325 = vpop.f32.mrb[0].mxu0
    %v1326 = vadd.f32 0.0, %v1325
    %v1327 = vpop.f32.mrb[0].mxu0
    %1328 = vdwg.mxu0
    %v1329 = vadd.f32 %v1253, %v1326
    %v1330 = vmul.f32 %v1329, 0.5
    %v1331 = vtanh.pop %v1330
    %v1332 = vmul.f32 %v1331, 0.5
    %v1333 = vadd.f32 %v1332, 0.5
    %v1334 = vtanh.pop %v1329
    %v1335 = vmul.f32 %v1333, %v1249
    %1337 = vrot.lane.b32.xlu0 %v1334, 64
    %v1338 = vpop.permute.xlu0 %1337
    %v1340 = vmul.f32 %v1333, %v1338
    %1342 = vrot.lane.b32.xlu0 %v1340, 32
    %v1343 = vpop.permute.xlu0 %1342
    %v1345 = vadd.f32 %v1335, %v1343
    %v1346 = vtanh.pop %v1345
    %1348 = vrot.lane.b32.xlu0 %v1346, 64
    %v1349 = vpop.permute.xlu0 %1348
    %v1351 = vmul.f32 %v1333, %v1349
    %p1352 = scmp.gt.s32.totalorder %s489, 7
    %s1353 = scalar_select %p1352, 1, 0
    %v1354 = vstv %s1353
    %vm1355 = vcmp.eq.s32.totalorder %v1354, 1
    %v1356 = vsel %vm1355, %v1351, %v1248
    %v1357 = vsel %vm1355, %v1345, %v1249
    %s1358 = scalar_lea.vmem [#allocation2], 32
    %v1359 = vld [vmem:[%s1358] sm:$0xf]
    %v1360 = vunpack.c.l.bf16 %v1359
    %v1361 = vadd.f32 %v1360, %v496
    %1363 = vrot.lane.b32.xlu0 %v1356, 32
    %v1364 = vpop.permute.xlu0 %1363
    %v1365 = vsel %vm499, %v1364, 0
    %1367 = vmatprep.subr.mxu0 0.0
    %1368 = vmatpush1.msra.mxu0 %v483
    %1369 = vmatprep.subr.mxu0 0.0
    %1370 = vmatpush1.msra.mxu0 %v484
    %1371 = vmatprep.subr.mxu0 0.0
    %1372 = vmatpush1.msra.mxu0 %v485
    %1373 = vmatprep.subr.mxu0 0.0
    %1374 = vmatpush1.msra.mxu0 %v486
    %1375 = vmatprep.subr.mxu0 0.0
    %1376 = vmatpush1.msra.mxu0 0.0
    %1377 = vmatprep.subr.mxu0 0.0
    %1378 = vmatpush1.msra.mxu0 0.0
    %1379 = vmatprep.subr.mxu0 0.0
    %1380 = vmatpush1.msra.mxu0 0.0
    %1381 = vmatprep.subr.mxu0 0.0
    %1382 = vmatpush1.msra.mxu0 0.0
    %1383 = vmatprep.subr.mxu0 0.0
    %1384 = vmatpush1.msra.mxu0 0.0
    %1385 = vmatprep.subr.mxu0 0.0
    %1386 = vmatpush1.msra.mxu0 0.0
    %1387 = vmatprep.subr.mxu0 0.0
    %1388 = vmatpush1.msra.mxu0 0.0
    %1389 = vmatprep.subr.mxu0 0.0
    %1390 = vmatpush1.msra.mxu0 0.0
    %1391 = vmatprep.subr.mxu0 0.0
    %1392 = vmatpush1.msra.mxu0 0.0
    %1393 = vmatprep.subr.mxu0 0.0
    %1394 = vmatpush1.msra.mxu0 0.0
    %1395 = vmatprep.subr.mxu0 0.0
    %1396 = vmatpush1.msra.mxu0 0.0
    %1397 = vmatprep.subr.mxu0 0.0
    %1398 = vmatpush1.msra.mxu0 0.0
    %1399 = vmatprep.subr.mxu0 0.0
    %1400 = vmatpush1.msra.mxu0 0.0
    %1401 = vmatprep.subr.mxu0 0.0
    %1402 = vmatpush1.msra.mxu0 0.0
    %1403 = vmatprep.subr.mxu0 0.0
    %1404 = vmatpush1.msra.mxu0 0.0
    %1405 = vmatprep.subr.mxu0 0.0
    %1406 = vmatpush1.msra.mxu0 0.0
    %1407 = vmatprep.subr.mxu0 0.0
    %1408 = vmatpush1.msra.mxu0 0.0
    %1409 = vmatprep.subr.mxu0 0.0
    %1410 = vmatpush1.msra.mxu0 0.0
    %1411 = vmatprep.subr.mxu0 0.0
    %1412 = vmatpush1.msra.mxu0 0.0
    %1413 = vmatprep.subr.mxu0 0.0
    %1414 = vmatpush1.msra.mxu0 0.0
    %1415 = vmatprep.subr.mxu0 0.0
    %1416 = vmatpush1.msra.mxu0 0.0
    %1417 = vmatprep.subr.mxu0 0.0
    %1418 = vmatpush1.msra.mxu0 0.0
    %1419 = vmatprep.subr.mxu0 0.0
    %1420 = vmatpush1.msra.mxu0 0.0
    %1421 = vmatprep.subr.mxu0 0.0
    %1422 = vmatpush1.msra.mxu0 0.0
    %1423 = vmatprep.subr.mxu0 0.0
    %1424 = vmatpush1.msra.mxu0 0.0
    %1425 = vmatprep.subr.mxu0 0.0
    %1426 = vmatpush1.msra.mxu0 0.0
    %1427 = vmatprep.subr.mxu0 0.0
    %1428 = vmatpush1.msra.mxu0 0.0
    %1429 = vmatprep.subr.mxu0 0.0
    %1430 = vmatpush1.msra.mxu0 0.0
    %1431 = vmatprep.mubr.f32.mxu0 0.0
    %1432 = vmatmul.mubr.f32.gmra.mrb[0].mxu0 %v1365
    %v1433 = vpop.f32.mrb[0].mxu0
    %v1434 = vadd.f32 0.0, %v1433
    %v1435 = vpop.f32.mrb[0].mxu0
    %1436 = vdwg.mxu0
    %v1437 = vadd.f32 %v1361, %v1434
    %v1438 = vmul.f32 %v1437, 0.5
    %v1439 = vtanh.pop %v1438
    %v1440 = vmul.f32 %v1439, 0.5
    %v1441 = vadd.f32 %v1440, 0.5
    %v1442 = vtanh.pop %v1437
    %v1443 = vmul.f32 %v1441, %v1357
    %1445 = vrot.lane.b32.xlu0 %v1442, 64
    %v1446 = vpop.permute.xlu0 %1445
    %v1448 = vmul.f32 %v1441, %v1446
    %1450 = vrot.lane.b32.xlu0 %v1448, 32
    %v1451 = vpop.permute.xlu0 %1450
    %v1453 = vadd.f32 %v1443, %v1451
    %v1454 = vtanh.pop %v1453
    %1456 = vrot.lane.b32.xlu0 %v1454, 64
    %v1457 = vpop.permute.xlu0 %1456
    %v1459 = vmul.f32 %v1441, %v1457
    %p1460 = scmp.gt.s32.totalorder %s489, 8
    %s1461 = scalar_select %p1460, 1, 0
    %v1462 = vstv %s1461
    %vm1463 = vcmp.eq.s32.totalorder %v1462, 1
    %v1464 = vsel %vm1463, %v1459, %v1356
    %v1465 = vsel %vm1463, %v1453, %v1357
    %s1466 = scalar_lea.vmem [#allocation2], 36
    %v1467 = vld [vmem:[%s1466] sm:$0xf]
    %v1468 = vunpack.c.l.bf16 %v1467
    %v1469 = vadd.f32 %v1468, %v496
    %1471 = vrot.lane.b32.xlu0 %v1464, 32
    %v1472 = vpop.permute.xlu0 %1471
    %v1473 = vsel %vm499, %v1472, 0
    %1475 = vmatprep.subr.mxu0 0.0
    %1476 = vmatpush1.msra.mxu0 %v483
    %1477 = vmatprep.subr.mxu0 0.0
    %1478 = vmatpush1.msra.mxu0 %v484
    %1479 = vmatprep.subr.mxu0 0.0
    %1480 = vmatpush1.msra.mxu0 %v485
    %1481 = vmatprep.subr.mxu0 0.0
    %1482 = vmatpush1.msra.mxu0 %v486
    %1483 = vmatprep.subr.mxu0 0.0
    %1484 = vmatpush1.msra.mxu0 0.0
    %1485 = vmatprep.subr.mxu0 0.0
    %1486 = vmatpush1.msra.mxu0 0.0
    %1487 = vmatprep.subr.mxu0 0.0
    %1488 = vmatpush1.msra.mxu0 0.0
    %1489 = vmatprep.subr.mxu0 0.0
    %1490 = vmatpush1.msra.mxu0 0.0
    %1491 = vmatprep.subr.mxu0 0.0
    %1492 = vmatpush1.msra.mxu0 0.0
    %1493 = vmatprep.subr.mxu0 0.0
    %1494 = vmatpush1.msra.mxu0 0.0
    %1495 = vmatprep.subr.mxu0 0.0
    %1496 = vmatpush1.msra.mxu0 0.0
    %1497 = vmatprep.subr.mxu0 0.0
    %1498 = vmatpush1.msra.mxu0 0.0
    %1499 = vmatprep.subr.mxu0 0.0
    %1500 = vmatpush1.msra.mxu0 0.0
    %1501 = vmatprep.subr.mxu0 0.0
    %1502 = vmatpush1.msra.mxu0 0.0
    %1503 = vmatprep.subr.mxu0 0.0
    %1504 = vmatpush1.msra.mxu0 0.0
    %1505 = vmatprep.subr.mxu0 0.0
    %1506 = vmatpush1.msra.mxu0 0.0
    %1507 = vmatprep.subr.mxu0 0.0
    %1508 = vmatpush1.msra.mxu0 0.0
    %1509 = vmatprep.subr.mxu0 0.0
    %1510 = vmatpush1.msra.mxu0 0.0
    %1511 = vmatprep.subr.mxu0 0.0
    %1512 = vmatpush1.msra.mxu0 0.0
    %1513 = vmatprep.subr.mxu0 0.0
    %1514 = vmatpush1.msra.mxu0 0.0
    %1515 = vmatprep.subr.mxu0 0.0
    %1516 = vmatpush1.msra.mxu0 0.0
    %1517 = vmatprep.subr.mxu0 0.0
    %1518 = vmatpush1.msra.mxu0 0.0
    %1519 = vmatprep.subr.mxu0 0.0
    %1520 = vmatpush1.msra.mxu0 0.0
    %1521 = vmatprep.subr.mxu0 0.0
    %1522 = vmatpush1.msra.mxu0 0.0
    %1523 = vmatprep.subr.mxu0 0.0
    %1524 = vmatpush1.msra.mxu0 0.0
    %1525 = vmatprep.subr.mxu0 0.0
    %1526 = vmatpush1.msra.mxu0 0.0
    %1527 = vmatprep.subr.mxu0 0.0
    %1528 = vmatpush1.msra.mxu0 0.0
    %1529 = vmatprep.subr.mxu0 0.0
    %1530 = vmatpush1.msra.mxu0 0.0
    %1531 = vmatprep.subr.mxu0 0.0
    %1532 = vmatpush1.msra.mxu0 0.0
    %1533 = vmatprep.subr.mxu0 0.0
    %1534 = vmatpush1.msra.mxu0 0.0
    %1535 = vmatprep.subr.mxu0 0.0
    %1536 = vmatpush1.msra.mxu0 0.0
    %1537 = vmatprep.subr.mxu0 0.0
    %1538 = vmatpush1.msra.mxu0 0.0
    %1539 = vmatprep.mubr.f32.mxu0 0.0
    %1540 = vmatmul.mubr.f32.gmra.mrb[0].mxu0 %v1473
    %v1541 = vpop.f32.mrb[0].mxu0
    %v1542 = vadd.f32 0.0, %v1541
    %v1543 = vpop.f32.mrb[0].mxu0
    %1544 = vdwg.mxu0
    %v1545 = vadd.f32 %v1469, %v1542
    %v1546 = vmul.f32 %v1545, 0.5
    %v1547 = vtanh.pop %v1546
    %v1548 = vmul.f32 %v1547, 0.5
    %v1549 = vadd.f32 %v1548, 0.5
    %v1550 = vtanh.pop %v1545
    %v1551 = vmul.f32 %v1549, %v1465
    %1553 = vrot.lane.b32.xlu0 %v1550, 64
    %v1554 = vpop.permute.xlu0 %1553
    %v1556 = vmul.f32 %v1549, %v1554
    %1558 = vrot.lane.b32.xlu0 %v1556, 32
    %v1559 = vpop.permute.xlu0 %1558
    %v1561 = vadd.f32 %v1551, %v1559
    %v1562 = vtanh.pop %v1561
    %1564 = vrot.lane.b32.xlu0 %v1562, 64
    %v1565 = vpop.permute.xlu0 %1564
    %v1567 = vmul.f32 %v1549, %v1565
    %p1568 = scmp.gt.s32.totalorder %s489, 9
    %s1569 = scalar_select %p1568, 1, 0
    %v1570 = vstv %s1569
    %vm1571 = vcmp.eq.s32.totalorder %v1570, 1
    %v1572 = vsel %vm1571, %v1567, %v1464
    %v1573 = vsel %vm1571, %v1561, %v1465
    %s1574 = scalar_lea.vmem [#allocation2], 40
    %v1575 = vld [vmem:[%s1574] sm:$0xf]
    %v1576 = vunpack.c.l.bf16 %v1575
    %v1577 = vadd.f32 %v1576, %v496
    %1579 = vrot.lane.b32.xlu0 %v1572, 32
    %v1580 = vpop.permute.xlu0 %1579
    %v1581 = vsel %vm499, %v1580, 0
    %1583 = vmatprep.subr.mxu0 0.0
    %1584 = vmatpush1.msra.mxu0 %v483
    %1585 = vmatprep.subr.mxu0 0.0
    %1586 = vmatpush1.msra.mxu0 %v484
    %1587 = vmatprep.subr.mxu0 0.0
    %1588 = vmatpush1.msra.mxu0 %v485
    %1589 = vmatprep.subr.mxu0 0.0
    %1590 = vmatpush1.msra.mxu0 %v486
    %1591 = vmatprep.subr.mxu0 0.0
    %1592 = vmatpush1.msra.mxu0 0.0
    %1593 = vmatprep.subr.mxu0 0.0
    %1594 = vmatpush1.msra.mxu0 0.0
    %1595 = vmatprep.subr.mxu0 0.0
    %1596 = vmatpush1.msra.mxu0 0.0
    %1597 = vmatprep.subr.mxu0 0.0
    %1598 = vmatpush1.msra.mxu0 0.0
    %1599 = vmatprep.subr.mxu0 0.0
    %1600 = vmatpush1.msra.mxu0 0.0
    %1601 = vmatprep.subr.mxu0 0.0
    %1602 = vmatpush1.msra.mxu0 0.0
    %1603 = vmatprep.subr.mxu0 0.0
    %1604 = vmatpush1.msra.mxu0 0.0
    %1605 = vmatprep.subr.mxu0 0.0
    %1606 = vmatpush1.msra.mxu0 0.0
    %1607 = vmatprep.subr.mxu0 0.0
    %1608 = vmatpush1.msra.mxu0 0.0
    %1609 = vmatprep.subr.mxu0 0.0
    %1610 = vmatpush1.msra.mxu0 0.0
    %1611 = vmatprep.subr.mxu0 0.0
    %1612 = vmatpush1.msra.mxu0 0.0
    %1613 = vmatprep.subr.mxu0 0.0
    %1614 = vmatpush1.msra.mxu0 0.0
    %1615 = vmatprep.subr.mxu0 0.0
    %1616 = vmatpush1.msra.mxu0 0.0
    %1617 = vmatprep.subr.mxu0 0.0
    %1618 = vmatpush1.msra.mxu0 0.0
    %1619 = vmatprep.subr.mxu0 0.0
    %1620 = vmatpush1.msra.mxu0 0.0
    %1621 = vmatprep.subr.mxu0 0.0
    %1622 = vmatpush1.msra.mxu0 0.0
    %1623 = vmatprep.subr.mxu0 0.0
    %1624 = vmatpush1.msra.mxu0 0.0
    %1625 = vmatprep.subr.mxu0 0.0
    %1626 = vmatpush1.msra.mxu0 0.0
    %1627 = vmatprep.subr.mxu0 0.0
    %1628 = vmatpush1.msra.mxu0 0.0
    %1629 = vmatprep.subr.mxu0 0.0
    %1630 = vmatpush1.msra.mxu0 0.0
    %1631 = vmatprep.subr.mxu0 0.0
    %1632 = vmatpush1.msra.mxu0 0.0
    %1633 = vmatprep.subr.mxu0 0.0
    %1634 = vmatpush1.msra.mxu0 0.0
    %1635 = vmatprep.subr.mxu0 0.0
    %1636 = vmatpush1.msra.mxu0 0.0
    %1637 = vmatprep.subr.mxu0 0.0
    %1638 = vmatpush1.msra.mxu0 0.0
    %1639 = vmatprep.subr.mxu0 0.0
    %1640 = vmatpush1.msra.mxu0 0.0
    %1641 = vmatprep.subr.mxu0 0.0
    %1642 = vmatpush1.msra.mxu0 0.0
    %1643 = vmatprep.subr.mxu0 0.0
    %1644 = vmatpush1.msra.mxu0 0.0
    %1645 = vmatprep.subr.mxu0 0.0
    %1646 = vmatpush1.msra.mxu0 0.0
    %1647 = vmatprep.mubr.f32.mxu0 0.0
    %1648 = vmatmul.mubr.f32.gmra.mrb[0].mxu0 %v1581
    %v1649 = vpop.f32.mrb[0].mxu0
    %v1650 = vadd.f32 0.0, %v1649
    %v1651 = vpop.f32.mrb[0].mxu0
    %1652 = vdwg.mxu0
    %v1653 = vadd.f32 %v1577, %v1650
    %v1654 = vmul.f32 %v1653, 0.5
    %v1655 = vtanh.pop %v1654
    %v1656 = vmul.f32 %v1655, 0.5
    %v1657 = vadd.f32 %v1656, 0.5
    %v1658 = vtanh.pop %v1653
    %v1659 = vmul.f32 %v1657, %v1573
    %1661 = vrot.lane.b32.xlu0 %v1658, 64
    %v1662 = vpop.permute.xlu0 %1661
    %v1664 = vmul.f32 %v1657, %v1662
    %1666 = vrot.lane.b32.xlu0 %v1664, 32
    %v1667 = vpop.permute.xlu0 %1666
    %v1669 = vadd.f32 %v1659, %v1667
    %v1670 = vtanh.pop %v1669
    %1672 = vrot.lane.b32.xlu0 %v1670, 64
    %v1673 = vpop.permute.xlu0 %1672
    %v1675 = vmul.f32 %v1657, %v1673
    %p1676 = scmp.gt.s32.totalorder %s489, 10
    %s1677 = scalar_select %p1676, 1, 0
    %v1678 = vstv %s1677
    %vm1679 = vcmp.eq.s32.totalorder %v1678, 1
    %v1680 = vsel %vm1679, %v1675, %v1572
    %v1681 = vsel %vm1679, %v1669, %v1573
    %s1682 = scalar_lea.vmem [#allocation2], 44
    %v1683 = vld [vmem:[%s1682] sm:$0xf]
    %v1684 = vunpack.c.l.bf16 %v1683
    %v1685 = vadd.f32 %v1684, %v496
    %1687 = vrot.lane.b32.xlu0 %v1680, 32
    %v1688 = vpop.permute.xlu0 %1687
    %v1689 = vsel %vm499, %v1688, 0
    %1691 = vmatprep.subr.mxu0 0.0
    %1692 = vmatpush1.msra.mxu0 %v483
    %1693 = vmatprep.subr.mxu0 0.0
    %1694 = vmatpush1.msra.mxu0 %v484
    %1695 = vmatprep.subr.mxu0 0.0
    %1696 = vmatpush1.msra.mxu0 %v485
    %1697 = vmatprep.subr.mxu0 0.0
    %1698 = vmatpush1.msra.mxu0 %v486
    %1699 = vmatprep.subr.mxu0 0.0
    %1700 = vmatpush1.msra.mxu0 0.0
    %1701 = vmatprep.subr.mxu0 0.0
    %1702 = vmatpush1.msra.mxu0 0.0
    %1703 = vmatprep.subr.mxu0 0.0
    %1704 = vmatpush1.msra.mxu0 0.0
    %1705 = vmatprep.subr.mxu0 0.0
    %1706 = vmatpush1.msra.mxu0 0.0
    %1707 = vmatprep.subr.mxu0 0.0
    %1708 = vmatpush1.msra.mxu0 0.0
    %1709 = vmatprep.subr.mxu0 0.0
    %1710 = vmatpush1.msra.mxu0 0.0
    %1711 = vmatprep.subr.mxu0 0.0
    %1712 = vmatpush1.msra.mxu0 0.0
    %1713 = vmatprep.subr.mxu0 0.0
    %1714 = vmatpush1.msra.mxu0 0.0
    %1715 = vmatprep.subr.mxu0 0.0
    %1716 = vmatpush1.msra.mxu0 0.0
    %1717 = vmatprep.subr.mxu0 0.0
    %1718 = vmatpush1.msra.mxu0 0.0
    %1719 = vmatprep.subr.mxu0 0.0
    %1720 = vmatpush1.msra.mxu0 0.0
    %1721 = vmatprep.subr.mxu0 0.0
    %1722 = vmatpush1.msra.mxu0 0.0
    %1723 = vmatprep.subr.mxu0 0.0
    %1724 = vmatpush1.msra.mxu0 0.0
    %1725 = vmatprep.subr.mxu0 0.0
    %1726 = vmatpush1.msra.mxu0 0.0
    %1727 = vmatprep.subr.mxu0 0.0
    %1728 = vmatpush1.msra.mxu0 0.0
    %1729 = vmatprep.subr.mxu0 0.0
    %1730 = vmatpush1.msra.mxu0 0.0
    %1731 = vmatprep.subr.mxu0 0.0
    %1732 = vmatpush1.msra.mxu0 0.0
    %1733 = vmatprep.subr.mxu0 0.0
    %1734 = vmatpush1.msra.mxu0 0.0
    %1735 = vmatprep.subr.mxu0 0.0
    %1736 = vmatpush1.msra.mxu0 0.0
    %1737 = vmatprep.subr.mxu0 0.0
    %1738 = vmatpush1.msra.mxu0 0.0
    %1739 = vmatprep.subr.mxu0 0.0
    %1740 = vmatpush1.msra.mxu0 0.0
    %1741 = vmatprep.subr.mxu0 0.0
    %1742 = vmatpush1.msra.mxu0 0.0
    %1743 = vmatprep.subr.mxu0 0.0
    %1744 = vmatpush1.msra.mxu0 0.0
    %1745 = vmatprep.subr.mxu0 0.0
    %1746 = vmatpush1.msra.mxu0 0.0
    %1747 = vmatprep.subr.mxu0 0.0
    %1748 = vmatpush1.msra.mxu0 0.0
    %1749 = vmatprep.subr.mxu0 0.0
    %1750 = vmatpush1.msra.mxu0 0.0
    %1751 = vmatprep.subr.mxu0 0.0
    %1752 = vmatpush1.msra.mxu0 0.0
    %1753 = vmatprep.subr.mxu0 0.0
    %1754 = vmatpush1.msra.mxu0 0.0
    %1755 = vmatprep.mubr.f32.mxu0 0.0
    %1756 = vmatmul.mubr.f32.gmra.mrb[0].mxu0 %v1689
    %v1757 = vpop.f32.mrb[0].mxu0
    %v1758 = vadd.f32 0.0, %v1757
    %v1759 = vpop.f32.mrb[0].mxu0
    %1760 = vdwg.mxu0
    %v1761 = vadd.f32 %v1685, %v1758
    %v1762 = vmul.f32 %v1761, 0.5
    %v1763 = vtanh.pop %v1762
    %v1764 = vmul.f32 %v1763, 0.5
    %v1765 = vadd.f32 %v1764, 0.5
    %v1766 = vtanh.pop %v1761
    %v1767 = vmul.f32 %v1765, %v1681
    %1769 = vrot.lane.b32.xlu0 %v1766, 64
    %v1770 = vpop.permute.xlu0 %1769
    %v1772 = vmul.f32 %v1765, %v1770
    %1774 = vrot.lane.b32.xlu0 %v1772, 32
    %v1775 = vpop.permute.xlu0 %1774
    %v1777 = vadd.f32 %v1767, %v1775
    %v1778 = vtanh.pop %v1777
    %1780 = vrot.lane.b32.xlu0 %v1778, 64
    %v1781 = vpop.permute.xlu0 %1780
    %v1783 = vmul.f32 %v1765, %v1781
    %p1784 = scmp.gt.s32.totalorder %s489, 11
    %s1785 = scalar_select %p1784, 1, 0
    %v1786 = vstv %s1785
    %vm1787 = vcmp.eq.s32.totalorder %v1786, 1
    %v1788 = vsel %vm1787, %v1783, %v1680
    %v1789 = vsel %vm1787, %v1777, %v1681
    %s1790 = scalar_lea.vmem [#allocation2], 48
    %v1791 = vld [vmem:[%s1790] sm:$0xf]
    %v1792 = vunpack.c.l.bf16 %v1791
    %v1793 = vadd.f32 %v1792, %v496
    %1795 = vrot.lane.b32.xlu0 %v1788, 32
    %v1796 = vpop.permute.xlu0 %1795
    %v1797 = vsel %vm499, %v1796, 0
    %1799 = vmatprep.subr.mxu0 0.0
    %1800 = vmatpush1.msra.mxu0 %v483
    %1801 = vmatprep.subr.mxu0 0.0
    %1802 = vmatpush1.msra.mxu0 %v484
    %1803 = vmatprep.subr.mxu0 0.0
    %1804 = vmatpush1.msra.mxu0 %v485
    %1805 = vmatprep.subr.mxu0 0.0
    %1806 = vmatpush1.msra.mxu0 %v486
    %1807 = vmatprep.subr.mxu0 0.0
    %1808 = vmatpush1.msra.mxu0 0.0
    %1809 = vmatprep.subr.mxu0 0.0
    %1810 = vmatpush1.msra.mxu0 0.0
    %1811 = vmatprep.subr.mxu0 0.0
    %1812 = vmatpush1.msra.mxu0 0.0
    %1813 = vmatprep.subr.mxu0 0.0
    %1814 = vmatpush1.msra.mxu0 0.0
    %1815 = vmatprep.subr.mxu0 0.0
    %1816 = vmatpush1.msra.mxu0 0.0
    %1817 = vmatprep.subr.mxu0 0.0
    %1818 = vmatpush1.msra.mxu0 0.0
    %1819 = vmatprep.subr.mxu0 0.0
    %1820 = vmatpush1.msra.mxu0 0.0
    %1821 = vmatprep.subr.mxu0 0.0
    %1822 = vmatpush1.msra.mxu0 0.0
    %1823 = vmatprep.subr.mxu0 0.0
    %1824 = vmatpush1.msra.mxu0 0.0
    %1825 = vmatprep.subr.mxu0 0.0
    %1826 = vmatpush1.msra.mxu0 0.0
    %1827 = vmatprep.subr.mxu0 0.0
    %1828 = vmatpush1.msra.mxu0 0.0
    %1829 = vmatprep.subr.mxu0 0.0
    %1830 = vmatpush1.msra.mxu0 0.0
    %1831 = vmatprep.subr.mxu0 0.0
    %1832 = vmatpush1.msra.mxu0 0.0
    %1833 = vmatprep.subr.mxu0 0.0
    %1834 = vmatpush1.msra.mxu0 0.0
    %1835 = vmatprep.subr.mxu0 0.0
    %1836 = vmatpush1.msra.mxu0 0.0
    %1837 = vmatprep.subr.mxu0 0.0
    %1838 = vmatpush1.msra.mxu0 0.0
    %1839 = vmatprep.subr.mxu0 0.0
    %1840 = vmatpush1.msra.mxu0 0.0
    %1841 = vmatprep.subr.mxu0 0.0
    %1842 = vmatpush1.msra.mxu0 0.0
    %1843 = vmatprep.subr.mxu0 0.0
    %1844 = vmatpush1.msra.mxu0 0.0
    %1845 = vmatprep.subr.mxu0 0.0
    %1846 = vmatpush1.msra.mxu0 0.0
    %1847 = vmatprep.subr.mxu0 0.0
    %1848 = vmatpush1.msra.mxu0 0.0
    %1849 = vmatprep.subr.mxu0 0.0
    %1850 = vmatpush1.msra.mxu0 0.0
    %1851 = vmatprep.subr.mxu0 0.0
    %1852 = vmatpush1.msra.mxu0 0.0
    %1853 = vmatprep.subr.mxu0 0.0
    %1854 = vmatpush1.msra.mxu0 0.0
    %1855 = vmatprep.subr.mxu0 0.0
    %1856 = vmatpush1.msra.mxu0 0.0
    %1857 = vmatprep.subr.mxu0 0.0
    %1858 = vmatpush1.msra.mxu0 0.0
    %1859 = vmatprep.subr.mxu0 0.0
    %1860 = vmatpush1.msra.mxu0 0.0
    %1861 = vmatprep.subr.mxu0 0.0
    %1862 = vmatpush1.msra.mxu0 0.0
    %1863 = vmatprep.mubr.f32.mxu0 0.0
    %1864 = vmatmul.mubr.f32.gmra.mrb[0].mxu0 %v1797
    %v1865 = vpop.f32.mrb[0].mxu0
    %v1866 = vadd.f32 0.0, %v1865
    %v1867 = vpop.f32.mrb[0].mxu0
    %1868 = vdwg.mxu0
    %v1869 = vadd.f32 %v1793, %v1866
    %v1870 = vmul.f32 %v1869, 0.5
    %v1871 = vtanh.pop %v1870
    %v1872 = vmul.f32 %v1871, 0.5
    %v1873 = vadd.f32 %v1872, 0.5
    %v1874 = vtanh.pop %v1869
    %v1875 = vmul.f32 %v1873, %v1789
    %1877 = vrot.lane.b32.xlu0 %v1874, 64
    %v1878 = vpop.permute.xlu0 %1877
    %v1880 = vmul.f32 %v1873, %v1878
    %1882 = vrot.lane.b32.xlu0 %v1880, 32
    %v1883 = vpop.permute.xlu0 %1882
    %v1885 = vadd.f32 %v1875, %v1883
    %v1886 = vtanh.pop %v1885
    %1888 = vrot.lane.b32.xlu0 %v1886, 64
    %v1889 = vpop.permute.xlu0 %1888
    %v1891 = vmul.f32 %v1873, %v1889
    %p1892 = scmp.gt.s32.totalorder %s489, 12
    %s1893 = scalar_select %p1892, 1, 0
    %v1894 = vstv %s1893
    %vm1895 = vcmp.eq.s32.totalorder %v1894, 1
    %v1896 = vsel %vm1895, %v1891, %v1788
    %v1897 = vsel %vm1895, %v1885, %v1789
    %s1898 = scalar_lea.vmem [#allocation2], 52
    %v1899 = vld [vmem:[%s1898] sm:$0xf]
    %v1900 = vunpack.c.l.bf16 %v1899
    %v1901 = vadd.f32 %v1900, %v496
    %1903 = vrot.lane.b32.xlu0 %v1896, 32
    %v1904 = vpop.permute.xlu0 %1903
    %v1905 = vsel %vm499, %v1904, 0
    %1907 = vmatprep.subr.mxu0 0.0
    %1908 = vmatpush1.msra.mxu0 %v483
    %1909 = vmatprep.subr.mxu0 0.0
    %1910 = vmatpush1.msra.mxu0 %v484
    %1911 = vmatprep.subr.mxu0 0.0
    %1912 = vmatpush1.msra.mxu0 %v485
    %1913 = vmatprep.subr.mxu0 0.0
    %1914 = vmatpush1.msra.mxu0 %v486
    %1915 = vmatprep.subr.mxu0 0.0
    %1916 = vmatpush1.msra.mxu0 0.0
    %1917 = vmatprep.subr.mxu0 0.0
    %1918 = vmatpush1.msra.mxu0 0.0
    %1919 = vmatprep.subr.mxu0 0.0
    %1920 = vmatpush1.msra.mxu0 0.0
    %1921 = vmatprep.subr.mxu0 0.0
    %1922 = vmatpush1.msra.mxu0 0.0
    %1923 = vmatprep.subr.mxu0 0.0
    %1924 = vmatpush1.msra.mxu0 0.0
    %1925 = vmatprep.subr.mxu0 0.0
    %1926 = vmatpush1.msra.mxu0 0.0
    %1927 = vmatprep.subr.mxu0 0.0
    %1928 = vmatpush1.msra.mxu0 0.0
    %1929 = vmatprep.subr.mxu0 0.0
    %1930 = vmatpush1.msra.mxu0 0.0
    %1931 = vmatprep.subr.mxu0 0.0
    %1932 = vmatpush1.msra.mxu0 0.0
    %1933 = vmatprep.subr.mxu0 0.0
    %1934 = vmatpush1.msra.mxu0 0.0
    %1935 = vmatprep.subr.mxu0 0.0
    %1936 = vmatpush1.msra.mxu0 0.0
    %1937 = vmatprep.subr.mxu0 0.0
    %1938 = vmatpush1.msra.mxu0 0.0
    %1939 = vmatprep.subr.mxu0 0.0
    %1940 = vmatpush1.msra.mxu0 0.0
    %1941 = vmatprep.subr.mxu0 0.0
    %1942 = vmatpush1.msra.mxu0 0.0
    %1943 = vmatprep.subr.mxu0 0.0
    %1944 = vmatpush1.msra.mxu0 0.0
    %1945 = vmatprep.subr.mxu0 0.0
    %1946 = vmatpush1.msra.mxu0 0.0
    %1947 = vmatprep.subr.mxu0 0.0
    %1948 = vmatpush1.msra.mxu0 0.0
    %1949 = vmatprep.subr.mxu0 0.0
    %1950 = vmatpush1.msra.mxu0 0.0
    %1951 = vmatprep.subr.mxu0 0.0
    %1952 = vmatpush1.msra.mxu0 0.0
    %1953 = vmatprep.subr.mxu0 0.0
    %1954 = vmatpush1.msra.mxu0 0.0
    %1955 = vmatprep.subr.mxu0 0.0
    %1956 = vmatpush1.msra.mxu0 0.0
    %1957 = vmatprep.subr.mxu0 0.0
    %1958 = vmatpush1.msra.mxu0 0.0
    %1959 = vmatprep.subr.mxu0 0.0
    %1960 = vmatpush1.msra.mxu0 0.0
    %1961 = vmatprep.subr.mxu0 0.0
    %1962 = vmatpush1.msra.mxu0 0.0
    %1963 = vmatprep.subr.mxu0 0.0
    %1964 = vmatpush1.msra.mxu0 0.0
    %1965 = vmatprep.subr.mxu0 0.0
    %1966 = vmatpush1.msra.mxu0 0.0
    %1967 = vmatprep.subr.mxu0 0.0
    %1968 = vmatpush1.msra.mxu0 0.0
    %1969 = vmatprep.subr.mxu0 0.0
    %1970 = vmatpush1.msra.mxu0 0.0
    %1971 = vmatprep.mubr.f32.mxu0 0.0
    %1972 = vmatmul.mubr.f32.gmra.mrb[0].mxu0 %v1905
    %v1973 = vpop.f32.mrb[0].mxu0
    %v1974 = vadd.f32 0.0, %v1973
    %v1975 = vpop.f32.mrb[0].mxu0
    %1976 = vdwg.mxu0
    %v1977 = vadd.f32 %v1901, %v1974
    %v1978 = vmul.f32 %v1977, 0.5
    %v1979 = vtanh.pop %v1978
    %v1980 = vmul.f32 %v1979, 0.5
    %v1981 = vadd.f32 %v1980, 0.5
    %v1982 = vtanh.pop %v1977
    %v1983 = vmul.f32 %v1981, %v1897
    %1985 = vrot.lane.b32.xlu0 %v1982, 64
    %v1986 = vpop.permute.xlu0 %1985
    %v1988 = vmul.f32 %v1981, %v1986
    %1990 = vrot.lane.b32.xlu0 %v1988, 32
    %v1991 = vpop.permute.xlu0 %1990
    %v1993 = vadd.f32 %v1983, %v1991
    %v1994 = vtanh.pop %v1993
    %1996 = vrot.lane.b32.xlu0 %v1994, 64
    %v1997 = vpop.permute.xlu0 %1996
    %v1999 = vmul.f32 %v1981, %v1997
    %p2000 = scmp.gt.s32.totalorder %s489, 13
    %s2001 = scalar_select %p2000, 1, 0
    %v2002 = vstv %s2001
    %vm2003 = vcmp.eq.s32.totalorder %v2002, 1
    %v2004 = vsel %vm2003, %v1999, %v1896
    %v2005 = vsel %vm2003, %v1993, %v1897
    %s2006 = scalar_lea.vmem [#allocation2], 56
    %v2007 = vld [vmem:[%s2006] sm:$0xf]
    %v2008 = vunpack.c.l.bf16 %v2007
    %v2009 = vadd.f32 %v2008, %v496
    %2011 = vrot.lane.b32.xlu0 %v2004, 32
    %v2012 = vpop.permute.xlu0 %2011
    %v2013 = vsel %vm499, %v2012, 0
    %2015 = vmatprep.subr.mxu0 0.0
    %2016 = vmatpush1.msra.mxu0 %v483
    %2017 = vmatprep.subr.mxu0 0.0
    %2018 = vmatpush1.msra.mxu0 %v484
    %2019 = vmatprep.subr.mxu0 0.0
    %2020 = vmatpush1.msra.mxu0 %v485
    %2021 = vmatprep.subr.mxu0 0.0
    %2022 = vmatpush1.msra.mxu0 %v486
    %2023 = vmatprep.subr.mxu0 0.0
    %2024 = vmatpush1.msra.mxu0 0.0
    %2025 = vmatprep.subr.mxu0 0.0
    %2026 = vmatpush1.msra.mxu0 0.0
    %2027 = vmatprep.subr.mxu0 0.0
    %2028 = vmatpush1.msra.mxu0 0.0
    %2029 = vmatprep.subr.mxu0 0.0
    %2030 = vmatpush1.msra.mxu0 0.0
    %2031 = vmatprep.subr.mxu0 0.0
    %2032 = vmatpush1.msra.mxu0 0.0
    %2033 = vmatprep.subr.mxu0 0.0
    %2034 = vmatpush1.msra.mxu0 0.0
    %2035 = vmatprep.subr.mxu0 0.0
    %2036 = vmatpush1.msra.mxu0 0.0
    %2037 = vmatprep.subr.mxu0 0.0
    %2038 = vmatpush1.msra.mxu0 0.0
    %2039 = vmatprep.subr.mxu0 0.0
    %2040 = vmatpush1.msra.mxu0 0.0
    %2041 = vmatprep.subr.mxu0 0.0
    %2042 = vmatpush1.msra.mxu0 0.0
    %2043 = vmatprep.subr.mxu0 0.0
    %2044 = vmatpush1.msra.mxu0 0.0
    %2045 = vmatprep.subr.mxu0 0.0
    %2046 = vmatpush1.msra.mxu0 0.0
    %2047 = vmatprep.subr.mxu0 0.0
    %2048 = vmatpush1.msra.mxu0 0.0
    %2049 = vmatprep.subr.mxu0 0.0
    %2050 = vmatpush1.msra.mxu0 0.0
    %2051 = vmatprep.subr.mxu0 0.0
    %2052 = vmatpush1.msra.mxu0 0.0
    %2053 = vmatprep.subr.mxu0 0.0
    %2054 = vmatpush1.msra.mxu0 0.0
    %2055 = vmatprep.subr.mxu0 0.0
    %2056 = vmatpush1.msra.mxu0 0.0
    %2057 = vmatprep.subr.mxu0 0.0
    %2058 = vmatpush1.msra.mxu0 0.0
    %2059 = vmatprep.subr.mxu0 0.0
    %2060 = vmatpush1.msra.mxu0 0.0
    %2061 = vmatprep.subr.mxu0 0.0
    %2062 = vmatpush1.msra.mxu0 0.0
    %2063 = vmatprep.subr.mxu0 0.0
    %2064 = vmatpush1.msra.mxu0 0.0
    %2065 = vmatprep.subr.mxu0 0.0
    %2066 = vmatpush1.msra.mxu0 0.0
    %2067 = vmatprep.subr.mxu0 0.0
    %2068 = vmatpush1.msra.mxu0 0.0
    %2069 = vmatprep.subr.mxu0 0.0
    %2070 = vmatpush1.msra.mxu0 0.0
    %2071 = vmatprep.subr.mxu0 0.0
    %2072 = vmatpush1.msra.mxu0 0.0
    %2073 = vmatprep.subr.mxu0 0.0
    %2074 = vmatpush1.msra.mxu0 0.0
    %2075 = vmatprep.subr.mxu0 0.0
    %2076 = vmatpush1.msra.mxu0 0.0
    %2077 = vmatprep.subr.mxu0 0.0
    %2078 = vmatpush1.msra.mxu0 0.0
    %2079 = vmatprep.mubr.f32.mxu0 0.0
    %2080 = vmatmul.mubr.f32.gmra.mrb[0].mxu0 %v2013
    %v2081 = vpop.f32.mrb[0].mxu0
    %v2082 = vadd.f32 0.0, %v2081
    %v2083 = vpop.f32.mrb[0].mxu0
    %2084 = vdwg.mxu0
    %v2085 = vadd.f32 %v2009, %v2082
    %v2086 = vmul.f32 %v2085, 0.5
    %v2087 = vtanh.pop %v2086
    %v2088 = vmul.f32 %v2087, 0.5
    %v2089 = vadd.f32 %v2088, 0.5
    %v2090 = vtanh.pop %v2085
    %v2091 = vmul.f32 %v2089, %v2005
    %2093 = vrot.lane.b32.xlu0 %v2090, 64
    %v2094 = vpop.permute.xlu0 %2093
    %v2096 = vmul.f32 %v2089, %v2094
    %2098 = vrot.lane.b32.xlu0 %v2096, 32
    %v2099 = vpop.permute.xlu0 %2098
    %v2101 = vadd.f32 %v2091, %v2099
    %v2102 = vtanh.pop %v2101
    %2104 = vrot.lane.b32.xlu0 %v2102, 64
    %v2105 = vpop.permute.xlu0 %2104
    %v2107 = vmul.f32 %v2089, %v2105
    %p2108 = scmp.gt.s32.totalorder %s489, 14
    %s2109 = scalar_select %p2108, 1, 0
    %v2110 = vstv %s2109
    %vm2111 = vcmp.eq.s32.totalorder %v2110, 1
    %v2112 = vsel %vm2111, %v2107, %v2004
    %v2113 = vsel %vm2111, %v2101, %v2005
    %s2114 = scalar_lea.vmem [#allocation2], 60
    %v2115 = vld [vmem:[%s2114] sm:$0xf]
    %v2116 = vunpack.c.l.bf16 %v2115
    %v2117 = vadd.f32 %v2116, %v496
    %2119 = vrot.lane.b32.xlu0 %v2112, 32
    %v2120 = vpop.permute.xlu0 %2119
    %v2121 = vsel %vm499, %v2120, 0
    %2123 = vmatprep.subr.mxu0 0.0
    %2124 = vmatpush1.msra.mxu0 %v483
    %2125 = vmatprep.subr.mxu0 0.0
    %2126 = vmatpush1.msra.mxu0 %v484
    %2127 = vmatprep.subr.mxu0 0.0
    %2128 = vmatpush1.msra.mxu0 %v485
    %2129 = vmatprep.subr.mxu0 0.0
    %2130 = vmatpush1.msra.mxu0 %v486
    %2131 = vmatprep.subr.mxu0 0.0
    %2132 = vmatpush1.msra.mxu0 0.0
    %2133 = vmatprep.subr.mxu0 0.0
    %2134 = vmatpush1.msra.mxu0 0.0
    %2135 = vmatprep.subr.mxu0 0.0
    %2136 = vmatpush1.msra.mxu0 0.0
    %2137 = vmatprep.subr.mxu0 0.0
    %2138 = vmatpush1.msra.mxu0 0.0
    %2139 = vmatprep.subr.mxu0 0.0
    %2140 = vmatpush1.msra.mxu0 0.0
    %2141 = vmatprep.subr.mxu0 0.0
    %2142 = vmatpush1.msra.mxu0 0.0
    %2143 = vmatprep.subr.mxu0 0.0
    %2144 = vmatpush1.msra.mxu0 0.0
    %2145 = vmatprep.subr.mxu0 0.0
    %2146 = vmatpush1.msra.mxu0 0.0
    %2147 = vmatprep.subr.mxu0 0.0
    %2148 = vmatpush1.msra.mxu0 0.0
    %2149 = vmatprep.subr.mxu0 0.0
    %2150 = vmatpush1.msra.mxu0 0.0
    %2151 = vmatprep.subr.mxu0 0.0
    %2152 = vmatpush1.msra.mxu0 0.0
    %2153 = vmatprep.subr.mxu0 0.0
    %2154 = vmatpush1.msra.mxu0 0.0
    %2155 = vmatprep.subr.mxu0 0.0
    %2156 = vmatpush1.msra.mxu0 0.0
    %2157 = vmatprep.subr.mxu0 0.0
    %2158 = vmatpush1.msra.mxu0 0.0
    %2159 = vmatprep.subr.mxu0 0.0
    %2160 = vmatpush1.msra.mxu0 0.0
    %2161 = vmatprep.subr.mxu0 0.0
    %2162 = vmatpush1.msra.mxu0 0.0
    %2163 = vmatprep.subr.mxu0 0.0
    %2164 = vmatpush1.msra.mxu0 0.0
    %2165 = vmatprep.subr.mxu0 0.0
    %2166 = vmatpush1.msra.mxu0 0.0
    %2167 = vmatprep.subr.mxu0 0.0
    %2168 = vmatpush1.msra.mxu0 0.0
    %2169 = vmatprep.subr.mxu0 0.0
    %2170 = vmatpush1.msra.mxu0 0.0
    %2171 = vmatprep.subr.mxu0 0.0
    %2172 = vmatpush1.msra.mxu0 0.0
    %2173 = vmatprep.subr.mxu0 0.0
    %2174 = vmatpush1.msra.mxu0 0.0
    %2175 = vmatprep.subr.mxu0 0.0
    %2176 = vmatpush1.msra.mxu0 0.0
    %2177 = vmatprep.subr.mxu0 0.0
    %2178 = vmatpush1.msra.mxu0 0.0
    %2179 = vmatprep.subr.mxu0 0.0
    %2180 = vmatpush1.msra.mxu0 0.0
    %2181 = vmatprep.subr.mxu0 0.0
    %2182 = vmatpush1.msra.mxu0 0.0
    %2183 = vmatprep.subr.mxu0 0.0
    %2184 = vmatpush1.msra.mxu0 0.0
    %2185 = vmatprep.subr.mxu0 0.0
    %2186 = vmatpush1.msra.mxu0 0.0
    %2187 = vmatprep.mubr.f32.mxu0 0.0
    %2188 = vmatmul.mubr.f32.gmra.mrb[0].mxu0 %v2121
    %v2189 = vpop.f32.mrb[0].mxu0
    %v2190 = vadd.f32 0.0, %v2189
    %v2191 = vpop.f32.mrb[0].mxu0
    %2192 = vdwg.mxu0
    %v2193 = vadd.f32 %v2117, %v2190
    %v2194 = vmul.f32 %v2193, 0.5
    %v2195 = vtanh.pop %v2194
    %v2196 = vmul.f32 %v2195, 0.5
    %v2197 = vadd.f32 %v2196, 0.5
    %v2198 = vtanh.pop %v2193
    %v2199 = vmul.f32 %v2197, %v2113
    %2201 = vrot.lane.b32.xlu0 %v2198, 64
    %v2202 = vpop.permute.xlu0 %2201
    %v2204 = vmul.f32 %v2197, %v2202
    %2206 = vrot.lane.b32.xlu0 %v2204, 32
    %v2207 = vpop.permute.xlu0 %2206
    %v2209 = vadd.f32 %v2199, %v2207
    %v2210 = vtanh.pop %v2209
    %2212 = vrot.lane.b32.xlu0 %v2210, 64
    %v2213 = vpop.permute.xlu0 %2212
    %v2215 = vmul.f32 %v2197, %v2213
    %p2216 = scmp.gt.s32.totalorder %s489, 15
    %s2217 = scalar_select %p2216, 1, 0
    %v2218 = vstv %s2217
    %vm2219 = vcmp.eq.s32.totalorder %v2218, 1
    %v2220 = vsel %vm2219, %v2215, %v2112
    %2222 = vset.pattern.permute.xlu0 0
    %2223 = vperm.xlu0 %2222, %v488
    %v2224 = vpop.permute.xlu0 %2223
    %v2226 = vmul.f32 %v2220, %v2224
    %v2227 = vld [vmem:[#allocation16] sm:$0x1]
    %v2228 = vunpack.c.l.bf16 %v268
    %v2229 = vunpack.c.l.bf16 %v269
    %v2230 = vunpack.c.l.bf16 %v270
    %v2231 = vunpack.c.l.bf16 %v271
    %v2232 = vunpack.c.l.bf16 %v272
    %v2233 = vunpack.c.l.bf16 %v273
    %v2234 = vunpack.c.l.bf16 %v274
    %v2235 = vunpack.c.l.bf16 %v275
    %v2236 = vunpack.c.l.bf16 %v276
    %v2237 = vunpack.c.l.bf16 %v277
    %v2238 = vunpack.c.l.bf16 %v278
    %v2239 = vunpack.c.l.bf16 %v279
    %v2240 = vunpack.c.l.bf16 %v280
    %v2241 = vunpack.c.l.bf16 %v281
    %v2242 = vunpack.c.l.bf16 %v282
    %v2243 = vunpack.c.l.bf16 %v283
    %2253 = vrot.lane.b32.xlu0 %v2229, 8
    %v2254 = vpop.permute.xlu0 %2253
    %2255 = vrot.lane.b32.xlu0 %v2230, 8
    %v2256 = vpop.permute.xlu0 %2255
    %2257 = vrot.lane.b32.xlu0 %v2231, 8
    %v2258 = vpop.permute.xlu0 %2257
    %2259 = vrot.lane.b32.xlu0 %v2232, 8
    %v2260 = vpop.permute.xlu0 %2259
    %2261 = vrot.lane.b32.xlu0 %v2233, 8
    %v2262 = vpop.permute.xlu0 %2261
    %2263 = vrot.lane.b32.xlu0 %v2234, 8
    %v2264 = vpop.permute.xlu0 %2263
    %2265 = vrot.lane.b32.xlu0 %v2235, 8
    %v2266 = vpop.permute.xlu0 %2265
    %2267 = vrot.lane.b32.xlu0 %v2236, 8
    %v2268 = vpop.permute.xlu0 %2267
    %2269 = vrot.lane.b32.xlu0 %v2237, 8
    %v2270 = vpop.permute.xlu0 %2269
    %2281 = vrot.lane.b32.xlu0 %v2230, 16
    %v2282 = vpop.permute.xlu0 %2281
    %2283 = vrot.lane.b32.xlu0 %v2231, 16
    %v2284 = vpop.permute.xlu0 %2283
    %2285 = vrot.lane.b32.xlu0 %v2232, 16
    %v2286 = vpop.permute.xlu0 %2285
    %2287 = vrot.lane.b32.xlu0 %v2233, 16
    %v2288 = vpop.permute.xlu0 %2287
    %2289 = vrot.lane.b32.xlu0 %v2234, 16
    %v2290 = vpop.permute.xlu0 %2289
    %2291 = vrot.lane.b32.xlu0 %v2235, 16
    %v2292 = vpop.permute.xlu0 %2291
    %2293 = vrot.lane.b32.xlu0 %v2236, 16
    %v2294 = vpop.permute.xlu0 %2293
    %2295 = vrot.lane.b32.xlu0 %v2237, 16
    %v2296 = vpop.permute.xlu0 %2295
    %2297 = vrot.lane.b32.xlu0 %v2238, 16
    %v2298 = vpop.permute.xlu0 %2297
    %2309 = vrot.lane.b32.xlu0 %v2231, 24
    %v2310 = vpop.permute.xlu0 %2309
    %2311 = vrot.lane.b32.xlu0 %v2232, 24
    %v2312 = vpop.permute.xlu0 %2311
    %2313 = vrot.lane.b32.xlu0 %v2233, 24
    %v2314 = vpop.permute.xlu0 %2313
    %2315 = vrot.lane.b32.xlu0 %v2234, 24
    %v2316 = vpop.permute.xlu0 %2315
    %2317 = vrot.lane.b32.xlu0 %v2235, 24
    %v2318 = vpop.permute.xlu0 %2317
    %2319 = vrot.lane.b32.xlu0 %v2236, 24
    %v2320 = vpop.permute.xlu0 %2319
    %2321 = vrot.lane.b32.xlu0 %v2237, 24
    %v2322 = vpop.permute.xlu0 %2321
    %2323 = vrot.lane.b32.xlu0 %v2238, 24
    %v2324 = vpop.permute.xlu0 %2323
    %2325 = vrot.lane.b32.xlu0 %v2239, 24
    %v2326 = vpop.permute.xlu0 %2325
    %2337 = vrot.lane.b32.xlu0 %v2232, 32
    %v2338 = vpop.permute.xlu0 %2337
    %2339 = vrot.lane.b32.xlu0 %v2233, 32
    %v2340 = vpop.permute.xlu0 %2339
    %2341 = vrot.lane.b32.xlu0 %v2234, 32
    %v2342 = vpop.permute.xlu0 %2341
    %2343 = vrot.lane.b32.xlu0 %v2235, 32
    %v2344 = vpop.permute.xlu0 %2343
    %2345 = vrot.lane.b32.xlu0 %v2236, 32
    %v2346 = vpop.permute.xlu0 %2345
    %2347 = vrot.lane.b32.xlu0 %v2237, 32
    %v2348 = vpop.permute.xlu0 %2347
    %2349 = vrot.lane.b32.xlu0 %v2238, 32
    %v2350 = vpop.permute.xlu0 %2349
    %2351 = vrot.lane.b32.xlu0 %v2239, 32
    %v2352 = vpop.permute.xlu0 %2351
    %2353 = vrot.lane.b32.xlu0 %v2240, 32
    %v2354 = vpop.permute.xlu0 %2353
    %2365 = vrot.lane.b32.xlu0 %v2233, 40
    %v2366 = vpop.permute.xlu0 %2365
    %2367 = vrot.lane.b32.xlu0 %v2234, 40
    %v2368 = vpop.permute.xlu0 %2367
    %2369 = vrot.lane.b32.xlu0 %v2235, 40
    %v2370 = vpop.permute.xlu0 %2369
    %2371 = vrot.lane.b32.xlu0 %v2236, 40
    %v2372 = vpop.permute.xlu0 %2371
    %2373 = vrot.lane.b32.xlu0 %v2237, 40
    %v2374 = vpop.permute.xlu0 %2373
    %2375 = vrot.lane.b32.xlu0 %v2238, 40
    %v2376 = vpop.permute.xlu0 %2375
    %2377 = vrot.lane.b32.xlu0 %v2239, 40
    %v2378 = vpop.permute.xlu0 %2377
    %2379 = vrot.lane.b32.xlu0 %v2240, 40
    %v2380 = vpop.permute.xlu0 %2379
    %2381 = vrot.lane.b32.xlu0 %v2241, 40
    %v2382 = vpop.permute.xlu0 %2381
    %2393 = vrot.lane.b32.xlu0 %v2234, 48
    %v2394 = vpop.permute.xlu0 %2393
    %2395 = vrot.lane.b32.xlu0 %v2235, 48
    %v2396 = vpop.permute.xlu0 %2395
    %2397 = vrot.lane.b32.xlu0 %v2236, 48
    %v2398 = vpop.permute.xlu0 %2397
    %2399 = vrot.lane.b32.xlu0 %v2237, 48
    %v2400 = vpop.permute.xlu0 %2399
    %2401 = vrot.lane.b32.xlu0 %v2238, 48
    %v2402 = vpop.permute.xlu0 %2401
    %2403 = vrot.lane.b32.xlu0 %v2239, 48
    %v2404 = vpop.permute.xlu0 %2403
    %2405 = vrot.lane.b32.xlu0 %v2240, 48
    %v2406 = vpop.permute.xlu0 %2405
    %2407 = vrot.lane.b32.xlu0 %v2241, 48
    %v2408 = vpop.permute.xlu0 %2407
    %2409 = vrot.lane.b32.xlu0 %v2242, 48
    %v2410 = vpop.permute.xlu0 %2409
    %2421 = vrot.lane.b32.xlu0 %v2235, 56
    %v2422 = vpop.permute.xlu0 %2421
    %2423 = vrot.lane.b32.xlu0 %v2236, 56
    %v2424 = vpop.permute.xlu0 %2423
    %2425 = vrot.lane.b32.xlu0 %v2237, 56
    %v2426 = vpop.permute.xlu0 %2425
    %2427 = vrot.lane.b32.xlu0 %v2238, 56
    %v2428 = vpop.permute.xlu0 %2427
    %2429 = vrot.lane.b32.xlu0 %v2239, 56
    %v2430 = vpop.permute.xlu0 %2429
    %2431 = vrot.lane.b32.xlu0 %v2240, 56
    %v2432 = vpop.permute.xlu0 %2431
    %2433 = vrot.lane.b32.xlu0 %v2241, 56
    %v2434 = vpop.permute.xlu0 %2433
    %2435 = vrot.lane.b32.xlu0 %v2242, 56
    %v2436 = vpop.permute.xlu0 %2435
    %2437 = vrot.lane.b32.xlu0 %v2243, 56
    %v2438 = vpop.permute.xlu0 %2437
    %v2448 = vsel %vm325, %v2228, %v2254
    %v2449 = vsel %vm325, %v2229, %v2256
    %v2450 = vsel %vm325, %v2230, %v2258
    %v2451 = vsel %vm325, %v2231, %v2260
    %v2452 = vsel %vm325, %v2232, %v2262
    %v2453 = vsel %vm325, %v2233, %v2264
    %v2454 = vsel %vm325, %v2234, %v2266
    %v2455 = vsel %vm325, %v2235, %v2268
    %v2456 = vsel %vm325, %v2236, %v2270
    %vm2457 = vcmask 130048
    %v2458 = vsel %vm2457, %v2448, %v2282
    %v2459 = vsel %vm2457, %v2449, %v2284
    %v2460 = vsel %vm2457, %v2450, %v2286
    %v2461 = vsel %vm2457, %v2451, %v2288
    %v2462 = vsel %vm2457, %v2452, %v2290
    %v2463 = vsel %vm2457, %v2453, %v2292
    %v2464 = vsel %vm2457, %v2454, %v2294
    %v2465 = vsel %vm2457, %v2455, %v2296
    %v2466 = vsel %vm2457, %v2456, %v2298
    %vm2467 = vcmask 195584
    %v2468 = vsel %vm2467, %v2458, %v2310
    %v2469 = vsel %vm2467, %v2459, %v2312
    %v2470 = vsel %vm2467, %v2460, %v2314
    %v2471 = vsel %vm2467, %v2461, %v2316
    %v2472 = vsel %vm2467, %v2462, %v2318
    %v2473 = vsel %vm2467, %v2463, %v2320
    %v2474 = vsel %vm2467, %v2464, %v2322
    %v2475 = vsel %vm2467, %v2465, %v2324
    %v2476 = vsel %vm2467, %v2466, %v2326
    %v2477 = vsel %vm499, %v2468, %v2338
    %v2478 = vsel %vm499, %v2469, %v2340
    %v2479 = vsel %vm499, %v2470, %v2342
    %v2480 = vsel %vm499, %v2471, %v2344
    %v2481 = vsel %vm499, %v2472, %v2346
    %v2482 = vsel %vm499, %v2473, %v2348
    %v2483 = vsel %vm499, %v2474, %v2350
    %v2484 = vsel %vm499, %v2475, %v2352
    %v2485 = vsel %vm499, %v2476, %v2354
    %vm2486 = vcmask 326656
    %v2487 = vsel %vm2486, %v2477, %v2366
    %v2488 = vsel %vm2486, %v2478, %v2368
    %v2489 = vsel %vm2486, %v2479, %v2370
    %v2490 = vsel %vm2486, %v2480, %v2372
    %v2491 = vsel %vm2486, %v2481, %v2374
    %v2492 = vsel %vm2486, %v2482, %v2376
    %v2493 = vsel %vm2486, %v2483, %v2378
    %v2494 = vsel %vm2486, %v2484, %v2380
    %v2495 = vsel %vm2486, %v2485, %v2382
    %vm2496 = vcmask 392192
    %v2497 = vsel %vm2496, %v2487, %v2394
    %v2498 = vsel %vm2496, %v2488, %v2396
    %v2499 = vsel %vm2496, %v2489, %v2398
    %v2500 = vsel %vm2496, %v2490, %v2400
    %v2501 = vsel %vm2496, %v2491, %v2402
    %v2502 = vsel %vm2496, %v2492, %v2404
    %v2503 = vsel %vm2496, %v2493, %v2406
    %v2504 = vsel %vm2496, %v2494, %v2408
    %v2505 = vsel %vm2496, %v2495, %v2410
    %vm2506 = vcmask 457728
    %v2507 = vsel %vm2506, %v2497, %v2422
    %v2508 = vsel %vm2506, %v2498, %v2424
    %v2509 = vsel %vm2506, %v2499, %v2426
    %v2510 = vsel %vm2506, %v2500, %v2428
    %v2511 = vsel %vm2506, %v2501, %v2430
    %v2512 = vsel %vm2506, %v2502, %v2432
    %v2513 = vsel %vm2506, %v2503, %v2434
    %v2514 = vsel %vm2506, %v2504, %v2436
    %v2515 = vsel %vm2506, %v2505, %v2438
    %v2516 = vpack.c.bf16 %v2508, %v2507
    %v2517 = vpack.c.bf16 %v2510, %v2509
    %v2518 = vpack.c.bf16 %v2512, %v2511
    %v2519 = vpack.c.bf16 %v2514, %v2513
    %v2520 = vpack.c.bf16 %v2515, %v2515
    %v2521 = vld [vmem:[#allocation14] sm:$0xf]
    %v2522 = vld [vmem:[#allocation14 + $0x4] sm:$0xf]
    %v2523 = vld [vmem:[#allocation14 + $0x8] sm:$0xf]
    %v2524 = vld [vmem:[#allocation14 + $0xc] sm:$0xf]
    %v2525 = vld [vmem:[#allocation14 + $0x10] sm:$0xf]
    %v2526 = vld [vmem:[#allocation14 + $0x14] sm:$0xf]
    %v2527 = vld [vmem:[#allocation14 + $0x18] sm:$0xf]
    %v2528 = vld [vmem:[#allocation14 + $0x1c] sm:$0xf]
    %v2530 = vlaneseq
    %v2531 = vshrl.u32 %v2530, 7
    %v2532 = vsub.s32 0, %v2531
    %v2533 = vrot.slane %v2227, %v2532
    %v2543 = vunpack.c.l.b16 %v2521
    %v2544 = vunpack.c.l.b16 %v2522
    %v2545 = vunpack.c.l.b16 %v2523
    %v2546 = vunpack.c.l.b16 %v2524
    %v2547 = vunpack.c.l.b16 %v2525
    %v2548 = vunpack.c.l.b16 %v2526
    %v2549 = vunpack.c.l.b16 %v2527
    %v2550 = vunpack.c.l.b16 %v2528
    %v2551 = vpack.c.b16 %v2544, %v2543
    %v2552 = vpack.c.b16 %v2546, %v2545
    %v2553 = vpack.c.b16 %v2548, %v2547
    %v2554 = vpack.c.b16 %v2550, %v2549
    %vm2559 = vcmask 523264
    %v2561 = vsel %vm2559, %v2516, 0
    %v2564 = vsel %vm2559, %v2517, 0
    %v2567 = vsel %vm2559, %v2518, 0
    %v2570 = vsel %vm2559, %v2519, 0
    %v2573 = vsel %vm2559, %v2520, 0
    %2575 = vmatprep.subr.bf16.mxu0 0
    %2576 = vmatpush1.bf16.msra.mxu0 %v2551
    %2577 = vmatprep.subr.bf16.mxu0 0
    %2578 = vmatpush1.bf16.msra.mxu0 %v2552
    %2579 = vmatprep.subr.bf16.mxu0 0
    %2580 = vmatpush1.bf16.msra.mxu0 %v2553
    %2581 = vmatprep.subr.bf16.mxu0 0
    %2582 = vmatpush1.bf16.msra.mxu0 %v2554
    %2583 = vmatprep.subr.bf16.mxu0 0
    %2584 = vmatpush1.bf16.msra.mxu0 0
    %2585 = vmatprep.subr.bf16.mxu0 0
    %2586 = vmatpush1.bf16.msra.mxu0 0
    %2587 = vmatprep.subr.bf16.mxu0 0
    %2588 = vmatpush1.bf16.msra.mxu0 0
    %2589 = vmatprep.subr.bf16.mxu0 0
    %2590 = vmatpush1.bf16.msra.mxu0 0
    %2591 = vmatprep.subr.bf16.mxu0 0
    %2592 = vmatpush1.bf16.msra.mxu0 0
    %2593 = vmatprep.subr.bf16.mxu0 0
    %2594 = vmatpush1.bf16.msra.mxu0 0
    %2595 = vmatprep.subr.bf16.mxu0 0
    %2596 = vmatpush1.bf16.msra.mxu0 0
    %2597 = vmatprep.subr.bf16.mxu0 0
    %2598 = vmatpush1.bf16.msra.mxu0 0
    %2599 = vmatprep.subr.bf16.mxu0 0
    %2600 = vmatpush1.bf16.msra.mxu0 0
    %2601 = vmatprep.subr.bf16.mxu0 0
    %2602 = vmatpush1.bf16.msra.mxu0 0
    %2603 = vmatprep.subr.bf16.mxu0 0
    %2604 = vmatpush1.bf16.msra.mxu0 0
    %2605 = vmatprep.subr.bf16.mxu0 0
    %2606 = vmatpush1.bf16.msra.mxu0 0
    %2607 = vmatprep.mubr.bf16.mxu0 0
    %2608 = vmatmul.mubr.bf16.gmra.mrb[0].mxu0 %v2561
    %v2609 = vpop.f32.mrb[0].mxu0
    %v2610 = vadd.f32 %v2533, %v2609
    %v2611 = vpop.f32.mrb[0].mxu0
    %v2612 = vpop.f32.mrb[0].mxu0
    %v2613 = vadd.f32 %v2533, %v2612
    %v2614 = vpop.f32.mrb[0].mxu0
    %2615 = vmatprep.mubr.bf16.mxu0 0
    %2616 = vmatmul.mubr.bf16.gmra.mrb[0].mxu0 %v2564
    %v2617 = vpop.f32.mrb[0].mxu0
    %v2618 = vadd.f32 %v2533, %v2617
    %v2619 = vpop.f32.mrb[0].mxu0
    %v2620 = vpop.f32.mrb[0].mxu0
    %v2621 = vadd.f32 %v2533, %v2620
    %v2622 = vpop.f32.mrb[0].mxu0
    %2623 = vmatprep.mubr.bf16.mxu0 0
    %2624 = vmatmul.mubr.bf16.gmra.mrb[0].mxu0 %v2567
    %v2625 = vpop.f32.mrb[0].mxu0
    %v2626 = vadd.f32 %v2533, %v2625
    %v2627 = vpop.f32.mrb[0].mxu0
    %v2628 = vpop.f32.mrb[0].mxu0
    %v2629 = vadd.f32 %v2533, %v2628
    %v2630 = vpop.f32.mrb[0].mxu0
    %2631 = vmatprep.mubr.bf16.mxu0 0
    %2632 = vmatmul.mubr.bf16.gmra.mrb[0].mxu0 %v2570
    %v2633 = vpop.f32.mrb[0].mxu0
    %v2634 = vadd.f32 %v2533, %v2633
    %v2635 = vpop.f32.mrb[0].mxu0
    %v2636 = vpop.f32.mrb[0].mxu0
    %v2637 = vadd.f32 %v2533, %v2636
    %v2638 = vpop.f32.mrb[0].mxu0
    %2639 = vmatprep.mubr.bf16.mxu0 0
    %2640 = vmatmul.mubr.bf16.gmra.mrb[0].mxu0 %v2573
    %v2641 = vpop.f32.mrb[0].mxu0
    %v2642 = vadd.f32 %v2533, %v2641
    %v2643 = vpop.f32.mrb[0].mxu0
    %v2644 = vpop.f32.mrb[0].mxu0
    %v2645 = vpop.f32.mrb[0].mxu0
    %2646 = vdwg.mxu0
    %v2647 = vmax.f32 %v2610, 0.0
    %v2648 = vmax.f32 %v2613, 0.0
    %v2649 = vmax.f32 %v2618, 0.0
    %v2650 = vmax.f32 %v2621, 0.0
    %v2651 = vmax.f32 %v2626, 0.0
    %v2652 = vmax.f32 %v2629, 0.0
    %v2653 = vmax.f32 %v2634, 0.0
    %v2654 = vmax.f32 %v2637, 0.0
    %v2655 = vmax.f32 %v2642, 0.0
    %v2656 = vsel %vm2457, %v2647, 0.0
    %v2657 = vsel %vm2457, %v2648, 0.0
    %v2658 = vadd.f32 %v2656, %v2657
    %v2659 = vsel %vm2457, %v2649, 0.0
    %v2660 = vadd.f32 %v2658, %v2659
    %v2661 = vsel %vm2457, %v2650, 0.0
    %v2662 = vadd.f32 %v2660, %v2661
    %v2663 = vsel %vm2457, %v2651, 0.0
    %v2664 = vadd.f32 %v2662, %v2663
    %v2665 = vsel %vm2457, %v2652, 0.0
    %v2666 = vadd.f32 %v2664, %v2665
    %v2667 = vsel %vm2457, %v2653, 0.0
    %v2668 = vadd.f32 %v2666, %v2667
    %v2669 = vsel %vm2457, %v2654, 0.0
    %v2670 = vadd.f32 %v2668, %v2669
    %v2671 = vsel %vm2457, %v2655, 0.0
    %v2672 = vadd.f32 %v2670, %v2671
    %v2673 = vmul.f32 %v2672, 0.11111111
    %v2674 = vld [vmem:[#allocation23] sm:$0x1]
    %v2675 = vld [vmem:[#allocation25] sm:$0x1]
    %v2677 = vlaneseq
    %v2678 = vshrl.u32 %v2677, 7
    %v2679 = vsub.s32 0, %v2678
    %v2680 = vrot.slane %v2674, %v2679
    %v2682 = vmul.f32 %v2673, %v2680
    %v2683 = vsel %vm2457, %v2682, 0.0
    %2684 = vadd.xlane.f32.xlu0 %v2683
    %v2685 = vpop.xlane.xlu0 %2684
    %v2686 = vmax.f32 %v2685, 0.0
    %v2688 = vlaneseq
    %v2689 = vshrl.u32 %v2688, 7
    %v2690 = vsub.s32 0, %v2689
    %v2691 = vrot.slane %v2675, %v2690
    %v2693 = vmul.f32 %v2686, %v2691
    %v2694 = vadd.f32 %v2693, 0.0
    %v2695 = vmul.f32 %v2694, 0.5
    %v2696 = vtanh.pop %v2695
    %v2697 = vmul.f32 %v2696, 0.5
    %v2698 = vadd.f32 %v2697, 0.5
    %v2699 = vmul.f32 %v2647, %v2698
    %v2700 = vmul.f32 %v2648, %v2698
    %v2701 = vmul.f32 %v2649, %v2698
    %v2702 = vmul.f32 %v2650, %v2698
    %v2703 = vmul.f32 %v2651, %v2698
    %v2704 = vmul.f32 %v2652, %v2698
    %v2705 = vmul.f32 %v2653, %v2698
    %v2706 = vmul.f32 %v2654, %v2698
    %v2707 = vmul.f32 %v2655, %v2698
    %v2708 = vld [vmem:[#allocation19] sm:$0x1]
    %2714 = vrot.lane.b32.xlu0 %v2700, 16
    %v2715 = vpop.permute.xlu0 %2714
    %2716 = vrot.lane.b32.xlu0 %v2701, 16
    %v2717 = vpop.permute.xlu0 %2716
    %2718 = vrot.lane.b32.xlu0 %v2702, 16
    %v2719 = vpop.permute.xlu0 %2718
    %2720 = vrot.lane.b32.xlu0 %v2703, 16
    %v2721 = vpop.permute.xlu0 %2720
    %2722 = vrot.lane.b32.xlu0 %v2704, 16
    %v2723 = vpop.permute.xlu0 %2722
    %2730 = vrot.lane.b32.xlu0 %v2701, 32
    %v2731 = vpop.permute.xlu0 %2730
    %2732 = vrot.lane.b32.xlu0 %v2702, 32
    %v2733 = vpop.permute.xlu0 %2732
    %2734 = vrot.lane.b32.xlu0 %v2703, 32
    %v2735 = vpop.permute.xlu0 %2734
    %2736 = vrot.lane.b32.xlu0 %v2704, 32
    %v2737 = vpop.permute.xlu0 %2736
    %2738 = vrot.lane.b32.xlu0 %v2705, 32
    %v2739 = vpop.permute.xlu0 %2738
    %2746 = vrot.lane.b32.xlu0 %v2702, 48
    %v2747 = vpop.permute.xlu0 %2746
    %2748 = vrot.lane.b32.xlu0 %v2703, 48
    %v2749 = vpop.permute.xlu0 %2748
    %2750 = vrot.lane.b32.xlu0 %v2704, 48
    %v2751 = vpop.permute.xlu0 %2750
    %2752 = vrot.lane.b32.xlu0 %v2705, 48
    %v2753 = vpop.permute.xlu0 %2752
    %2754 = vrot.lane.b32.xlu0 %v2706, 48
    %v2755 = vpop.permute.xlu0 %2754
    %2762 = vrot.lane.b32.xlu0 %v2703, 64
    %v2763 = vpop.permute.xlu0 %2762
    %2764 = vrot.lane.b32.xlu0 %v2704, 64
    %v2765 = vpop.permute.xlu0 %2764
    %2766 = vrot.lane.b32.xlu0 %v2705, 64
    %v2767 = vpop.permute.xlu0 %2766
    %2768 = vrot.lane.b32.xlu0 %v2706, 64
    %v2769 = vpop.permute.xlu0 %2768
    %2770 = vrot.lane.b32.xlu0 %v2707, 64
    %v2771 = vpop.permute.xlu0 %2770
    %v2777 = vsel %vm2457, %v2699, %v2715
    %v2778 = vsel %vm2457, %v2700, %v2717
    %v2779 = vsel %vm2457, %v2701, %v2719
    %v2780 = vsel %vm2457, %v2702, %v2721
    %v2781 = vsel %vm2457, %v2703, %v2723
    %v2782 = vsel %vm499, %v2777, %v2731
    %v2783 = vsel %vm499, %v2778, %v2733
    %v2784 = vsel %vm499, %v2779, %v2735
    %v2785 = vsel %vm499, %v2780, %v2737
    %v2786 = vsel %vm499, %v2781, %v2739
    %v2787 = vsel %vm2496, %v2782, %v2747
    %v2788 = vsel %vm2496, %v2783, %v2749
    %v2789 = vsel %vm2496, %v2784, %v2751
    %v2790 = vsel %vm2496, %v2785, %v2753
    %v2791 = vsel %vm2496, %v2786, %v2755
    %v2792 = vsel %vm2559, %v2787, %v2763
    %v2793 = vsel %vm2559, %v2788, %v2765
    %v2794 = vsel %vm2559, %v2789, %v2767
    %v2795 = vsel %vm2559, %v2790, %v2769
    %v2796 = vsel %vm2559, %v2791, %v2771
    %v2797 = vpack.c.bf16 %v2793, %v2792
    %v2798 = vpack.c.bf16 %v2795, %v2794
    %v2799 = vpack.c.bf16 %v2796, %v2796
    %v2800 = vld [vmem:[#allocation17] sm:$0xf]
    %v2801 = vld [vmem:[#allocation17 + $0x4] sm:$0xf]
    %v2802 = vld [vmem:[#allocation17 + $0x8] sm:$0xf]
    %v2803 = vld [vmem:[#allocation17 + $0xc] sm:$0xf]
    %v2804 = vld [vmem:[#allocation17 + $0x10] sm:$0xf]
    %v2805 = vld [vmem:[#allocation17 + $0x14] sm:$0xf]
    %v2806 = vld [vmem:[#allocation17 + $0x18] sm:$0xf]
    %v2807 = vld [vmem:[#allocation17 + $0x1c] sm:$0xf]
    %v2808 = vld [vmem:[#allocation17 + $0x20] sm:$0xf]
    %v2809 = vld [vmem:[#allocation17 + $0x24] sm:$0xf]
    %v2811 = vlaneseq
    %v2812 = vshrl.u32 %v2811, 7
    %v2813 = vsub.s32 0, %v2812
    %v2814 = vrot.slane %v2708, %v2813
    %v2826 = vunpack.c.l.b16 %v2800
    %v2827 = vunpack.c.l.b16 %v2801
    %v2828 = vunpack.c.l.b16 %v2802
    %v2829 = vunpack.c.l.b16 %v2803
    %v2830 = vunpack.c.l.b16 %v2804
    %v2831 = vunpack.c.l.b16 %v2805
    %v2832 = vunpack.c.l.b16 %v2806
    %v2833 = vunpack.c.l.b16 %v2807
    %v2834 = vunpack.c.l.b16 %v2808
    %v2835 = vunpack.c.l.b16 %v2809
    %v2836 = vpack.c.b16 %v2827, %v2826
    %v2837 = vpack.c.b16 %v2829, %v2828
    %v2838 = vpack.c.b16 %v2831, %v2830
    %v2839 = vpack.c.b16 %v2833, %v2832
    %v2840 = vpack.c.b16 %v2835, %v2834
    %vm2846 = vcmask 654336
    %v2848 = vsel %vm2846, %v2797, 0
    %v2851 = vsel %vm2846, %v2798, 0
    %v2854 = vsel %vm2846, %v2799, 0
    %2856 = vmatprep.subr.bf16.mxu0 0
    %2857 = vmatpush1.bf16.msra.mxu0 %v2836
    %2858 = vmatprep.subr.bf16.mxu0 0
    %2859 = vmatpush1.bf16.msra.mxu0 %v2837
    %2860 = vmatprep.subr.bf16.mxu0 0
    %2861 = vmatpush1.bf16.msra.mxu0 %v2838
    %2862 = vmatprep.subr.bf16.mxu0 0
    %2863 = vmatpush1.bf16.msra.mxu0 %v2839
    %2864 = vmatprep.subr.bf16.mxu0 0
    %2865 = vmatpush1.bf16.msra.mxu0 %v2840
    %2866 = vmatprep.subr.bf16.mxu0 0
    %2867 = vmatpush1.bf16.msra.mxu0 0
    %2868 = vmatprep.subr.bf16.mxu0 0
    %2869 = vmatpush1.bf16.msra.mxu0 0
    %2870 = vmatprep.subr.bf16.mxu0 0
    %2871 = vmatpush1.bf16.msra.mxu0 0
    %2872 = vmatprep.subr.bf16.mxu0 0
    %2873 = vmatpush1.bf16.msra.mxu0 0
    %2874 = vmatprep.subr.bf16.mxu0 0
    %2875 = vmatpush1.bf16.msra.mxu0 0
    %2876 = vmatprep.subr.bf16.mxu0 0
    %2877 = vmatpush1.bf16.msra.mxu0 0
    %2878 = vmatprep.subr.bf16.mxu0 0
    %2879 = vmatpush1.bf16.msra.mxu0 0
    %2880 = vmatprep.subr.bf16.mxu0 0
    %2881 = vmatpush1.bf16.msra.mxu0 0
    %2882 = vmatprep.subr.bf16.mxu0 0
    %2883 = vmatpush1.bf16.msra.mxu0 0
    %2884 = vmatprep.subr.bf16.mxu0 0
    %2885 = vmatpush1.bf16.msra.mxu0 0
    %2886 = vmatprep.subr.bf16.mxu0 0
    %2887 = vmatpush1.bf16.msra.mxu0 0
    %2888 = vmatprep.mubr.bf16.mxu0 0
    %2889 = vmatmul.mubr.bf16.gmra.mrb[0].mxu0 %v2848
    %v2890 = vpop.f32.mrb[0].mxu0
    %v2891 = vadd.f32 %v2814, %v2890
    %v2892 = vpop.f32.mrb[0].mxu0
    %v2893 = vpop.f32.mrb[0].mxu0
    %v2894 = vadd.f32 %v2814, %v2893
    %v2895 = vpop.f32.mrb[0].mxu0
    %2896 = vmatprep.mubr.bf16.mxu0 0
    %2897 = vmatmul.mubr.bf16.gmra.mrb[0].mxu0 %v2851
    %v2898 = vpop.f32.mrb[0].mxu0
    %v2899 = vadd.f32 %v2814, %v2898
    %v2900 = vpop.f32.mrb[0].mxu0
    %v2901 = vpop.f32.mrb[0].mxu0
    %v2902 = vadd.f32 %v2814, %v2901
    %v2903 = vpop.f32.mrb[0].mxu0
    %2904 = vmatprep.mubr.bf16.mxu0 0
    %2905 = vmatmul.mubr.bf16.gmra.mrb[0].mxu0 %v2854
    %v2906 = vpop.f32.mrb[0].mxu0
    %v2907 = vadd.f32 %v2814, %v2906
    %v2908 = vpop.f32.mrb[0].mxu0
    %v2909 = vpop.f32.mrb[0].mxu0
    %v2910 = vpop.f32.mrb[0].mxu0
    %2911 = vdwg.mxu0
    %v2912 = vmax.f32 %v2891, 0.0
    %v2913 = vmax.f32 %v2894, 0.0
    %v2914 = vmax.f32 %v2899, 0.0
    %v2915 = vmax.f32 %v2902, 0.0
    %v2916 = vmax.f32 %v2907, 0.0
    %v2917 = vsel %vm499, %v2912, 0.0
    %v2918 = vsel %vm499, %v2913, 0.0
    %v2919 = vadd.f32 %v2917, %v2918
    %v2920 = vsel %vm499, %v2914, 0.0
    %v2921 = vadd.f32 %v2919, %v2920
    %v2922 = vsel %vm499, %v2915, 0.0
    %v2923 = vadd.f32 %v2921, %v2922
    %v2924 = vsel %vm499, %v2916, 0.0
    %v2925 = vadd.f32 %v2923, %v2924
    %v2926 = vmul.f32 %v2925, 0.2
    %v2927 = vld [vmem:[#allocation26] sm:$0x3]
    %v2928 = vld [vmem:[#allocation28] sm:$0x3]
    %v2929 = vlaneseq
    %v2930 = vshrl.u32 %v2929, 7
    %v2931 = vsub.s32 0, %v2930
    %v2932 = vrot.slane %v2927, %v2931
    %v2933 = vmul.f32 %v2926, %v2932
    %v2934 = vsel %vm499, %v2933, 0.0
    %2935 = vadd.xlane.f32.xlu0 %v2934
    %v2936 = vpop.xlane.xlu0 %2935
    %v2937 = vmax.f32 %v2936, 0.0
    %v2938 = vlaneseq
    %v2939 = vshrl.u32 %v2938, 7
    %v2940 = vsub.s32 0, %v2939
    %v2941 = vrot.slane %v2928, %v2940
    %v2942 = vmul.f32 %v2937, %v2941
    %v2943 = vadd.f32 %v2942, 0.0
    %v2944 = vlaneseq
    %v2945 = vshrl.u32 %v2944, 7
    %v2946 = vsub.s32 1, %v2945
    %v2947 = vrot.slane %v2927, %v2946
    %v2948 = vmul.f32 %v2926, %v2947
    %v2949 = vsel %vm499, %v2948, 0.0
    %2950 = vadd.xlane.f32.xlu0 %v2949
    %v2951 = vpop.xlane.xlu0 %2950
    %v2952 = vmax.f32 %v2951, 0.0
    %v2953 = vlaneseq
    %v2954 = vshrl.u32 %v2953, 7
    %v2955 = vsub.s32 1, %v2954
    %v2956 = vrot.slane %v2928, %v2955
    %v2957 = vmul.f32 %v2952, %v2956
    %v2958 = vadd.f32 %v2943, %v2957
    %v2959 = vmul.f32 %v2958, 0.5
    %v2960 = vtanh.pop %v2959
    %v2961 = vmul.f32 %v2960, 0.5
    %v2962 = vadd.f32 %v2961, 0.5
    %v2963 = vmul.f32 %v2912, %v2962
    %v2964 = vmul.f32 %v2913, %v2962
    %v2965 = vmul.f32 %v2914, %v2962
    %v2966 = vmul.f32 %v2915, %v2962
    %v2967 = vmul.f32 %v2916, %v2962
    %v2968 = vld [vmem:[#allocation22] sm:$0x1]
    %2972 = vrot.lane.b32.xlu0 %v2964, 32
    %v2973 = vpop.permute.xlu0 %2972
    %2974 = vrot.lane.b32.xlu0 %v2965, 32
    %v2975 = vpop.permute.xlu0 %2974
    %2976 = vrot.lane.b32.xlu0 %v2966, 32
    %v2977 = vpop.permute.xlu0 %2976
    %2982 = vrot.lane.b32.xlu0 %v2965, 64
    %v2983 = vpop.permute.xlu0 %2982
    %2984 = vrot.lane.b32.xlu0 %v2966, 64
    %v2985 = vpop.permute.xlu0 %2984
    %2986 = vrot.lane.b32.xlu0 %v2967, 64
    %v2987 = vpop.permute.xlu0 %2986
    %v2991 = vsel %vm499, %v2963, %v2973
    %v2992 = vsel %vm499, %v2964, %v2975
    %v2993 = vsel %vm499, %v2965, %v2977
    %v2994 = vsel %vm2559, %v2991, %v2983
    %v2995 = vsel %vm2559, %v2992, %v2985
    %v2996 = vsel %vm2559, %v2993, %v2987
    %v2997 = vpack.c.bf16 %v2995, %v2994
    %v2998 = vpack.c.bf16 %v2996, %v2996
    %v2999 = vld [vmem:[#allocation20] sm:$0xf]
    %v3000 = vld [vmem:[#allocation20 + $0x4] sm:$0xf]
    %v3001 = vld [vmem:[#allocation20 + $0x8] sm:$0xf]
    %v3002 = vld [vmem:[#allocation20 + $0xc] sm:$0xf]
    %v3003 = vld [vmem:[#allocation20 + $0x10] sm:$0xf]
    %v3004 = vld [vmem:[#allocation20 + $0x14] sm:$0xf]
    %v3005 = vld [vmem:[#allocation20 + $0x18] sm:$0xf]
    %v3006 = vld [vmem:[#allocation20 + $0x1c] sm:$0xf]
    %v3007 = vld [vmem:[#allocation20 + $0x20] sm:$0xf]
    %v3008 = vld [vmem:[#allocation20 + $0x24] sm:$0xf]
    %v3009 = vld [vmem:[#allocation20 + $0x28] sm:$0xf]
    %v3010 = vld [vmem:[#allocation20 + $0x2c] sm:$0xf]
    %v3012 = vlaneseq
    %v3013 = vshrl.u32 %v3012, 7
    %v3014 = vsub.s32 0, %v3013
    %v3015 = vrot.slane %v2968, %v3014
    %v3029 = vunpack.c.l.b16 %v2999
    %v3030 = vunpack.c.l.b16 %v3000
    %v3031 = vunpack.c.l.b16 %v3001
    %v3032 = vunpack.c.l.b16 %v3002
    %v3033 = vunpack.c.l.b16 %v3003
    %v3034 = vunpack.c.l.b16 %v3004
    %v3035 = vunpack.c.l.b16 %v3005
    %v3036 = vunpack.c.l.b16 %v3006
    %v3037 = vunpack.c.l.b16 %v3007
    %v3038 = vunpack.c.l.b16 %v3008
    %v3039 = vunpack.c.l.b16 %v3009
    %v3040 = vunpack.c.l.b16 %v3010
    %v3041 = vpack.c.b16 %v3030, %v3029
    %v3042 = vpack.c.b16 %v3032, %v3031
    %v3043 = vpack.c.b16 %v3034, %v3033
    %v3044 = vpack.c.b16 %v3036, %v3035
    %v3045 = vpack.c.b16 %v3038, %v3037
    %v3046 = vpack.c.b16 %v3040, %v3039
    %vm3053 = vcmask 785408
    %v3055 = vsel %vm3053, %v2997, 0
    %v3058 = vsel %vm3053, %v2998, 0
    %3060 = vmatprep.subr.bf16.mxu0 0
    %3061 = vmatpush1.bf16.msra.mxu0 %v3041
    %3062 = vmatprep.subr.bf16.mxu0 0
    %3063 = vmatpush1.bf16.msra.mxu0 %v3042
    %3064 = vmatprep.subr.bf16.mxu0 0
    %3065 = vmatpush1.bf16.msra.mxu0 %v3043
    %3066 = vmatprep.subr.bf16.mxu0 0
    %3067 = vmatpush1.bf16.msra.mxu0 %v3044
    %3068 = vmatprep.subr.bf16.mxu0 0
    %3069 = vmatpush1.bf16.msra.mxu0 %v3045
    %3070 = vmatprep.subr.bf16.mxu0 0
    %3071 = vmatpush1.bf16.msra.mxu0 %v3046
    %3072 = vmatprep.subr.bf16.mxu0 0
    %3073 = vmatpush1.bf16.msra.mxu0 0
    %3074 = vmatprep.subr.bf16.mxu0 0
    %3075 = vmatpush1.bf16.msra.mxu0 0
    %3076 = vmatprep.subr.bf16.mxu0 0
    %3077 = vmatpush1.bf16.msra.mxu0 0
    %3078 = vmatprep.subr.bf16.mxu0 0
    %3079 = vmatpush1.bf16.msra.mxu0 0
    %3080 = vmatprep.subr.bf16.mxu0 0
    %3081 = vmatpush1.bf16.msra.mxu0 0
    %3082 = vmatprep.subr.bf16.mxu0 0
    %3083 = vmatpush1.bf16.msra.mxu0 0
    %3084 = vmatprep.subr.bf16.mxu0 0
    %3085 = vmatpush1.bf16.msra.mxu0 0
    %3086 = vmatprep.subr.bf16.mxu0 0
    %3087 = vmatpush1.bf16.msra.mxu0 0
    %3088 = vmatprep.subr.bf16.mxu0 0
    %3089 = vmatpush1.bf16.msra.mxu0 0
    %3090 = vmatprep.subr.bf16.mxu0 0
    %3091 = vmatpush1.bf16.msra.mxu0 0
    %3092 = vmatprep.mubr.bf16.mxu0 0
    %3093 = vmatmul.mubr.bf16.gmra.mrb[0].mxu0 %v3055
    %v3094 = vpop.f32.mrb[0].mxu0
    %v3095 = vadd.f32 %v3015, %v3094
    %v3096 = vpop.f32.mrb[0].mxu0
    %v3097 = vpop.f32.mrb[0].mxu0
    %v3098 = vadd.f32 %v3015, %v3097
    %v3099 = vpop.f32.mrb[0].mxu0
    %3100 = vmatprep.mubr.bf16.mxu0 0
    %3101 = vmatmul.mubr.bf16.gmra.mrb[0].mxu0 %v3058
    %v3102 = vpop.f32.mrb[0].mxu0
    %v3103 = vadd.f32 %v3015, %v3102
    %v3104 = vpop.f32.mrb[0].mxu0
    %v3105 = vpop.f32.mrb[0].mxu0
    %v3106 = vpop.f32.mrb[0].mxu0
    %3107 = vdwg.mxu0
    %v3108 = vmax.f32 %v3095, 0.0
    %v3109 = vmax.f32 %v3098, 0.0
    %v3110 = vmax.f32 %v3103, 0.0
    %v3111 = vsel %vm2457, %v3108, 0.0
    %v3112 = vsel %vm2457, %v3109, 0.0
    %v3113 = vadd.f32 %v3111, %v3112
    %v3114 = vsel %vm2457, %v3110, 0.0
    %v3115 = vadd.f32 %v3113, %v3114
    %v3116 = vmul.f32 %v3115, 0.33333334
    %3118 = vrot.lane.b32.xlu0 %v2226, 32
    %v3119 = vpop.permute.xlu0 %3118
    %3122 = vrot.lane.b32.xlu0 %v3116, 32
    %v3123 = vpop.permute.xlu0 %3122
    %v3125 = vsel %vm499, %v3119, %v3123
    %v3126 = vpack.c.bf16 %v3125, %v3125
    %v3127 = vld [vmem:[#allocation29] sm:$0xf]
    %v3128 = vld [vmem:[#allocation29 + $0x4] sm:$0xf]
    %v3129 = vld [vmem:[#allocation29 + $0x8] sm:$0xf]
    %v3130 = vld [vmem:[#allocation29 + $0xc] sm:$0xf]
    %v3131 = vld [vmem:[#allocation29 + $0x10] sm:$0xf]
    %v3132 = vld [vmem:[#allocation29 + $0x14] sm:$0xf]
    %v3133 = vld [vmem:[#allocation31] sm:$0x1]
    %v3135 = vlaneseq
    %v3136 = vshrl.u32 %v3135, 7
    %v3137 = vsub.s32 0, %v3136
    %v3138 = vrot.slane %v3133, %v3137
    %v3146 = vunpack.c.l.b16 %v3127
    %v3147 = vunpack.c.l.b16 %v3128
    %v3148 = vunpack.c.l.b16 %v3129
    %v3149 = vunpack.c.l.b16 %v3130
    %v3150 = vunpack.c.l.b16 %v3131
    %v3151 = vunpack.c.l.b16 %v3132
    %v3152 = vpack.c.b16 %v3147, %v3146
    %v3153 = vpack.c.b16 %v3149, %v3148
    %v3154 = vpack.c.b16 %v3151, %v3150
    %v3159 = vsel %vm2496, %v3126, 0
    %3161 = vmatprep.subr.bf16.mxu0 0
    %3162 = vmatpush1.bf16.msra.mxu0 %v3152
    %3163 = vmatprep.subr.bf16.mxu0 0
    %3164 = vmatpush1.bf16.msra.mxu0 %v3153
    %3165 = vmatprep.subr.bf16.mxu0 0
    %3166 = vmatpush1.bf16.msra.mxu0 %v3154
    %3167 = vmatprep.subr.bf16.mxu0 0
    %3168 = vmatpush1.bf16.msra.mxu0 0
    %3169 = vmatprep.subr.bf16.mxu0 0
    %3170 = vmatpush1.bf16.msra.mxu0 0
    %3171 = vmatprep.subr.bf16.mxu0 0
    %3172 = vmatpush1.bf16.msra.mxu0 0
    %3173 = vmatprep.subr.bf16.mxu0 0
    %3174 = vmatpush1.bf16.msra.mxu0 0
    %3175 = vmatprep.subr.bf16.mxu0 0
    %3176 = vmatpush1.bf16.msra.mxu0 0
    %3177 = vmatprep.subr.bf16.mxu0 0
    %3178 = vmatpush1.bf16.msra.mxu0 0
    %3179 = vmatprep.subr.bf16.mxu0 0
    %3180 = vmatpush1.bf16.msra.mxu0 0
    %3181 = vmatprep.subr.bf16.mxu0 0
    %3182 = vmatpush1.bf16.msra.mxu0 0
    %3183 = vmatprep.subr.bf16.mxu0 0
    %3184 = vmatpush1.bf16.msra.mxu0 0
    %3185 = vmatprep.subr.bf16.mxu0 0
    %3186 = vmatpush1.bf16.msra.mxu0 0
    %3187 = vmatprep.subr.bf16.mxu0 0
    %3188 = vmatpush1.bf16.msra.mxu0 0
    %3189 = vmatprep.subr.bf16.mxu0 0
    %3190 = vmatpush1.bf16.msra.mxu0 0
    %3191 = vmatprep.subr.bf16.mxu0 0
    %3192 = vmatpush1.bf16.msra.mxu0 0
    %3193 = vmatprep.mubr.bf16.mxu0 0
    %3194 = vmatmul.mubr.bf16.gmra.mrb[0].mxu0 %v3159
    %v3195 = vpop.f32.mrb[0].mxu0
    %v3196 = vadd.f32 %v3138, %v3195
    %v3197 = vpop.f32.mrb[0].mxu0
    %v3198 = vpop.f32.mrb[0].mxu0
    %v3199 = vpop.f32.mrb[0].mxu0
    %3200 = vdwg.mxu0
    %3201 = vst [vmem:[#allocation32] sm:$0xff] %v3196
    // Predicated region
    $region138: #{tpu_custom_call.1} parent=1 // pred_check
      _
    $region139: #{tpu_custom_call.1} parent=1 // pred_check_branch
      %3203 = sbr.rel (0) target = $region141
    $region140: #{tpu_custom_call.1} parent=1 // pred_region
      %s3205 = ssub.s32 128, 128
      %3206 = vsyncadd [#allocation7], %s3205
      %s3208 = sshll.u32 [#allocation32], 4
      %s3209 = int_to_ptr.vmem [resolvable:$true] %s3208
      %3211 = dma.vmem_to_hbm [thread:$0]  %s3209, 128, %s18, [#allocation7]
    $region141: #{tpu_custom_call.1} parent=1 // pred_fallthru
      _
    // Predicated region
    $region142: #{tpu_custom_call.1} parent=1 // pred_check
      _
    $region143: #{tpu_custom_call.1} parent=1 // pred_check_branch
      %3213 = sbr.rel (0) target = $region145
    $region144: #{tpu_custom_call.1} parent=1 // pred_region
      %3214 = dma.done [#allocation7], 128
    $region145: #{tpu_custom_call.1} parent=1 // pred_fallthru
      _
    %3215 = vsyncpa [#allocation6], 1
    %3216 = vsyncpa [#allocation9], 1
    %3217 = vsyncpa [#allocation12], 1
    %3218 = vsyncpa [#allocation15], 1
    %3219 = vsyncpa [#allocation18], 1
    %3220 = vsyncpa [#allocation21], 1
    %3221 = vsyncpa [#allocation24], 1
    %3222 = vsyncpa [#allocation27], 1
    %3223 = vsyncpa [#allocation30], 1
    %3224 = vsyncpa [#allocation7], 1

</llo_original>
